<compile_context>
chip_gen: v7x
topology: tpu7x:2x2x1
jax: 0.10.0
libtpu: 0.0.40
codegen_flags: <defaults>
</compile_context>

<pallas_src>
import functools

import jax
import jax.numpy as jnp
import numpy as np
from jax.experimental import pallas as pl
from jax.experimental.pallas import tpu as pltpu

# ----------------------- scaled-down config (same structure) -----------------
VOCAB = 1000        # max_features (100000 in original)
EMBED = 64          # embed_size   (300 in original)
HIDDEN = 32         # LSTM hidden  (128 in original)
CONV_OUT = 16       # conv out_channels (64 in original)
KSIZE = 3           # conv kernel size, padding='valid'
POOL = 3            # avg/max pool kernel size
NUM_CLASSES = 6
BATCH = 2
SEQ = 20            # sequence length

CONV_LEN = SEQ - KSIZE + 1            # valid conv output length
POOL_LEN = CONV_LEN // POOL           # pooled length
FLAT = 2 * CONV_OUT * POOL_LEN        # Linear in_features (6272 in original)
LIN_PAD = 128                         # logits padded to a full lane width


# --------------------------- fused forward kernel ----------------------------
def _fused_kernel(x_ref, wih_ref, whh_ref, b_ref, wconv_ref, bconv_ref,
                  wlin_ref, blin_ref, out_ref, gx_scr, y_scr, *, batch):
    """Whole BiLSTM-CNN forward in one invocation (no grid).

    x_ref      : (T*B, E)  embedded tokens, time-major rows (row = t*B + b)
    wih_ref    : (E, 8H)   [fwd i f g o | bwd i f g o] input-gate weights
    whh_ref    : (2H, 8H)  block-diagonal recurrent weights
    b_ref      : (1, 8H)   bih + bhh, both directions
    wconv_ref  : (K, 2H, C)
    bconv_ref  : (1, C)
    wlin_ref   : (P, 2C, 128) permuted + zero-padded Linear weights
    blin_ref   : (1, 128)  Linear bias, padded lanes = -1e30
    out_ref    : (B, NUM_CLASSES) softmax probabilities
    gx_scr     : (T*B, 8H) hoisted input projections
    y_scr      : (T*B, 2H) BiLSTM hidden states [fwd | bwd]
    """
    B = batch
    TB = x_ref.shape[0]
    T = TB // B
    H2 = whh_ref.shape[0]          # 2 * hidden  ([fwd | bwd] state width)
    H = H2 // 2
    G = 4 * H                      # per-direction gate width (i f g o)
    K, _, C = wconv_ref.shape
    P = wlin_ref.shape[0]
    L = T - K + 1

    # ---- hoisted input projection: one big MXU matmul for both directions --
    gx_scr[...] = (jnp.dot(x_ref[...], wih_ref[...],
                           preferred_element_type=jnp.float32) + b_ref[...])

    # Lane mask: tanh for the 'g' block of each direction, sigmoid for i/f/o.
    col = jax.lax.broadcasted_iota(jnp.int32, (B, 2 * G), 1) % G
    g_mask = (col >= 2 * H) & (col < 3 * H)

    whh = whh_ref[...]             # (2H, 8H) kept resident in vregs

    h = jnp.zeros((B, H2), jnp.float32)   # [h_fwd | h_bwd]
    c = jnp.zeros((B, H2), jnp.float32)

    # Recurrence, fully unrolled at trace time (T is small and static here).
    # TODO(synk): for long sequences switch to lax.fori_loop(..., unroll=k).
    for s in range(T):
        rf = s * B                 # rows of time step s       (fwd direction)
        rb = (T - 1 - s) * B       # rows of time step T-1-s   (bwd direction)
        gates = jnp.concatenate([gx_scr[rf:rf + B, :G],
                                 gx_scr[rb:rb + B, G:]], axis=-1)
        gates = gates + jnp.dot(h, whh, preferred_element_type=jnp.float32)
        act = jnp.where(g_mask, jnp.tanh(gates), jax.nn.sigmoid(gates))
        i = jnp.concatenate([act[:, 0 * H:1 * H], act[:, G + 0 * H:G + 1 * H]], -1)
        f = jnp.concatenate([act[:, 1 * H:2 * H], act[:, G + 1 * H:G + 2 * H]], -1)
        g = jnp.concatenate([act[:, 2 * H:3 * H], act[:, G + 2 * H:G + 3 * H]], -1)
        o = jnp.concatenate([act[:, 3 * H:4 * H], act[:, G + 3 * H:G + 4 * H]], -1)
        c = f * c + i * g
        h = o * jnp.tanh(c)
        y_scr[rf:rf + B, :H] = h[:, :H]    # fwd hidden state for time s
        y_scr[rb:rb + B, H:] = h[:, H:]    # bwd hidden state for time T-1-s

    # ---- Conv1d (padding='valid') as K shifted whole-batch matmuls ---------
    conv = jnp.zeros((L * B, C), jnp.float32)
    for k in range(K):
        conv = conv + jnp.dot(y_scr[k * B:(k + L) * B, :], wconv_ref[k],
                              preferred_element_type=jnp.float32)
    conv = conv + bconv_ref[...]

    # ---- avg/max pool (k=3, stride 3) + flatten + Linear, fused ------------
    # wlin_ref is pre-permuted so block p maps pooled[p] straight to logits.
    logits = jnp.zeros((B, blin_ref.shape[1]), jnp.float32) + blin_ref[...]
    for p in range(P):
        win = [conv[(POOL * p + j) * B:(POOL * p + j + 1) * B]
               for j in range(POOL)]
        acc = win[0]
        mx = win[0]
        for w in win[1:]:
            acc = acc + w
            mx = jnp.maximum(mx, w)
        pooled = jnp.concatenate([acc * (1.0 / POOL), mx], axis=-1)  # (B, 2C)
        logits = logits + jnp.dot(pooled, wlin_ref[p],
                                  preferred_element_type=jnp.float32)

    # ---- softmax over 128 padded lanes (padded logits are -1e30 -> exp=0) --
    m = jnp.max(logits, axis=-1, keepdims=True)
    e = jnp.exp(logits - m)
    ssum = jnp.sum(e, axis=-1, keepdims=True)
    r = pl.reciprocal(ssum, approx=True)
    r = r * (2.0 - ssum * r)       # Newton refinement -> full precision
    r = r * (2.0 - ssum * r)
    out_ref[...] = (e * r)[:, :out_ref.shape[1]]


def fused_forward(x, params, *, batch):
    """x: (T*B, E) f32 time-major embedded tokens -> (B, NUM_CLASSES) probs."""
    tb = x.shape[0]
    return pl.pallas_call(
        functools.partial(_fused_kernel, batch=batch),
        out_shape=jax.ShapeDtypeStruct((batch, NUM_CLASSES), jnp.float32),
        scratch_shapes=[
            pltpu.VMEM((tb, 8 * HIDDEN), jnp.float32),   # hoisted input gates
            pltpu.VMEM((tb, 2 * HIDDEN), jnp.float32),   # BiLSTM hidden states
        ],
    )(x, params["wih_fb"], params["whh_blk"], params["b_fb"],
      params["wconv_kic"], params["bconv"], params["wlin_pcn"],
      params["blin_pad"])


@jax.jit
def bilstm_cnn_forward(tokens, params):
    B, _ = tokens.shape
    # Embedding lookup (data-dependent gather) stays in XLA; rows are laid out
    # time-major (row = t*B + b) so the kernel needs no transposes at all.
    x = jnp.take(params["emb"], jnp.transpose(tokens).reshape(-1), axis=0)
    return fused_forward(x, params, batch=B)


# --------------------------- pure-JAX reference check ------------------------
def reference_forward(tokens, raw):
    x = raw["emb"][tokens]                                    # (B, T, E)
    xt = jnp.transpose(x, (1, 0, 2))

    def run(xseq, wih, whh, bih, bhh):
        def step(carry, xcur):
            h, c = carry
            g = xcur @ wih.T + h @ whh.T + bih + bhh
            i = jax.nn.sigmoid(g[:, :HIDDEN])
            f = jax.nn.sigmoid(g[:, HIDDEN:2 * HIDDEN])
            gg = jnp.tanh(g[:, 2 * HIDDEN:3 * HIDDEN])
            o = jax.nn.sigmoid(g[:, 3 * HIDDEN:])
            c = f * c + i * gg
            h = o * jnp.tanh(c)
            return (h, c), h
        z = jnp.zeros((tokens.shape[0], HIDDEN), jnp.float32)
        _, hs = jax.lax.scan(step, (z, z), xseq)
        return hs

    hf = run(xt, raw["wih_f"], raw["whh_f"], raw["bih_f"], raw["bhh_f"])
    hb = run(xt[::-1], raw["wih_b"], raw["whh_b"], raw["bih_b"], raw["bhh_b"])[::-1]
    y = jnp.concatenate([hf, hb], axis=-1)                    # (T, B, 2H)
    y = jnp.transpose(y, (1, 2, 0))                           # (B, 2H, T)
    conv = sum(jnp.einsum("oc,bcl->bol", raw["wconv"][:, :, k],
                          y[:, :, k:k + CONV_LEN]) for k in range(KSIZE))
    conv = conv + raw["bconv"][None, :, None]                 # (B, C_out, L)
    cut = conv[:, :, :POOL_LEN * POOL].reshape(
        tokens.shape[0], CONV_OUT, POOL_LEN, POOL)
    avg, mx = cut.mean(-1), cut.max(-1)
    flat = jnp.concatenate([avg, mx], axis=1).reshape(tokens.shape[0], -1)
    logits = flat @ raw["wlin"].T + raw["blin"]
    return jax.nn.softmax(logits, axis=-1)


# ------------------------------------ main ------------------------------------
if __name__ == "__main__":
    key = jax.random.PRNGKey(0)
    ks = jax.random.split(key, 14)

    def rnd(k, shape, s=0.2):
        return s * jax.random.normal(k, shape, dtype=jnp.float32)

    # Parameters in PyTorch conventions (shapes from the module's __init__).
    raw = dict(
        emb=rnd(ks[0], (VOCAB, EMBED), 1.0),
        wih_f=rnd(ks[1], (4 * HIDDEN, EMBED)),
        whh_f=rnd(ks[2], (4 * HIDDEN, HIDDEN)),
        bih_f=rnd(ks[3], (4 * HIDDEN,)),
        bhh_f=rnd(ks[4], (4 * HIDDEN,)),
        wih_b=rnd(ks[5], (4 * HIDDEN, EMBED)),
        whh_b=rnd(ks[6], (4 * HIDDEN, HIDDEN)),
        bih_b=rnd(ks[7], (4 * HIDDEN,)),
        bhh_b=rnd(ks[8], (4 * HIDDEN,)),
        wconv=rnd(ks[9], (CONV_OUT, 2 * HIDDEN, KSIZE)),
        bconv=rnd(ks[10], (CONV_OUT,)),
        wlin=rnd(ks[11], (NUM_CLASSES, FLAT)),
        blin=rnd(ks[12], (NUM_CLASSES,)),
    )

    # ---- kernel-friendly layouts (computed once, outside the jitted fwd) ----
    zeros_h = jnp.zeros((HIDDEN, 4 * HIDDEN), jnp.float32)
    wlin_pad = jnp.pad(raw["wlin"].T, ((0, 0), (0, LIN_PAD - NUM_CLASSES)))
    wlin_pcn = jnp.transpose(
        wlin_pad.reshape(2 * CONV_OUT, POOL_LEN, LIN_PAD), (1, 0, 2))
    blin_pad = (jnp.full((LIN_PAD,), -1e30, jnp.float32)
                .at[:NUM_CLASSES].set(raw["blin"]))[None, :]

    params = dict(
        emb=raw["emb"],
        # (E, 8H): [fwd i f g o | bwd i f g o]
        wih_fb=jnp.concatenate([raw["wih_f"].T, raw["wih_b"].T], axis=1),
        # (2H, 8H) block-diagonal: [h_f | h_b] @ whh_blk -> both gate blocks.
        whh_blk=jnp.concatenate(
            [jnp.concatenate([raw["whh_f"].T, zeros_h], axis=1),
             jnp.concatenate([zeros_h, raw["whh_b"].T], axis=1)], axis=0),
        b_fb=jnp.concatenate([raw["bih_f"] + raw["bhh_f"],
                              raw["bih_b"] + raw["bhh_b"]])[None, :],
        wconv_kic=jnp.transpose(raw["wconv"], (2, 1, 0)),     # (K, 2H, C_out)
        bconv=raw["bconv"][None, :],
        wlin_pcn=wlin_pcn,                                    # (P, 2C, 128)
        blin_pad=blin_pad,                                    # (1, 128)
    )

    tokens = jax.random.randint(ks[13], (BATCH, SEQ), 0, VOCAB, dtype=jnp.int32)

    out = bilstm_cnn_forward(tokens, params)
    out = jax.block_until_ready(out)

    ref = jax.block_until_ready(reference_forward(tokens, raw))
    np.testing.assert_allclose(np.asarray(out), np.asarray(ref),
                               atol=1e-4, rtol=1e-4)
    assert out.shape == (BATCH, NUM_CLASSES)

    print("KERNEL_OK")
</pallas_src>

<mosaic_0001>
module attributes {stable_mosaic.version = 11 : i64} {
  func.func @_fused_kernel(%arg0: memref<40x64xf32, #tpu.memory_space<vmem>>, %arg1: memref<64x256xf32, #tpu.memory_space<vmem>>, %arg2: memref<64x256xf32, #tpu.memory_space<vmem>>, %arg3: memref<1x256xf32, #tpu.memory_space<vmem>>, %arg4: memref<3x64x16xf32, #tpu.memory_space<vmem>>, %arg5: memref<1x16xf32, #tpu.memory_space<vmem>>, %arg6: memref<6x32x128xf32, #tpu.memory_space<vmem>>, %arg7: memref<1x128xf32, #tpu.memory_space<vmem>>, %arg8: memref<2x6xf32, #tpu.memory_space<vmem>>, %arg9: memref<40x256xf32, #tpu.memory_space<vmem>>, %arg10: memref<40x64xf32, #tpu.memory_space<vmem>>) attributes {dimension_semantics = [], scalar_prefetch = 0 : i64, scratch_operands = 2 : i64, tpu.core_type = #tpu.core_type<tc>} {
    %c0 = arith.constant 0 : index
    %c0_0 = arith.constant 0 : index
    %0 = vector.load %arg0[%c0, %c0_0] : memref<40x64xf32, #tpu.memory_space<vmem>>, vector<40x64xf32>
    %c0_1 = arith.constant 0 : index
    %c0_2 = arith.constant 0 : index
    %1 = vector.load %arg1[%c0_1, %c0_2] : memref<64x256xf32, #tpu.memory_space<vmem>>, vector<64x256xf32>
    %cst = arith.constant dense<0.000000e+00> : vector<40x256xf32>
    %2 = tpu.matmul %0, %1, %cst {dimension_numbers = #tpu.dot_dimension_numbers<[1], [0], [0], [1], [0, 0, 1, 1], [], []>} : vector<40x64xf32>, vector<64x256xf32>, vector<40x256xf32> -> vector<40x256xf32>
    %c0_3 = arith.constant 0 : index
    %c0_4 = arith.constant 0 : index
    %3 = vector.load %arg3[%c0_3, %c0_4] : memref<1x256xf32, #tpu.memory_space<vmem>>, vector<1x256xf32>
    %4 = vector.broadcast %3 : vector<1x256xf32> to vector<40x256xf32>
    %5 = arith.addf %2, %4 : vector<40x256xf32>
    %c0_5 = arith.constant 0 : index
    %c0_6 = arith.constant 0 : index
    %6 = vector.load %arg9[%c0_5, %c0_6] : memref<40x256xf32, #tpu.memory_space<vmem>>, vector<40x256xf32>
    tpu.vector_store %arg9[%c0_5, %c0_6], %5 {strides = array<i32>} : memref<40x256xf32, #tpu.memory_space<vmem>>, vector<40x256xf32>,
    %7 = tpu.iota {dimensions = array<i32: 1>} : vector<2x256xi32>
    %c128_i32 = arith.constant 128 : i32
    %c0_i32 = arith.constant 0 : i32
    %8 = arith.cmpi eq, %c128_i32, %c0_i32 : i32
    %c1_i32 = arith.constant 1 : i32
    %9 = arith.select %8, %c1_i32, %c128_i32 : i32
    %10 = vector.broadcast %9 : i32 to vector<2x256xi32>
    %11 = arith.remsi %7, %10 : vector<2x256xi32>
    %c0_i32_7 = arith.constant 0 : i32
    %12 = vector.broadcast %c0_i32_7 : i32 to vector<2x256xi32>
    %13 = arith.cmpi ne, %11, %12 : vector<2x256xi32>
    %c0_i32_8 = arith.constant 0 : i32
    %14 = vector.broadcast %c0_i32_8 : i32 to vector<2x256xi32>
    %15 = arith.cmpi slt, %11, %14 : vector<2x256xi32>
    %c0_i32_9 = arith.constant 0 : i32
    %16 = arith.cmpi slt, %9, %c0_i32_9 : i32
    %17 = vector.broadcast %16 : i1 to vector<2x256xi1>
    %18 = vector.broadcast %17 : vector<2x256xi1> to vector<2x256xi1>
    %19 = arith.xori %15, %18 : vector<2x256xi1>
    %20 = arith.andi %19, %13 : vector<2x256xi1>
    %21 = vector.broadcast %9 : i32 to vector<2x256xi32>
    %22 = arith.addi %11, %21 : vector<2x256xi32>
    %23 = arith.select %20, %22, %11 : vector<2x256xi1>, vector<2x256xi32>
    %c64_i32 = arith.constant 64 : i32
    %24 = vector.broadcast %c64_i32 : i32 to vector<2x256xi32>
    %25 = arith.cmpi sge, %23, %24 : vector<2x256xi32>
    %c96_i32 = arith.constant 96 : i32
    %26 = vector.broadcast %c96_i32 : i32 to vector<2x256xi32>
    %27 = arith.cmpi slt, %23, %26 : vector<2x256xi32>
    %28 = arith.andi %25, %27 : vector<2x256xi1>
    %c0_10 = arith.constant 0 : index
    %c0_11 = arith.constant 0 : index
    %29 = vector.load %arg2[%c0_10, %c0_11] : memref<64x256xf32, #tpu.memory_space<vmem>>, vector<64x256xf32>
    %cst_12 = arith.constant 0.000000e+00 : f32
    %30 = vector.broadcast %cst_12 : f32 to vector<2x64xf32>
    %cst_13 = arith.constant 0.000000e+00 : f32
    %31 = vector.broadcast %cst_13 : f32 to vector<2x64xf32>
    %c0_14 = arith.constant 0 : index
    %c0_15 = arith.constant 0 : index
    %32 = vector.load %arg9[%c0_14, %c0_15] : memref<40x256xf32, #tpu.memory_space<vmem>>, vector<2x128xf32>
    %c38 = arith.constant 38 : index
    %c128 = arith.constant 128 : index
    %33 = vector.load %arg9[%c38, %c128] : memref<40x256xf32, #tpu.memory_space<vmem>>, vector<2x128xf32>
    %34 = tpu.concatenate %32, %33 in 1 : vector<2x128xf32>, vector<2x128xf32> -> vector<2x256xf32>
    %cst_16 = arith.constant dense<0.000000e+00> : vector<2x256xf32>
    %35 = tpu.matmul %30, %29, %cst_16 {dimension_numbers = #tpu.dot_dimension_numbers<[1], [0], [0], [1], [0, 0, 1, 1], [], []>} : vector<2x64xf32>, vector<64x256xf32>, vector<2x256xf32> -> vector<2x256xf32>
    %36 = arith.addf %34, %35 : vector<2x256xf32>
    %37 = math.tanh %36 : vector<2x256xf32>
    %38 = arith.negf %36 : vector<2x256xf32>
    %39 = math.exp %38 : vector<2x256xf32>
    %cst_17 = arith.constant 1.000000e+00 : f32
    %40 = vector.broadcast %cst_17 : f32 to vector<2x256xf32>
    %41 = arith.addf %40, %39 : vector<2x256xf32>
    %42 = arith.divf %40, %41 : vector<2x256xf32>
    %43 = arith.select %28, %37, %42 : vector<2x256xi1>, vector<2x256xf32>
    %44 = vector.extract_strided_slice %43 {offsets = [0, 0], sizes = [2, 32], strides = [1, 1]} : vector<2x256xf32> to vector<2x32xf32>
    %45 = vector.extract_strided_slice %43 {offsets = [0, 128], sizes = [2, 32], strides = [1, 1]} : vector<2x256xf32> to vector<2x32xf32>
    %46 = tpu.concatenate %44, %45 in 1 : vector<2x32xf32>, vector<2x32xf32> -> vector<2x64xf32>
    %47 = vector.extract_strided_slice %43 {offsets = [0, 32], sizes = [2, 32], strides = [1, 1]} : vector<2x256xf32> to vector<2x32xf32>
    %48 = vector.extract_strided_slice %43 {offsets = [0, 160], sizes = [2, 32], strides = [1, 1]} : vector<2x256xf32> to vector<2x32xf32>
    %49 = tpu.concatenate %47, %48 in 1 : vector<2x32xf32>, vector<2x32xf32> -> vector<2x64xf32>
    %50 = vector.extract_strided_slice %43 {offsets = [0, 64], sizes = [2, 32], strides = [1, 1]} : vector<2x256xf32> to vector<2x32xf32>
    %51 = vector.extract_strided_slice %43 {offsets = [0, 192], sizes = [2, 32], strides = [1, 1]} : vector<2x256xf32> to vector<2x32xf32>
    %52 = tpu.concatenate %50, %51 in 1 : vector<2x32xf32>, vector<2x32xf32> -> vector<2x64xf32>
    %53 = vector.extract_strided_slice %43 {offsets = [0, 96], sizes = [2, 32], strides = [1, 1]} : vector<2x256xf32> to vector<2x32xf32>
    %54 = vector.extract_strided_slice %43 {offsets = [0, 224], sizes = [2, 32], strides = [1, 1]} : vector<2x256xf32> to vector<2x32xf32>
    %55 = tpu.concatenate %53, %54 in 1 : vector<2x32xf32>, vector<2x32xf32> -> vector<2x64xf32>
    %56 = arith.mulf %49, %31 : vector<2x64xf32>
    %57 = arith.mulf %46, %52 : vector<2x64xf32>
    %58 = arith.addf %56, %57 : vector<2x64xf32>
    %59 = math.tanh %58 : vector<2x64xf32>
    %60 = arith.mulf %55, %59 : vector<2x64xf32>
    %61 = vector.extract_strided_slice %60 {offsets = [0, 0], sizes = [2, 32], strides = [1, 1]} : vector<2x64xf32> to vector<2x32xf32>
    %c0_18 = arith.constant 0 : index
    %c0_19 = arith.constant 0 : index
    %62 = vector.load %arg10[%c0_18, %c0_19] : memref<40x64xf32, #tpu.memory_space<vmem>>, vector<2x32xf32>
    tpu.vector_store %arg10[%c0_18, %c0_19], %61 {strides = array<i32>} : memref<40x64xf32, #tpu.memory_space<vmem>>, vector<2x32xf32>,
    %63 = vector.extract_strided_slice %60 {offsets = [0, 32], sizes = [2, 32], strides = [1, 1]} : vector<2x64xf32> to vector<2x32xf32>
    %c38_20 = arith.constant 38 : index
    %c32 = arith.constant 32 : index
    %64 = vector.load %arg10[%c38_20, %c32] : memref<40x64xf32, #tpu.memory_space<vmem>>, vector<2x32xf32>
    tpu.vector_store %arg10[%c38_20, %c32], %63 {strides = array<i32>} : memref<40x64xf32, #tpu.memory_space<vmem>>, vector<2x32xf32>,
    %c2 = arith.constant 2 : index
    %c0_21 = arith.constant 0 : index
    %65 = vector.load %arg9[%c2, %c0_21] : memref<40x256xf32, #tpu.memory_space<vmem>>, vector<2x128xf32>
    %c36 = arith.constant 36 : index
    %c128_22 = arith.constant 128 : index
    %66 = vector.load %arg9[%c36, %c128_22] : memref<40x256xf32, #tpu.memory_space<vmem>>, vector<2x128xf32>
    %67 = tpu.concatenate %65, %66 in 1 : vector<2x128xf32>, vector<2x128xf32> -> vector<2x256xf32>
    %cst_23 = arith.constant dense<0.000000e+00> : vector<2x256xf32>
    %68 = tpu.matmul %60, %29, %cst_23 {dimension_numbers = #tpu.dot_dimension_numbers<[1], [0], [0], [1], [0, 0, 1, 1], [], []>} : vector<2x64xf32>, vector<64x256xf32>, vector<2x256xf32> -> vector<2x256xf32>
    %69 = arith.addf %67, %68 : vector<2x256xf32>
    %70 = math.tanh %69 : vector<2x256xf32>
    %71 = arith.negf %69 : vector<2x256xf32>
    %72 = math.exp %71 : vector<2x256xf32>
    %cst_24 = arith.constant 1.000000e+00 : f32
    %73 = vector.broadcast %cst_24 : f32 to vector<2x256xf32>
    %74 = arith.addf %73, %72 : vector<2x256xf32>
    %75 = arith.divf %73, %74 : vector<2x256xf32>
    %76 = arith.select %28, %70, %75 : vector<2x256xi1>, vector<2x256xf32>
    %77 = vector.extract_strided_slice %76 {offsets = [0, 0], sizes = [2, 32], strides = [1, 1]} : vector<2x256xf32> to vector<2x32xf32>
    %78 = vector.extract_strided_slice %76 {offsets = [0, 128], sizes = [2, 32], strides = [1, 1]} : vector<2x256xf32> to vector<2x32xf32>
    %79 = tpu.concatenate %77, %78 in 1 : vector<2x32xf32>, vector<2x32xf32> -> vector<2x64xf32>
    %80 = vector.extract_strided_slice %76 {offsets = [0, 32], sizes = [2, 32], strides = [1, 1]} : vector<2x256xf32> to vector<2x32xf32>
    %81 = vector.extract_strided_slice %76 {offsets = [0, 160], sizes = [2, 32], strides = [1, 1]} : vector<2x256xf32> to vector<2x32xf32>
    %82 = tpu.concatenate %80, %81 in 1 : vector<2x32xf32>, vector<2x32xf32> -> vector<2x64xf32>
    %83 = vector.extract_strided_slice %76 {offsets = [0, 64], sizes = [2, 32], strides = [1, 1]} : vector<2x256xf32> to vector<2x32xf32>
    %84 = vector.extract_strided_slice %76 {offsets = [0, 192], sizes = [2, 32], strides = [1, 1]} : vector<2x256xf32> to vector<2x32xf32>
    %85 = tpu.concatenate %83, %84 in 1 : vector<2x32xf32>, vector<2x32xf32> -> vector<2x64xf32>
    %86 = vector.extract_strided_slice %76 {offsets = [0, 96], sizes = [2, 32], strides = [1, 1]} : vector<2x256xf32> to vector<2x32xf32>
    %87 = vector.extract_strided_slice %76 {offsets = [0, 224], sizes = [2, 32], strides = [1, 1]} : vector<2x256xf32> to vector<2x32xf32>
    %88 = tpu.concatenate %86, %87 in 1 : vector<2x32xf32>, vector<2x32xf32> -> vector<2x64xf32>
    %89 = arith.mulf %82, %58 : vector<2x64xf32>
    %90 = arith.mulf %79, %85 : vector<2x64xf32>
    %91 = arith.addf %89, %90 : vector<2x64xf32>
    %92 = math.tanh %91 : vector<2x64xf32>
    %93 = arith.mulf %88, %92 : vector<2x64xf32>
    %94 = vector.extract_strided_slice %93 {offsets = [0, 0], sizes = [2, 32], strides = [1, 1]} : vector<2x64xf32> to vector<2x32xf32>
    %c2_25 = arith.constant 2 : index
    %c0_26 = arith.constant 0 : index
    %95 = vector.load %arg10[%c2_25, %c0_26] : memref<40x64xf32, #tpu.memory_space<vmem>>, vector<2x32xf32>
    tpu.vector_store %arg10[%c2_25, %c0_26], %94 {strides = array<i32>} : memref<40x64xf32, #tpu.memory_space<vmem>>, vector<2x32xf32>,
    %96 = vector.extract_strided_slice %93 {offsets = [0, 32], sizes = [2, 32], strides = [1, 1]} : vector<2x64xf32> to vector<2x32xf32>
    %c36_27 = arith.constant 36 : index
    %c32_28 = arith.constant 32 : index
    %97 = vector.load %arg10[%c36_27, %c32_28] : memref<40x64xf32, #tpu.memory_space<vmem>>, vector<2x32xf32>
    tpu.vector_store %arg10[%c36_27, %c32_28], %96 {strides = array<i32>} : memref<40x64xf32, #tpu.memory_space<vmem>>, vector<2x32xf32>,
    %c4 = arith.constant 4 : index
    %c0_29 = arith.constant 0 : index
    %98 = vector.load %arg9[%c4, %c0_29] : memref<40x256xf32, #tpu.memory_space<vmem>>, vector<2x128xf32>
    %c34 = arith.constant 34 : index
    %c128_30 = arith.constant 128 : index
    %99 = vector.load %arg9[%c34, %c128_30] : memref<40x256xf32, #tpu.memory_space<vmem>>, vector<2x128xf32>
    %100 = tpu.concatenate %98, %99 in 1 : vector<2x128xf32>, vector<2x128xf32> -> vector<2x256xf32>
    %cst_31 = arith.constant dense<0.000000e+00> : vector<2x256xf32>
    %101 = tpu.matmul %93, %29, %cst_31 {dimension_numbers = #tpu.dot_dimension_numbers<[1], [0], [0], [1], [0, 0, 1, 1], [], []>} : vector<2x64xf32>, vector<64x256xf32>, vector<2x256xf32> -> vector<2x256xf32>
    %102 = arith.addf %100, %101 : vector<2x256xf32>
    %103 = math.tanh %102 : vector<2x256xf32>
    %104 = arith.negf %102 : vector<2x256xf32>
    %105 = math.exp %104 : vector<2x256xf32>
    %cst_32 = arith.constant 1.000000e+00 : f32
    %106 = vector.broadcast %cst_32 : f32 to vector<2x256xf32>
    %107 = arith.addf %106, %105 : vector<2x256xf32>
    %108 = arith.divf %106, %107 : vector<2x256xf32>
    %109 = arith.select %28, %103, %108 : vector<2x256xi1>, vector<2x256xf32>
    %110 = vector.extract_strided_slice %109 {offsets = [0, 0], sizes = [2, 32], strides = [1, 1]} : vector<2x256xf32> to vector<2x32xf32>
    %111 = vector.extract_strided_slice %109 {offsets = [0, 128], sizes = [2, 32], strides = [1, 1]} : vector<2x256xf32> to vector<2x32xf32>
    %112 = tpu.concatenate %110, %111 in 1 : vector<2x32xf32>, vector<2x32xf32> -> vector<2x64xf32>
    %113 = vector.extract_strided_slice %109 {offsets = [0, 32], sizes = [2, 32], strides = [1, 1]} : vector<2x256xf32> to vector<2x32xf32>
    %114 = vector.extract_strided_slice %109 {offsets = [0, 160], sizes = [2, 32], strides = [1, 1]} : vector<2x256xf32> to vector<2x32xf32>
    %115 = tpu.concatenate %113, %114 in 1 : vector<2x32xf32>, vector<2x32xf32> -> vector<2x64xf32>
    %116 = vector.extract_strided_slice %109 {offsets = [0, 64], sizes = [2, 32], strides = [1, 1]} : vector<2x256xf32> to vector<2x32xf32>
    %117 = vector.extract_strided_slice %109 {offsets = [0, 192], sizes = [2, 32], strides = [1, 1]} : vector<2x256xf32> to vector<2x32xf32>
    %118 = tpu.concatenate %116, %117 in 1 : vector<2x32xf32>, vector<2x32xf32> -> vector<2x64xf32>
    %119 = vector.extract_strided_slice %109 {offsets = [0, 96], sizes = [2, 32], strides = [1, 1]} : vector<2x256xf32> to vector<2x32xf32>
    %120 = vector.extract_strided_slice %109 {offsets = [0, 224], sizes = [2, 32], strides = [1, 1]} : vector<2x256xf32> to vector<2x32xf32>
    %121 = tpu.concatenate %119, %120 in 1 : vector<2x32xf32>, vector<2x32xf32> -> vector<2x64xf32>
    %122 = arith.mulf %115, %91 : vector<2x64xf32>
    %123 = arith.mulf %112, %118 : vector<2x64xf32>
    %124 = arith.addf %122, %123 : vector<2x64xf32>
    %125 = math.tanh %124 : vector<2x64xf32>
    %126 = arith.mulf %121, %125 : vector<2x64xf32>
    %127 = vector.extract_strided_slice %126 {offsets = [0, 0], sizes = [2, 32], strides = [1, 1]} : vector<2x64xf32> to vector<2x32xf32>
    %c4_33 = arith.constant 4 : index
    %c0_34 = arith.constant 0 : index
    %128 = vector.load %arg10[%c4_33, %c0_34] : memref<40x64xf32, #tpu.memory_space<vmem>>, vector<2x32xf32>
    tpu.vector_store %arg10[%c4_33, %c0_34], %127 {strides = array<i32>} : memref<40x64xf32, #tpu.memory_space<vmem>>, vector<2x32xf32>,
    %129 = vector.extract_strided_slice %126 {offsets = [0, 32], sizes = [2, 32], strides = [1, 1]} : vector<2x64xf32> to vector<2x32xf32>
    %c34_35 = arith.constant 34 : index
    %c32_36 = arith.constant 32 : index
    %130 = vector.load %arg10[%c34_35, %c32_36] : memref<40x64xf32, #tpu.memory_space<vmem>>, vector<2x32xf32>
    tpu.vector_store %arg10[%c34_35, %c32_36], %129 {strides = array<i32>} : memref<40x64xf32, #tpu.memory_space<vmem>>, vector<2x32xf32>,
    %c6 = arith.constant 6 : index
    %c0_37 = arith.constant 0 : index
    %131 = vector.load %arg9[%c6, %c0_37] : memref<40x256xf32, #tpu.memory_space<vmem>>, vector<2x128xf32>
    %c32_38 = arith.constant 32 : index
    %c128_39 = arith.constant 128 : index
    %132 = vector.load %arg9[%c32_38, %c128_39] : memref<40x256xf32, #tpu.memory_space<vmem>>, vector<2x128xf32>
    %133 = tpu.concatenate %131, %132 in 1 : vector<2x128xf32>, vector<2x128xf32> -> vector<2x256xf32>
    %cst_40 = arith.constant dense<0.000000e+00> : vector<2x256xf32>
    %134 = tpu.matmul %126, %29, %cst_40 {dimension_numbers = #tpu.dot_dimension_numbers<[1], [0], [0], [1], [0, 0, 1, 1], [], []>} : vector<2x64xf32>, vector<64x256xf32>, vector<2x256xf32> -> vector<2x256xf32>
    %135 = arith.addf %133, %134 : vector<2x256xf32>
    %136 = math.tanh %135 : vector<2x256xf32>
    %137 = arith.negf %135 : vector<2x256xf32>
    %138 = math.exp %137 : vector<2x256xf32>
    %cst_41 = arith.constant 1.000000e+00 : f32
    %139 = vector.broadcast %cst_41 : f32 to vector<2x256xf32>
    %140 = arith.addf %139, %138 : vector<2x256xf32>
    %141 = arith.divf %139, %140 : vector<2x256xf32>
    %142 = arith.select %28, %136, %141 : vector<2x256xi1>, vector<2x256xf32>
    %143 = vector.extract_strided_slice %142 {offsets = [0, 0], sizes = [2, 32], strides = [1, 1]} : vector<2x256xf32> to vector<2x32xf32>
    %144 = vector.extract_strided_slice %142 {offsets = [0, 128], sizes = [2, 32], strides = [1, 1]} : vector<2x256xf32> to vector<2x32xf32>
    %145 = tpu.concatenate %143, %144 in 1 : vector<2x32xf32>, vector<2x32xf32> -> vector<2x64xf32>
    %146 = vector.extract_strided_slice %142 {offsets = [0, 32], sizes = [2, 32], strides = [1, 1]} : vector<2x256xf32> to vector<2x32xf32>
    %147 = vector.extract_strided_slice %142 {offsets = [0, 160], sizes = [2, 32], strides = [1, 1]} : vector<2x256xf32> to vector<2x32xf32>
    %148 = tpu.concatenate %146, %147 in 1 : vector<2x32xf32>, vector<2x32xf32> -> vector<2x64xf32>
    %149 = vector.extract_strided_slice %142 {offsets = [0, 64], sizes = [2, 32], strides = [1, 1]} : vector<2x256xf32> to vector<2x32xf32>
    %150 = vector.extract_strided_slice %142 {offsets = [0, 192], sizes = [2, 32], strides = [1, 1]} : vector<2x256xf32> to vector<2x32xf32>
    %151 = tpu.concatenate %149, %150 in 1 : vector<2x32xf32>, vector<2x32xf32> -> vector<2x64xf32>
    %152 = vector.extract_strided_slice %142 {offsets = [0, 96], sizes = [2, 32], strides = [1, 1]} : vector<2x256xf32> to vector<2x32xf32>
    %153 = vector.extract_strided_slice %142 {offsets = [0, 224], sizes = [2, 32], strides = [1, 1]} : vector<2x256xf32> to vector<2x32xf32>
    %154 = tpu.concatenate %152, %153 in 1 : vector<2x32xf32>, vector<2x32xf32> -> vector<2x64xf32>
    %155 = arith.mulf %148, %124 : vector<2x64xf32>
    %156 = arith.mulf %145, %151 : vector<2x64xf32>
    %157 = arith.addf %155, %156 : vector<2x64xf32>
    %158 = math.tanh %157 : vector<2x64xf32>
    %159 = arith.mulf %154, %158 : vector<2x64xf32>
    %160 = vector.extract_strided_slice %159 {offsets = [0, 0], sizes = [2, 32], strides = [1, 1]} : vector<2x64xf32> to vector<2x32xf32>
    %c6_42 = arith.constant 6 : index
    %c0_43 = arith.constant 0 : index
    %161 = vector.load %arg10[%c6_42, %c0_43] : memref<40x64xf32, #tpu.memory_space<vmem>>, vector<2x32xf32>
    tpu.vector_store %arg10[%c6_42, %c0_43], %160 {strides = array<i32>} : memref<40x64xf32, #tpu.memory_space<vmem>>, vector<2x32xf32>,
    %162 = vector.extract_strided_slice %159 {offsets = [0, 32], sizes = [2, 32], strides = [1, 1]} : vector<2x64xf32> to vector<2x32xf32>
    %c32_44 = arith.constant 32 : index
    %c32_45 = arith.constant 32 : index
    %163 = vector.load %arg10[%c32_44, %c32_45] : memref<40x64xf32, #tpu.memory_space<vmem>>, vector<2x32xf32>
    tpu.vector_store %arg10[%c32_44, %c32_45], %162 {strides = array<i32>} : memref<40x64xf32, #tpu.memory_space<vmem>>, vector<2x32xf32>,
    %c8 = arith.constant 8 : index
    %c0_46 = arith.constant 0 : index
    %164 = vector.load %arg9[%c8, %c0_46] : memref<40x256xf32, #tpu.memory_space<vmem>>, vector<2x128xf32>
    %c30 = arith.constant 30 : index
    %c128_47 = arith.constant 128 : index
    %165 = vector.load %arg9[%c30, %c128_47] : memref<40x256xf32, #tpu.memory_space<vmem>>, vector<2x128xf32>
    %166 = tpu.concatenate %164, %165 in 1 : vector<2x128xf32>, vector<2x128xf32> -> vector<2x256xf32>
    %cst_48 = arith.constant dense<0.000000e+00> : vector<2x256xf32>
    %167 = tpu.matmul %159, %29, %cst_48 {dimension_numbers = #tpu.dot_dimension_numbers<[1], [0], [0], [1], [0, 0, 1, 1], [], []>} : vector<2x64xf32>, vector<64x256xf32>, vector<2x256xf32> -> vector<2x256xf32>
    %168 = arith.addf %166, %167 : vector<2x256xf32>
    %169 = math.tanh %168 : vector<2x256xf32>
    %170 = arith.negf %168 : vector<2x256xf32>
    %171 = math.exp %170 : vector<2x256xf32>
    %cst_49 = arith.constant 1.000000e+00 : f32
    %172 = vector.broadcast %cst_49 : f32 to vector<2x256xf32>
    %173 = arith.addf %172, %171 : vector<2x256xf32>
    %174 = arith.divf %172, %173 : vector<2x256xf32>
    %175 = arith.select %28, %169, %174 : vector<2x256xi1>, vector<2x256xf32>
    %176 = vector.extract_strided_slice %175 {offsets = [0, 0], sizes = [2, 32], strides = [1, 1]} : vector<2x256xf32> to vector<2x32xf32>
    %177 = vector.extract_strided_slice %175 {offsets = [0, 128], sizes = [2, 32], strides = [1, 1]} : vector<2x256xf32> to vector<2x32xf32>
    %178 = tpu.concatenate %176, %177 in 1 : vector<2x32xf32>, vector<2x32xf32> -> vector<2x64xf32>
    %179 = vector.extract_strided_slice %175 {offsets = [0, 32], sizes = [2, 32], strides = [1, 1]} : vector<2x256xf32> to vector<2x32xf32>
    %180 = vector.extract_strided_slice %175 {offsets = [0, 160], sizes = [2, 32], strides = [1, 1]} : vector<2x256xf32> to vector<2x32xf32>
    %181 = tpu.concatenate %179, %180 in 1 : vector<2x32xf32>, vector<2x32xf32> -> vector<2x64xf32>
    %182 = vector.extract_strided_slice %175 {offsets = [0, 64], sizes = [2, 32], strides = [1, 1]} : vector<2x256xf32> to vector<2x32xf32>
    %183 = vector.extract_strided_slice %175 {offsets = [0, 192], sizes = [2, 32], strides = [1, 1]} : vector<2x256xf32> to vector<2x32xf32>
    %184 = tpu.concatenate %182, %183 in 1 : vector<2x32xf32>, vector<2x32xf32> -> vector<2x64xf32>
    %185 = vector.extract_strided_slice %175 {offsets = [0, 96], sizes = [2, 32], strides = [1, 1]} : vector<2x256xf32> to vector<2x32xf32>
    %186 = vector.extract_strided_slice %175 {offsets = [0, 224], sizes = [2, 32], strides = [1, 1]} : vector<2x256xf32> to vector<2x32xf32>
    %187 = tpu.concatenate %185, %186 in 1 : vector<2x32xf32>, vector<2x32xf32> -> vector<2x64xf32>
    %188 = arith.mulf %181, %157 : vector<2x64xf32>
    %189 = arith.mulf %178, %184 : vector<2x64xf32>
    %190 = arith.addf %188, %189 : vector<2x64xf32>
    %191 = math.tanh %190 : vector<2x64xf32>
    %192 = arith.mulf %187, %191 : vector<2x64xf32>
    %193 = vector.extract_strided_slice %192 {offsets = [0, 0], sizes = [2, 32], strides = [1, 1]} : vector<2x64xf32> to vector<2x32xf32>
    %c8_50 = arith.constant 8 : index
    %c0_51 = arith.constant 0 : index
    %194 = vector.load %arg10[%c8_50, %c0_51] : memref<40x64xf32, #tpu.memory_space<vmem>>, vector<2x32xf32>
    tpu.vector_store %arg10[%c8_50, %c0_51], %193 {strides = array<i32>} : memref<40x64xf32, #tpu.memory_space<vmem>>, vector<2x32xf32>,
    %195 = vector.extract_strided_slice %192 {offsets = [0, 32], sizes = [2, 32], strides = [1, 1]} : vector<2x64xf32> to vector<2x32xf32>
    %c30_52 = arith.constant 30 : index
    %c32_53 = arith.constant 32 : index
    %196 = vector.load %arg10[%c30_52, %c32_53] : memref<40x64xf32, #tpu.memory_space<vmem>>, vector<2x32xf32>
    tpu.vector_store %arg10[%c30_52, %c32_53], %195 {strides = array<i32>} : memref<40x64xf32, #tpu.memory_space<vmem>>, vector<2x32xf32>,
    %c10 = arith.constant 10 : index
    %c0_54 = arith.constant 0 : index
    %197 = vector.load %arg9[%c10, %c0_54] : memref<40x256xf32, #tpu.memory_space<vmem>>, vector<2x128xf32>
    %c28 = arith.constant 28 : index
    %c128_55 = arith.constant 128 : index
    %198 = vector.load %arg9[%c28, %c128_55] : memref<40x256xf32, #tpu.memory_space<vmem>>, vector<2x128xf32>
    %199 = tpu.concatenate %197, %198 in 1 : vector<2x128xf32>, vector<2x128xf32> -> vector<2x256xf32>
    %cst_56 = arith.constant dense<0.000000e+00> : vector<2x256xf32>
    %200 = tpu.matmul %192, %29, %cst_56 {dimension_numbers = #tpu.dot_dimension_numbers<[1], [0], [0], [1], [0, 0, 1, 1], [], []>} : vector<2x64xf32>, vector<64x256xf32>, vector<2x256xf32> -> vector<2x256xf32>
    %201 = arith.addf %199, %200 : vector<2x256xf32>
    %202 = math.tanh %201 : vector<2x256xf32>
    %203 = arith.negf %201 : vector<2x256xf32>
    %204 = math.exp %203 : vector<2x256xf32>
    %cst_57 = arith.constant 1.000000e+00 : f32
    %205 = vector.broadcast %cst_57 : f32 to vector<2x256xf32>
    %206 = arith.addf %205, %204 : vector<2x256xf32>
    %207 = arith.divf %205, %206 : vector<2x256xf32>
    %208 = arith.select %28, %202, %207 : vector<2x256xi1>, vector<2x256xf32>
    %209 = vector.extract_strided_slice %208 {offsets = [0, 0], sizes = [2, 32], strides = [1, 1]} : vector<2x256xf32> to vector<2x32xf32>
    %210 = vector.extract_strided_slice %208 {offsets = [0, 128], sizes = [2, 32], strides = [1, 1]} : vector<2x256xf32> to vector<2x32xf32>
    %211 = tpu.concatenate %209, %210 in 1 : vector<2x32xf32>, vector<2x32xf32> -> vector<2x64xf32>
    %212 = vector.extract_strided_slice %208 {offsets = [0, 32], sizes = [2, 32], strides = [1, 1]} : vector<2x256xf32> to vector<2x32xf32>
    %213 = vector.extract_strided_slice %208 {offsets = [0, 160], sizes = [2, 32], strides = [1, 1]} : vector<2x256xf32> to vector<2x32xf32>
    %214 = tpu.concatenate %212, %213 in 1 : vector<2x32xf32>, vector<2x32xf32> -> vector<2x64xf32>
    %215 = vector.extract_strided_slice %208 {offsets = [0, 64], sizes = [2, 32], strides = [1, 1]} : vector<2x256xf32> to vector<2x32xf32>
    %216 = vector.extract_strided_slice %208 {offsets = [0, 192], sizes = [2, 32], strides = [1, 1]} : vector<2x256xf32> to vector<2x32xf32>
    %217 = tpu.concatenate %215, %216 in 1 : vector<2x32xf32>, vector<2x32xf32> -> vector<2x64xf32>
    %218 = vector.extract_strided_slice %208 {offsets = [0, 96], sizes = [2, 32], strides = [1, 1]} : vector<2x256xf32> to vector<2x32xf32>
    %219 = vector.extract_strided_slice %208 {offsets = [0, 224], sizes = [2, 32], strides = [1, 1]} : vector<2x256xf32> to vector<2x32xf32>
    %220 = tpu.concatenate %218, %219 in 1 : vector<2x32xf32>, vector<2x32xf32> -> vector<2x64xf32>
    %221 = arith.mulf %214, %190 : vector<2x64xf32>
    %222 = arith.mulf %211, %217 : vector<2x64xf32>
    %223 = arith.addf %221, %222 : vector<2x64xf32>
    %224 = math.tanh %223 : vector<2x64xf32>
    %225 = arith.mulf %220, %224 : vector<2x64xf32>
    %226 = vector.extract_strided_slice %225 {offsets = [0, 0], sizes = [2, 32], strides = [1, 1]} : vector<2x64xf32> to vector<2x32xf32>
    %c10_58 = arith.constant 10 : index
    %c0_59 = arith.constant 0 : index
    %227 = vector.load %arg10[%c10_58, %c0_59] : memref<40x64xf32, #tpu.memory_space<vmem>>, vector<2x32xf32>
    tpu.vector_store %arg10[%c10_58, %c0_59], %226 {strides = array<i32>} : memref<40x64xf32, #tpu.memory_space<vmem>>, vector<2x32xf32>,
    %228 = vector.extract_strided_slice %225 {offsets = [0, 32], sizes = [2, 32], strides = [1, 1]} : vector<2x64xf32> to vector<2x32xf32>
    %c28_60 = arith.constant 28 : index
    %c32_61 = arith.constant 32 : index
    %229 = vector.load %arg10[%c28_60, %c32_61] : memref<40x64xf32, #tpu.memory_space<vmem>>, vector<2x32xf32>
    tpu.vector_store %arg10[%c28_60, %c32_61], %228 {strides = array<i32>} : memref<40x64xf32, #tpu.memory_space<vmem>>, vector<2x32xf32>,
    %c12 = arith.constant 12 : index
    %c0_62 = arith.constant 0 : index
    %230 = vector.load %arg9[%c12, %c0_62] : memref<40x256xf32, #tpu.memory_space<vmem>>, vector<2x128xf32>
    %c26 = arith.constant 26 : index
    %c128_63 = arith.constant 128 : index
    %231 = vector.load %arg9[%c26, %c128_63] : memref<40x256xf32, #tpu.memory_space<vmem>>, vector<2x128xf32>
    %232 = tpu.concatenate %230, %231 in 1 : vector<2x128xf32>, vector<2x128xf32> -> vector<2x256xf32>
    %cst_64 = arith.constant dense<0.000000e+00> : vector<2x256xf32>
    %233 = tpu.matmul %225, %29, %cst_64 {dimension_numbers = #tpu.dot_dimension_numbers<[1], [0], [0], [1], [0, 0, 1, 1], [], []>} : vector<2x64xf32>, vector<64x256xf32>, vector<2x256xf32> -> vector<2x256xf32>
    %234 = arith.addf %232, %233 : vector<2x256xf32>
    %235 = math.tanh %234 : vector<2x256xf32>
    %236 = arith.negf %234 : vector<2x256xf32>
    %237 = math.exp %236 : vector<2x256xf32>
    %cst_65 = arith.constant 1.000000e+00 : f32
    %238 = vector.broadcast %cst_65 : f32 to vector<2x256xf32>
    %239 = arith.addf %238, %237 : vector<2x256xf32>
    %240 = arith.divf %238, %239 : vector<2x256xf32>
    %241 = arith.select %28, %235, %240 : vector<2x256xi1>, vector<2x256xf32>
    %242 = vector.extract_strided_slice %241 {offsets = [0, 0], sizes = [2, 32], strides = [1, 1]} : vector<2x256xf32> to vector<2x32xf32>
    %243 = vector.extract_strided_slice %241 {offsets = [0, 128], sizes = [2, 32], strides = [1, 1]} : vector<2x256xf32> to vector<2x32xf32>
    %244 = tpu.concatenate %242, %243 in 1 : vector<2x32xf32>, vector<2x32xf32> -> vector<2x64xf32>
    %245 = vector.extract_strided_slice %241 {offsets = [0, 32], sizes = [2, 32], strides = [1, 1]} : vector<2x256xf32> to vector<2x32xf32>
    %246 = vector.extract_strided_slice %241 {offsets = [0, 160], sizes = [2, 32], strides = [1, 1]} : vector<2x256xf32> to vector<2x32xf32>
    %247 = tpu.concatenate %245, %246 in 1 : vector<2x32xf32>, vector<2x32xf32> -> vector<2x64xf32>
    %248 = vector.extract_strided_slice %241 {offsets = [0, 64], sizes = [2, 32], strides = [1, 1]} : vector<2x256xf32> to vector<2x32xf32>
    %249 = vector.extract_strided_slice %241 {offsets = [0, 192], sizes = [2, 32], strides = [1, 1]} : vector<2x256xf32> to vector<2x32xf32>
    %250 = tpu.concatenate %248, %249 in 1 : vector<2x32xf32>, vector<2x32xf32> -> vector<2x64xf32>
    %251 = vector.extract_strided_slice %241 {offsets = [0, 96], sizes = [2, 32], strides = [1, 1]} : vector<2x256xf32> to vector<2x32xf32>
    %252 = vector.extract_strided_slice %241 {offsets = [0, 224], sizes = [2, 32], strides = [1, 1]} : vector<2x256xf32> to vector<2x32xf32>
    %253 = tpu.concatenate %251, %252 in 1 : vector<2x32xf32>, vector<2x32xf32> -> vector<2x64xf32>
    %254 = arith.mulf %247, %223 : vector<2x64xf32>
    %255 = arith.mulf %244, %250 : vector<2x64xf32>
    %256 = arith.addf %254, %255 : vector<2x64xf32>
    %257 = math.tanh %256 : vector<2x64xf32>
    %258 = arith.mulf %253, %257 : vector<2x64xf32>
    %259 = vector.extract_strided_slice %258 {offsets = [0, 0], sizes = [2, 32], strides = [1, 1]} : vector<2x64xf32> to vector<2x32xf32>
    %c12_66 = arith.constant 12 : index
    %c0_67 = arith.constant 0 : index
    %260 = vector.load %arg10[%c12_66, %c0_67] : memref<40x64xf32, #tpu.memory_space<vmem>>, vector<2x32xf32>
    tpu.vector_store %arg10[%c12_66, %c0_67], %259 {strides = array<i32>} : memref<40x64xf32, #tpu.memory_space<vmem>>, vector<2x32xf32>,
    %261 = vector.extract_strided_slice %258 {offsets = [0, 32], sizes = [2, 32], strides = [1, 1]} : vector<2x64xf32> to vector<2x32xf32>
    %c26_68 = arith.constant 26 : index
    %c32_69 = arith.constant 32 : index
    %262 = vector.load %arg10[%c26_68, %c32_69] : memref<40x64xf32, #tpu.memory_space<vmem>>, vector<2x32xf32>
    tpu.vector_store %arg10[%c26_68, %c32_69], %261 {strides = array<i32>} : memref<40x64xf32, #tpu.memory_space<vmem>>, vector<2x32xf32>,
    %c14 = arith.constant 14 : index
    %c0_70 = arith.constant 0 : index
    %263 = vector.load %arg9[%c14, %c0_70] : memref<40x256xf32, #tpu.memory_space<vmem>>, vector<2x128xf32>
    %c24 = arith.constant 24 : index
    %c128_71 = arith.constant 128 : index
    %264 = vector.load %arg9[%c24, %c128_71] : memref<40x256xf32, #tpu.memory_space<vmem>>, vector<2x128xf32>
    %265 = tpu.concatenate %263, %264 in 1 : vector<2x128xf32>, vector<2x128xf32> -> vector<2x256xf32>
    %cst_72 = arith.constant dense<0.000000e+00> : vector<2x256xf32>
    %266 = tpu.matmul %258, %29, %cst_72 {dimension_numbers = #tpu.dot_dimension_numbers<[1], [0], [0], [1], [0, 0, 1, 1], [], []>} : vector<2x64xf32>, vector<64x256xf32>, vector<2x256xf32> -> vector<2x256xf32>
    %267 = arith.addf %265, %266 : vector<2x256xf32>
    %268 = math.tanh %267 : vector<2x256xf32>
    %269 = arith.negf %267 : vector<2x256xf32>
    %270 = math.exp %269 : vector<2x256xf32>
    %cst_73 = arith.constant 1.000000e+00 : f32
    %271 = vector.broadcast %cst_73 : f32 to vector<2x256xf32>
    %272 = arith.addf %271, %270 : vector<2x256xf32>
    %273 = arith.divf %271, %272 : vector<2x256xf32>
    %274 = arith.select %28, %268, %273 : vector<2x256xi1>, vector<2x256xf32>
    %275 = vector.extract_strided_slice %274 {offsets = [0, 0], sizes = [2, 32], strides = [1, 1]} : vector<2x256xf32> to vector<2x32xf32>
    %276 = vector.extract_strided_slice %274 {offsets = [0, 128], sizes = [2, 32], strides = [1, 1]} : vector<2x256xf32> to vector<2x32xf32>
    %277 = tpu.concatenate %275, %276 in 1 : vector<2x32xf32>, vector<2x32xf32> -> vector<2x64xf32>
    %278 = vector.extract_strided_slice %274 {offsets = [0, 32], sizes = [2, 32], strides = [1, 1]} : vector<2x256xf32> to vector<2x32xf32>
    %279 = vector.extract_strided_slice %274 {offsets = [0, 160], sizes = [2, 32], strides = [1, 1]} : vector<2x256xf32> to vector<2x32xf32>
    %280 = tpu.concatenate %278, %279 in 1 : vector<2x32xf32>, vector<2x32xf32> -> vector<2x64xf32>
    %281 = vector.extract_strided_slice %274 {offsets = [0, 64], sizes = [2, 32], strides = [1, 1]} : vector<2x256xf32> to vector<2x32xf32>
    %282 = vector.extract_strided_slice %274 {offsets = [0, 192], sizes = [2, 32], strides = [1, 1]} : vector<2x256xf32> to vector<2x32xf32>
    %283 = tpu.concatenate %281, %282 in 1 : vector<2x32xf32>, vector<2x32xf32> -> vector<2x64xf32>
    %284 = vector.extract_strided_slice %274 {offsets = [0, 96], sizes = [2, 32], strides = [1, 1]} : vector<2x256xf32> to vector<2x32xf32>
    %285 = vector.extract_strided_slice %274 {offsets = [0, 224], sizes = [2, 32], strides = [1, 1]} : vector<2x256xf32> to vector<2x32xf32>
    %286 = tpu.concatenate %284, %285 in 1 : vector<2x32xf32>, vector<2x32xf32> -> vector<2x64xf32>
    %287 = arith.mulf %280, %256 : vector<2x64xf32>
    %288 = arith.mulf %277, %283 : vector<2x64xf32>
    %289 = arith.addf %287, %288 : vector<2x64xf32>
    %290 = math.tanh %289 : vector<2x64xf32>
    %291 = arith.mulf %286, %290 : vector<2x64xf32>
    %292 = vector.extract_strided_slice %291 {offsets = [0, 0], sizes = [2, 32], strides = [1, 1]} : vector<2x64xf32> to vector<2x32xf32>
    %c14_74 = arith.constant 14 : index
    %c0_75 = arith.constant 0 : index
    %293 = vector.load %arg10[%c14_74, %c0_75] : memref<40x64xf32, #tpu.memory_space<vmem>>, vector<2x32xf32>
    tpu.vector_store %arg10[%c14_74, %c0_75], %292 {strides = array<i32>} : memref<40x64xf32, #tpu.memory_space<vmem>>, vector<2x32xf32>,
    %294 = vector.extract_strided_slice %291 {offsets = [0, 32], sizes = [2, 32], strides = [1, 1]} : vector<2x64xf32> to vector<2x32xf32>
    %c24_76 = arith.constant 24 : index
    %c32_77 = arith.constant 32 : index
    %295 = vector.load %arg10[%c24_76, %c32_77] : memref<40x64xf32, #tpu.memory_space<vmem>>, vector<2x32xf32>
    tpu.vector_store %arg10[%c24_76, %c32_77], %294 {strides = array<i32>} : memref<40x64xf32, #tpu.memory_space<vmem>>, vector<2x32xf32>,
    %c16 = arith.constant 16 : index
    %c0_78 = arith.constant 0 : index
    %296 = vector.load %arg9[%c16, %c0_78] : memref<40x256xf32, #tpu.memory_space<vmem>>, vector<2x128xf32>
    %c22 = arith.constant 22 : index
    %c128_79 = arith.constant 128 : index
    %297 = vector.load %arg9[%c22, %c128_79] : memref<40x256xf32, #tpu.memory_space<vmem>>, vector<2x128xf32>
    %298 = tpu.concatenate %296, %297 in 1 : vector<2x128xf32>, vector<2x128xf32> -> vector<2x256xf32>
    %cst_80 = arith.constant dense<0.000000e+00> : vector<2x256xf32>
    %299 = tpu.matmul %291, %29, %cst_80 {dimension_numbers = #tpu.dot_dimension_numbers<[1], [0], [0], [1], [0, 0, 1, 1], [], []>} : vector<2x64xf32>, vector<64x256xf32>, vector<2x256xf32> -> vector<2x256xf32>
    %300 = arith.addf %298, %299 : vector<2x256xf32>
    %301 = math.tanh %300 : vector<2x256xf32>
    %302 = arith.negf %300 : vector<2x256xf32>
    %303 = math.exp %302 : vector<2x256xf32>
    %cst_81 = arith.constant 1.000000e+00 : f32
    %304 = vector.broadcast %cst_81 : f32 to vector<2x256xf32>
    %305 = arith.addf %304, %303 : vector<2x256xf32>
    %306 = arith.divf %304, %305 : vector<2x256xf32>
    %307 = arith.select %28, %301, %306 : vector<2x256xi1>, vector<2x256xf32>
    %308 = vector.extract_strided_slice %307 {offsets = [0, 0], sizes = [2, 32], strides = [1, 1]} : vector<2x256xf32> to vector<2x32xf32>
    %309 = vector.extract_strided_slice %307 {offsets = [0, 128], sizes = [2, 32], strides = [1, 1]} : vector<2x256xf32> to vector<2x32xf32>
    %310 = tpu.concatenate %308, %309 in 1 : vector<2x32xf32>, vector<2x32xf32> -> vector<2x64xf32>
    %311 = vector.extract_strided_slice %307 {offsets = [0, 32], sizes = [2, 32], strides = [1, 1]} : vector<2x256xf32> to vector<2x32xf32>
    %312 = vector.extract_strided_slice %307 {offsets = [0, 160], sizes = [2, 32], strides = [1, 1]} : vector<2x256xf32> to vector<2x32xf32>
    %313 = tpu.concatenate %311, %312 in 1 : vector<2x32xf32>, vector<2x32xf32> -> vector<2x64xf32>
    %314 = vector.extract_strided_slice %307 {offsets = [0, 64], sizes = [2, 32], strides = [1, 1]} : vector<2x256xf32> to vector<2x32xf32>
    %315 = vector.extract_strided_slice %307 {offsets = [0, 192], sizes = [2, 32], strides = [1, 1]} : vector<2x256xf32> to vector<2x32xf32>
    %316 = tpu.concatenate %314, %315 in 1 : vector<2x32xf32>, vector<2x32xf32> -> vector<2x64xf32>
    %317 = vector.extract_strided_slice %307 {offsets = [0, 96], sizes = [2, 32], strides = [1, 1]} : vector<2x256xf32> to vector<2x32xf32>
    %318 = vector.extract_strided_slice %307 {offsets = [0, 224], sizes = [2, 32], strides = [1, 1]} : vector<2x256xf32> to vector<2x32xf32>
    %319 = tpu.concatenate %317, %318 in 1 : vector<2x32xf32>, vector<2x32xf32> -> vector<2x64xf32>
    %320 = arith.mulf %313, %289 : vector<2x64xf32>
    %321 = arith.mulf %310, %316 : vector<2x64xf32>
    %322 = arith.addf %320, %321 : vector<2x64xf32>
    %323 = math.tanh %322 : vector<2x64xf32>
    %324 = arith.mulf %319, %323 : vector<2x64xf32>
    %325 = vector.extract_strided_slice %324 {offsets = [0, 0], sizes = [2, 32], strides = [1, 1]} : vector<2x64xf32> to vector<2x32xf32>
    %c16_82 = arith.constant 16 : index
    %c0_83 = arith.constant 0 : index
    %326 = vector.load %arg10[%c16_82, %c0_83] : memref<40x64xf32, #tpu.memory_space<vmem>>, vector<2x32xf32>
    tpu.vector_store %arg10[%c16_82, %c0_83], %325 {strides = array<i32>} : memref<40x64xf32, #tpu.memory_space<vmem>>, vector<2x32xf32>,
    %327 = vector.extract_strided_slice %324 {offsets = [0, 32], sizes = [2, 32], strides = [1, 1]} : vector<2x64xf32> to vector<2x32xf32>
    %c22_84 = arith.constant 22 : index
    %c32_85 = arith.constant 32 : index
    %328 = vector.load %arg10[%c22_84, %c32_85] : memref<40x64xf32, #tpu.memory_space<vmem>>, vector<2x32xf32>
    tpu.vector_store %arg10[%c22_84, %c32_85], %327 {strides = array<i32>} : memref<40x64xf32, #tpu.memory_space<vmem>>, vector<2x32xf32>,
    %c18 = arith.constant 18 : index
    %c0_86 = arith.constant 0 : index
    %329 = vector.load %arg9[%c18, %c0_86] : memref<40x256xf32, #tpu.memory_space<vmem>>, vector<2x128xf32>
    %c20 = arith.constant 20 : index
    %c128_87 = arith.constant 128 : index
    %330 = vector.load %arg9[%c20, %c128_87] : memref<40x256xf32, #tpu.memory_space<vmem>>, vector<2x128xf32>
    %331 = tpu.concatenate %329, %330 in 1 : vector<2x128xf32>, vector<2x128xf32> -> vector<2x256xf32>
    %cst_88 = arith.constant dense<0.000000e+00> : vector<2x256xf32>
    %332 = tpu.matmul %324, %29, %cst_88 {dimension_numbers = #tpu.dot_dimension_numbers<[1], [0], [0], [1], [0, 0, 1, 1], [], []>} : vector<2x64xf32>, vector<64x256xf32>, vector<2x256xf32> -> vector<2x256xf32>
    %333 = arith.addf %331, %332 : vector<2x256xf32>
    %334 = math.tanh %333 : vector<2x256xf32>
    %335 = arith.negf %333 : vector<2x256xf32>
    %336 = math.exp %335 : vector<2x256xf32>
    %cst_89 = arith.constant 1.000000e+00 : f32
    %337 = vector.broadcast %cst_89 : f32 to vector<2x256xf32>
    %338 = arith.addf %337, %336 : vector<2x256xf32>
    %339 = arith.divf %337, %338 : vector<2x256xf32>
    %340 = arith.select %28, %334, %339 : vector<2x256xi1>, vector<2x256xf32>
    %341 = vector.extract_strided_slice %340 {offsets = [0, 0], sizes = [2, 32], strides = [1, 1]} : vector<2x256xf32> to vector<2x32xf32>
    %342 = vector.extract_strided_slice %340 {offsets = [0, 128], sizes = [2, 32], strides = [1, 1]} : vector<2x256xf32> to vector<2x32xf32>
    %343 = tpu.concatenate %341, %342 in 1 : vector<2x32xf32>, vector<2x32xf32> -> vector<2x64xf32>
    %344 = vector.extract_strided_slice %340 {offsets = [0, 32], sizes = [2, 32], strides = [1, 1]} : vector<2x256xf32> to vector<2x32xf32>
    %345 = vector.extract_strided_slice %340 {offsets = [0, 160], sizes = [2, 32], strides = [1, 1]} : vector<2x256xf32> to vector<2x32xf32>
    %346 = tpu.concatenate %344, %345 in 1 : vector<2x32xf32>, vector<2x32xf32> -> vector<2x64xf32>
    %347 = vector.extract_strided_slice %340 {offsets = [0, 64], sizes = [2, 32], strides = [1, 1]} : vector<2x256xf32> to vector<2x32xf32>
    %348 = vector.extract_strided_slice %340 {offsets = [0, 192], sizes = [2, 32], strides = [1, 1]} : vector<2x256xf32> to vector<2x32xf32>
    %349 = tpu.concatenate %347, %348 in 1 : vector<2x32xf32>, vector<2x32xf32> -> vector<2x64xf32>
    %350 = vector.extract_strided_slice %340 {offsets = [0, 96], sizes = [2, 32], strides = [1, 1]} : vector<2x256xf32> to vector<2x32xf32>
    %351 = vector.extract_strided_slice %340 {offsets = [0, 224], sizes = [2, 32], strides = [1, 1]} : vector<2x256xf32> to vector<2x32xf32>
    %352 = tpu.concatenate %350, %351 in 1 : vector<2x32xf32>, vector<2x32xf32> -> vector<2x64xf32>
    %353 = arith.mulf %346, %322 : vector<2x64xf32>
    %354 = arith.mulf %343, %349 : vector<2x64xf32>
    %355 = arith.addf %353, %354 : vector<2x64xf32>
    %356 = math.tanh %355 : vector<2x64xf32>
    %357 = arith.mulf %352, %356 : vector<2x64xf32>
    %358 = vector.extract_strided_slice %357 {offsets = [0, 0], sizes = [2, 32], strides = [1, 1]} : vector<2x64xf32> to vector<2x32xf32>
    %c18_90 = arith.constant 18 : index
    %c0_91 = arith.constant 0 : index
    %359 = vector.load %arg10[%c18_90, %c0_91] : memref<40x64xf32, #tpu.memory_space<vmem>>, vector<2x32xf32>
    tpu.vector_store %arg10[%c18_90, %c0_91], %358 {strides = array<i32>} : memref<40x64xf32, #tpu.memory_space<vmem>>, vector<2x32xf32>,
    %360 = vector.extract_strided_slice %357 {offsets = [0, 32], sizes = [2, 32], strides = [1, 1]} : vector<2x64xf32> to vector<2x32xf32>
    %c20_92 = arith.constant 20 : index
    %c32_93 = arith.constant 32 : index
    %361 = vector.load %arg10[%c20_92, %c32_93] : memref<40x64xf32, #tpu.memory_space<vmem>>, vector<2x32xf32>
    tpu.vector_store %arg10[%c20_92, %c32_93], %360 {strides = array<i32>} : memref<40x64xf32, #tpu.memory_space<vmem>>, vector<2x32xf32>,
    %c20_94 = arith.constant 20 : index
    %c0_95 = arith.constant 0 : index
    %362 = vector.load %arg9[%c20_94, %c0_95] : memref<40x256xf32, #tpu.memory_space<vmem>>, vector<2x128xf32>
    %c18_96 = arith.constant 18 : index
    %c128_97 = arith.constant 128 : index
    %363 = vector.load %arg9[%c18_96, %c128_97] : memref<40x256xf32, #tpu.memory_space<vmem>>, vector<2x128xf32>
    %364 = tpu.concatenate %362, %363 in 1 : vector<2x128xf32>, vector<2x128xf32> -> vector<2x256xf32>
    %cst_98 = arith.constant dense<0.000000e+00> : vector<2x256xf32>
    %365 = tpu.matmul %357, %29, %cst_98 {dimension_numbers = #tpu.dot_dimension_numbers<[1], [0], [0], [1], [0, 0, 1, 1], [], []>} : vector<2x64xf32>, vector<64x256xf32>, vector<2x256xf32> -> vector<2x256xf32>
    %366 = arith.addf %364, %365 : vector<2x256xf32>
    %367 = math.tanh %366 : vector<2x256xf32>
    %368 = arith.negf %366 : vector<2x256xf32>
    %369 = math.exp %368 : vector<2x256xf32>
    %cst_99 = arith.constant 1.000000e+00 : f32
    %370 = vector.broadcast %cst_99 : f32 to vector<2x256xf32>
    %371 = arith.addf %370, %369 : vector<2x256xf32>
    %372 = arith.divf %370, %371 : vector<2x256xf32>
    %373 = arith.select %28, %367, %372 : vector<2x256xi1>, vector<2x256xf32>
    %374 = vector.extract_strided_slice %373 {offsets = [0, 0], sizes = [2, 32], strides = [1, 1]} : vector<2x256xf32> to vector<2x32xf32>
    %375 = vector.extract_strided_slice %373 {offsets = [0, 128], sizes = [2, 32], strides = [1, 1]} : vector<2x256xf32> to vector<2x32xf32>
    %376 = tpu.concatenate %374, %375 in 1 : vector<2x32xf32>, vector<2x32xf32> -> vector<2x64xf32>
    %377 = vector.extract_strided_slice %373 {offsets = [0, 32], sizes = [2, 32], strides = [1, 1]} : vector<2x256xf32> to vector<2x32xf32>
    %378 = vector.extract_strided_slice %373 {offsets = [0, 160], sizes = [2, 32], strides = [1, 1]} : vector<2x256xf32> to vector<2x32xf32>
    %379 = tpu.concatenate %377, %378 in 1 : vector<2x32xf32>, vector<2x32xf32> -> vector<2x64xf32>
    %380 = vector.extract_strided_slice %373 {offsets = [0, 64], sizes = [2, 32], strides = [1, 1]} : vector<2x256xf32> to vector<2x32xf32>
    %381 = vector.extract_strided_slice %373 {offsets = [0, 192], sizes = [2, 32], strides = [1, 1]} : vector<2x256xf32> to vector<2x32xf32>
    %382 = tpu.concatenate %380, %381 in 1 : vector<2x32xf32>, vector<2x32xf32> -> vector<2x64xf32>
    %383 = vector.extract_strided_slice %373 {offsets = [0, 96], sizes = [2, 32], strides = [1, 1]} : vector<2x256xf32> to vector<2x32xf32>
    %384 = vector.extract_strided_slice %373 {offsets = [0, 224], sizes = [2, 32], strides = [1, 1]} : vector<2x256xf32> to vector<2x32xf32>
    %385 = tpu.concatenate %383, %384 in 1 : vector<2x32xf32>, vector<2x32xf32> -> vector<2x64xf32>
    %386 = arith.mulf %379, %355 : vector<2x64xf32>
    %387 = arith.mulf %376, %382 : vector<2x64xf32>
    %388 = arith.addf %386, %387 : vector<2x64xf32>
    %389 = math.tanh %388 : vector<2x64xf32>
    %390 = arith.mulf %385, %389 : vector<2x64xf32>
    %391 = vector.extract_strided_slice %390 {offsets = [0, 0], sizes = [2, 32], strides = [1, 1]} : vector<2x64xf32> to vector<2x32xf32>
    %c20_100 = arith.constant 20 : index
    %c0_101 = arith.constant 0 : index
    %392 = vector.load %arg10[%c20_100, %c0_101] : memref<40x64xf32, #tpu.memory_space<vmem>>, vector<2x32xf32>
    tpu.vector_store %arg10[%c20_100, %c0_101], %391 {strides = array<i32>} : memref<40x64xf32, #tpu.memory_space<vmem>>, vector<2x32xf32>,
    %393 = vector.extract_strided_slice %390 {offsets = [0, 32], sizes = [2, 32], strides = [1, 1]} : vector<2x64xf32> to vector<2x32xf32>
    %c18_102 = arith.constant 18 : index
    %c32_103 = arith.constant 32 : index
    %394 = vector.load %arg10[%c18_102, %c32_103] : memref<40x64xf32, #tpu.memory_space<vmem>>, vector<2x32xf32>
    tpu.vector_store %arg10[%c18_102, %c32_103], %393 {strides = array<i32>} : memref<40x64xf32, #tpu.memory_space<vmem>>, vector<2x32xf32>,
    %c22_104 = arith.constant 22 : index
    %c0_105 = arith.constant 0 : index
    %395 = vector.load %arg9[%c22_104, %c0_105] : memref<40x256xf32, #tpu.memory_space<vmem>>, vector<2x128xf32>
    %c16_106 = arith.constant 16 : index
    %c128_107 = arith.constant 128 : index
    %396 = vector.load %arg9[%c16_106, %c128_107] : memref<40x256xf32, #tpu.memory_space<vmem>>, vector<2x128xf32>
    %397 = tpu.concatenate %395, %396 in 1 : vector<2x128xf32>, vector<2x128xf32> -> vector<2x256xf32>
    %cst_108 = arith.constant dense<0.000000e+00> : vector<2x256xf32>
    %398 = tpu.matmul %390, %29, %cst_108 {dimension_numbers = #tpu.dot_dimension_numbers<[1], [0], [0], [1], [0, 0, 1, 1], [], []>} : vector<2x64xf32>, vector<64x256xf32>, vector<2x256xf32> -> vector<2x256xf32>
    %399 = arith.addf %397, %398 : vector<2x256xf32>
    %400 = math.tanh %399 : vector<2x256xf32>
    %401 = arith.negf %399 : vector<2x256xf32>
    %402 = math.exp %401 : vector<2x256xf32>
    %cst_109 = arith.constant 1.000000e+00 : f32
    %403 = vector.broadcast %cst_109 : f32 to vector<2x256xf32>
    %404 = arith.addf %403, %402 : vector<2x256xf32>
    %405 = arith.divf %403, %404 : vector<2x256xf32>
    %406 = arith.select %28, %400, %405 : vector<2x256xi1>, vector<2x256xf32>
    %407 = vector.extract_strided_slice %406 {offsets = [0, 0], sizes = [2, 32], strides = [1, 1]} : vector<2x256xf32> to vector<2x32xf32>
    %408 = vector.extract_strided_slice %406 {offsets = [0, 128], sizes = [2, 32], strides = [1, 1]} : vector<2x256xf32> to vector<2x32xf32>
    %409 = tpu.concatenate %407, %408 in 1 : vector<2x32xf32>, vector<2x32xf32> -> vector<2x64xf32>
    %410 = vector.extract_strided_slice %406 {offsets = [0, 32], sizes = [2, 32], strides = [1, 1]} : vector<2x256xf32> to vector<2x32xf32>
    %411 = vector.extract_strided_slice %406 {offsets = [0, 160], sizes = [2, 32], strides = [1, 1]} : vector<2x256xf32> to vector<2x32xf32>
    %412 = tpu.concatenate %410, %411 in 1 : vector<2x32xf32>, vector<2x32xf32> -> vector<2x64xf32>
    %413 = vector.extract_strided_slice %406 {offsets = [0, 64], sizes = [2, 32], strides = [1, 1]} : vector<2x256xf32> to vector<2x32xf32>
    %414 = vector.extract_strided_slice %406 {offsets = [0, 192], sizes = [2, 32], strides = [1, 1]} : vector<2x256xf32> to vector<2x32xf32>
    %415 = tpu.concatenate %413, %414 in 1 : vector<2x32xf32>, vector<2x32xf32> -> vector<2x64xf32>
    %416 = vector.extract_strided_slice %406 {offsets = [0, 96], sizes = [2, 32], strides = [1, 1]} : vector<2x256xf32> to vector<2x32xf32>
    %417 = vector.extract_strided_slice %406 {offsets = [0, 224], sizes = [2, 32], strides = [1, 1]} : vector<2x256xf32> to vector<2x32xf32>
    %418 = tpu.concatenate %416, %417 in 1 : vector<2x32xf32>, vector<2x32xf32> -> vector<2x64xf32>
    %419 = arith.mulf %412, %388 : vector<2x64xf32>
    %420 = arith.mulf %409, %415 : vector<2x64xf32>
    %421 = arith.addf %419, %420 : vector<2x64xf32>
    %422 = math.tanh %421 : vector<2x64xf32>
    %423 = arith.mulf %418, %422 : vector<2x64xf32>
    %424 = vector.extract_strided_slice %423 {offsets = [0, 0], sizes = [2, 32], strides = [1, 1]} : vector<2x64xf32> to vector<2x32xf32>
    %c22_110 = arith.constant 22 : index
    %c0_111 = arith.constant 0 : index
    %425 = vector.load %arg10[%c22_110, %c0_111] : memref<40x64xf32, #tpu.memory_space<vmem>>, vector<2x32xf32>
    tpu.vector_store %arg10[%c22_110, %c0_111], %424 {strides = array<i32>} : memref<40x64xf32, #tpu.memory_space<vmem>>, vector<2x32xf32>,
    %426 = vector.extract_strided_slice %423 {offsets = [0, 32], sizes = [2, 32], strides = [1, 1]} : vector<2x64xf32> to vector<2x32xf32>
    %c16_112 = arith.constant 16 : index
    %c32_113 = arith.constant 32 : index
    %427 = vector.load %arg10[%c16_112, %c32_113] : memref<40x64xf32, #tpu.memory_space<vmem>>, vector<2x32xf32>
    tpu.vector_store %arg10[%c16_112, %c32_113], %426 {strides = array<i32>} : memref<40x64xf32, #tpu.memory_space<vmem>>, vector<2x32xf32>,
    %c24_114 = arith.constant 24 : index
    %c0_115 = arith.constant 0 : index
    %428 = vector.load %arg9[%c24_114, %c0_115] : memref<40x256xf32, #tpu.memory_space<vmem>>, vector<2x128xf32>
    %c14_116 = arith.constant 14 : index
    %c128_117 = arith.constant 128 : index
    %429 = vector.load %arg9[%c14_116, %c128_117] : memref<40x256xf32, #tpu.memory_space<vmem>>, vector<2x128xf32>
    %430 = tpu.concatenate %428, %429 in 1 : vector<2x128xf32>, vector<2x128xf32> -> vector<2x256xf32>
    %cst_118 = arith.constant dense<0.000000e+00> : vector<2x256xf32>
    %431 = tpu.matmul %423, %29, %cst_118 {dimension_numbers = #tpu.dot_dimension_numbers<[1], [0], [0], [1], [0, 0, 1, 1], [], []>} : vector<2x64xf32>, vector<64x256xf32>, vector<2x256xf32> -> vector<2x256xf32>
    %432 = arith.addf %430, %431 : vector<2x256xf32>
    %433 = math.tanh %432 : vector<2x256xf32>
    %434 = arith.negf %432 : vector<2x256xf32>
    %435 = math.exp %434 : vector<2x256xf32>
    %cst_119 = arith.constant 1.000000e+00 : f32
    %436 = vector.broadcast %cst_119 : f32 to vector<2x256xf32>
    %437 = arith.addf %436, %435 : vector<2x256xf32>
    %438 = arith.divf %436, %437 : vector<2x256xf32>
    %439 = arith.select %28, %433, %438 : vector<2x256xi1>, vector<2x256xf32>
    %440 = vector.extract_strided_slice %439 {offsets = [0, 0], sizes = [2, 32], strides = [1, 1]} : vector<2x256xf32> to vector<2x32xf32>
    %441 = vector.extract_strided_slice %439 {offsets = [0, 128], sizes = [2, 32], strides = [1, 1]} : vector<2x256xf32> to vector<2x32xf32>
    %442 = tpu.concatenate %440, %441 in 1 : vector<2x32xf32>, vector<2x32xf32> -> vector<2x64xf32>
    %443 = vector.extract_strided_slice %439 {offsets = [0, 32], sizes = [2, 32], strides = [1, 1]} : vector<2x256xf32> to vector<2x32xf32>
    %444 = vector.extract_strided_slice %439 {offsets = [0, 160], sizes = [2, 32], strides = [1, 1]} : vector<2x256xf32> to vector<2x32xf32>
    %445 = tpu.concatenate %443, %444 in 1 : vector<2x32xf32>, vector<2x32xf32> -> vector<2x64xf32>
    %446 = vector.extract_strided_slice %439 {offsets = [0, 64], sizes = [2, 32], strides = [1, 1]} : vector<2x256xf32> to vector<2x32xf32>
    %447 = vector.extract_strided_slice %439 {offsets = [0, 192], sizes = [2, 32], strides = [1, 1]} : vector<2x256xf32> to vector<2x32xf32>
    %448 = tpu.concatenate %446, %447 in 1 : vector<2x32xf32>, vector<2x32xf32> -> vector<2x64xf32>
    %449 = vector.extract_strided_slice %439 {offsets = [0, 96], sizes = [2, 32], strides = [1, 1]} : vector<2x256xf32> to vector<2x32xf32>
    %450 = vector.extract_strided_slice %439 {offsets = [0, 224], sizes = [2, 32], strides = [1, 1]} : vector<2x256xf32> to vector<2x32xf32>
    %451 = tpu.concatenate %449, %450 in 1 : vector<2x32xf32>, vector<2x32xf32> -> vector<2x64xf32>
    %452 = arith.mulf %445, %421 : vector<2x64xf32>
    %453 = arith.mulf %442, %448 : vector<2x64xf32>
    %454 = arith.addf %452, %453 : vector<2x64xf32>
    %455 = math.tanh %454 : vector<2x64xf32>
    %456 = arith.mulf %451, %455 : vector<2x64xf32>
    %457 = vector.extract_strided_slice %456 {offsets = [0, 0], sizes = [2, 32], strides = [1, 1]} : vector<2x64xf32> to vector<2x32xf32>
    %c24_120 = arith.constant 24 : index
    %c0_121 = arith.constant 0 : index
    %458 = vector.load %arg10[%c24_120, %c0_121] : memref<40x64xf32, #tpu.memory_space<vmem>>, vector<2x32xf32>
    tpu.vector_store %arg10[%c24_120, %c0_121], %457 {strides = array<i32>} : memref<40x64xf32, #tpu.memory_space<vmem>>, vector<2x32xf32>,
    %459 = vector.extract_strided_slice %456 {offsets = [0, 32], sizes = [2, 32], strides = [1, 1]} : vector<2x64xf32> to vector<2x32xf32>
    %c14_122 = arith.constant 14 : index
    %c32_123 = arith.constant 32 : index
    %460 = vector.load %arg10[%c14_122, %c32_123] : memref<40x64xf32, #tpu.memory_space<vmem>>, vector<2x32xf32>
    tpu.vector_store %arg10[%c14_122, %c32_123], %459 {strides = array<i32>} : memref<40x64xf32, #tpu.memory_space<vmem>>, vector<2x32xf32>,
    %c26_124 = arith.constant 26 : index
    %c0_125 = arith.constant 0 : index
    %461 = vector.load %arg9[%c26_124, %c0_125] : memref<40x256xf32, #tpu.memory_space<vmem>>, vector<2x128xf32>
    %c12_126 = arith.constant 12 : index
    %c128_127 = arith.constant 128 : index
    %462 = vector.load %arg9[%c12_126, %c128_127] : memref<40x256xf32, #tpu.memory_space<vmem>>, vector<2x128xf32>
    %463 = tpu.concatenate %461, %462 in 1 : vector<2x128xf32>, vector<2x128xf32> -> vector<2x256xf32>
    %cst_128 = arith.constant dense<0.000000e+00> : vector<2x256xf32>
    %464 = tpu.matmul %456, %29, %cst_128 {dimension_numbers = #tpu.dot_dimension_numbers<[1], [0], [0], [1], [0, 0, 1, 1], [], []>} : vector<2x64xf32>, vector<64x256xf32>, vector<2x256xf32> -> vector<2x256xf32>
    %465 = arith.addf %463, %464 : vector<2x256xf32>
    %466 = math.tanh %465 : vector<2x256xf32>
    %467 = arith.negf %465 : vector<2x256xf32>
    %468 = math.exp %467 : vector<2x256xf32>
    %cst_129 = arith.constant 1.000000e+00 : f32
    %469 = vector.broadcast %cst_129 : f32 to vector<2x256xf32>
    %470 = arith.addf %469, %468 : vector<2x256xf32>
    %471 = arith.divf %469, %470 : vector<2x256xf32>
    %472 = arith.select %28, %466, %471 : vector<2x256xi1>, vector<2x256xf32>
    %473 = vector.extract_strided_slice %472 {offsets = [0, 0], sizes = [2, 32], strides = [1, 1]} : vector<2x256xf32> to vector<2x32xf32>
    %474 = vector.extract_strided_slice %472 {offsets = [0, 128], sizes = [2, 32], strides = [1, 1]} : vector<2x256xf32> to vector<2x32xf32>
    %475 = tpu.concatenate %473, %474 in 1 : vector<2x32xf32>, vector<2x32xf32> -> vector<2x64xf32>
    %476 = vector.extract_strided_slice %472 {offsets = [0, 32], sizes = [2, 32], strides = [1, 1]} : vector<2x256xf32> to vector<2x32xf32>
    %477 = vector.extract_strided_slice %472 {offsets = [0, 160], sizes = [2, 32], strides = [1, 1]} : vector<2x256xf32> to vector<2x32xf32>
    %478 = tpu.concatenate %476, %477 in 1 : vector<2x32xf32>, vector<2x32xf32> -> vector<2x64xf32>
    %479 = vector.extract_strided_slice %472 {offsets = [0, 64], sizes = [2, 32], strides = [1, 1]} : vector<2x256xf32> to vector<2x32xf32>
    %480 = vector.extract_strided_slice %472 {offsets = [0, 192], sizes = [2, 32], strides = [1, 1]} : vector<2x256xf32> to vector<2x32xf32>
    %481 = tpu.concatenate %479, %480 in 1 : vector<2x32xf32>, vector<2x32xf32> -> vector<2x64xf32>
    %482 = vector.extract_strided_slice %472 {offsets = [0, 96], sizes = [2, 32], strides = [1, 1]} : vector<2x256xf32> to vector<2x32xf32>
    %483 = vector.extract_strided_slice %472 {offsets = [0, 224], sizes = [2, 32], strides = [1, 1]} : vector<2x256xf32> to vector<2x32xf32>
    %484 = tpu.concatenate %482, %483 in 1 : vector<2x32xf32>, vector<2x32xf32> -> vector<2x64xf32>
    %485 = arith.mulf %478, %454 : vector<2x64xf32>
    %486 = arith.mulf %475, %481 : vector<2x64xf32>
    %487 = arith.addf %485, %486 : vector<2x64xf32>
    %488 = math.tanh %487 : vector<2x64xf32>
    %489 = arith.mulf %484, %488 : vector<2x64xf32>
    %490 = vector.extract_strided_slice %489 {offsets = [0, 0], sizes = [2, 32], strides = [1, 1]} : vector<2x64xf32> to vector<2x32xf32>
    %c26_130 = arith.constant 26 : index
    %c0_131 = arith.constant 0 : index
    %491 = vector.load %arg10[%c26_130, %c0_131] : memref<40x64xf32, #tpu.memory_space<vmem>>, vector<2x32xf32>
    tpu.vector_store %arg10[%c26_130, %c0_131], %490 {strides = array<i32>} : memref<40x64xf32, #tpu.memory_space<vmem>>, vector<2x32xf32>,
    %492 = vector.extract_strided_slice %489 {offsets = [0, 32], sizes = [2, 32], strides = [1, 1]} : vector<2x64xf32> to vector<2x32xf32>
    %c12_132 = arith.constant 12 : index
    %c32_133 = arith.constant 32 : index
    %493 = vector.load %arg10[%c12_132, %c32_133] : memref<40x64xf32, #tpu.memory_space<vmem>>, vector<2x32xf32>
    tpu.vector_store %arg10[%c12_132, %c32_133], %492 {strides = array<i32>} : memref<40x64xf32, #tpu.memory_space<vmem>>, vector<2x32xf32>,
    %c28_134 = arith.constant 28 : index
    %c0_135 = arith.constant 0 : index
    %494 = vector.load %arg9[%c28_134, %c0_135] : memref<40x256xf32, #tpu.memory_space<vmem>>, vector<2x128xf32>
    %c10_136 = arith.constant 10 : index
    %c128_137 = arith.constant 128 : index
    %495 = vector.load %arg9[%c10_136, %c128_137] : memref<40x256xf32, #tpu.memory_space<vmem>>, vector<2x128xf32>
    %496 = tpu.concatenate %494, %495 in 1 : vector<2x128xf32>, vector<2x128xf32> -> vector<2x256xf32>
    %cst_138 = arith.constant dense<0.000000e+00> : vector<2x256xf32>
    %497 = tpu.matmul %489, %29, %cst_138 {dimension_numbers = #tpu.dot_dimension_numbers<[1], [0], [0], [1], [0, 0, 1, 1], [], []>} : vector<2x64xf32>, vector<64x256xf32>, vector<2x256xf32> -> vector<2x256xf32>
    %498 = arith.addf %496, %497 : vector<2x256xf32>
    %499 = math.tanh %498 : vector<2x256xf32>
    %500 = arith.negf %498 : vector<2x256xf32>
    %501 = math.exp %500 : vector<2x256xf32>
    %cst_139 = arith.constant 1.000000e+00 : f32
    %502 = vector.broadcast %cst_139 : f32 to vector<2x256xf32>
    %503 = arith.addf %502, %501 : vector<2x256xf32>
    %504 = arith.divf %502, %503 : vector<2x256xf32>
    %505 = arith.select %28, %499, %504 : vector<2x256xi1>, vector<2x256xf32>
    %506 = vector.extract_strided_slice %505 {offsets = [0, 0], sizes = [2, 32], strides = [1, 1]} : vector<2x256xf32> to vector<2x32xf32>
    %507 = vector.extract_strided_slice %505 {offsets = [0, 128], sizes = [2, 32], strides = [1, 1]} : vector<2x256xf32> to vector<2x32xf32>
    %508 = tpu.concatenate %506, %507 in 1 : vector<2x32xf32>, vector<2x32xf32> -> vector<2x64xf32>
    %509 = vector.extract_strided_slice %505 {offsets = [0, 32], sizes = [2, 32], strides = [1, 1]} : vector<2x256xf32> to vector<2x32xf32>
    %510 = vector.extract_strided_slice %505 {offsets = [0, 160], sizes = [2, 32], strides = [1, 1]} : vector<2x256xf32> to vector<2x32xf32>
    %511 = tpu.concatenate %509, %510 in 1 : vector<2x32xf32>, vector<2x32xf32> -> vector<2x64xf32>
    %512 = vector.extract_strided_slice %505 {offsets = [0, 64], sizes = [2, 32], strides = [1, 1]} : vector<2x256xf32> to vector<2x32xf32>
    %513 = vector.extract_strided_slice %505 {offsets = [0, 192], sizes = [2, 32], strides = [1, 1]} : vector<2x256xf32> to vector<2x32xf32>
    %514 = tpu.concatenate %512, %513 in 1 : vector<2x32xf32>, vector<2x32xf32> -> vector<2x64xf32>
    %515 = vector.extract_strided_slice %505 {offsets = [0, 96], sizes = [2, 32], strides = [1, 1]} : vector<2x256xf32> to vector<2x32xf32>
    %516 = vector.extract_strided_slice %505 {offsets = [0, 224], sizes = [2, 32], strides = [1, 1]} : vector<2x256xf32> to vector<2x32xf32>
    %517 = tpu.concatenate %515, %516 in 1 : vector<2x32xf32>, vector<2x32xf32> -> vector<2x64xf32>
    %518 = arith.mulf %511, %487 : vector<2x64xf32>
    %519 = arith.mulf %508, %514 : vector<2x64xf32>
    %520 = arith.addf %518, %519 : vector<2x64xf32>
    %521 = math.tanh %520 : vector<2x64xf32>
    %522 = arith.mulf %517, %521 : vector<2x64xf32>
    %523 = vector.extract_strided_slice %522 {offsets = [0, 0], sizes = [2, 32], strides = [1, 1]} : vector<2x64xf32> to vector<2x32xf32>
    %c28_140 = arith.constant 28 : index
    %c0_141 = arith.constant 0 : index
    %524 = vector.load %arg10[%c28_140, %c0_141] : memref<40x64xf32, #tpu.memory_space<vmem>>, vector<2x32xf32>
    tpu.vector_store %arg10[%c28_140, %c0_141], %523 {strides = array<i32>} : memref<40x64xf32, #tpu.memory_space<vmem>>, vector<2x32xf32>,
    %525 = vector.extract_strided_slice %522 {offsets = [0, 32], sizes = [2, 32], strides = [1, 1]} : vector<2x64xf32> to vector<2x32xf32>
    %c10_142 = arith.constant 10 : index
    %c32_143 = arith.constant 32 : index
    %526 = vector.load %arg10[%c10_142, %c32_143] : memref<40x64xf32, #tpu.memory_space<vmem>>, vector<2x32xf32>
    tpu.vector_store %arg10[%c10_142, %c32_143], %525 {strides = array<i32>} : memref<40x64xf32, #tpu.memory_space<vmem>>, vector<2x32xf32>,
    %c30_144 = arith.constant 30 : index
    %c0_145 = arith.constant 0 : index
    %527 = vector.load %arg9[%c30_144, %c0_145] : memref<40x256xf32, #tpu.memory_space<vmem>>, vector<2x128xf32>
    %c8_146 = arith.constant 8 : index
    %c128_147 = arith.constant 128 : index
    %528 = vector.load %arg9[%c8_146, %c128_147] : memref<40x256xf32, #tpu.memory_space<vmem>>, vector<2x128xf32>
    %529 = tpu.concatenate %527, %528 in 1 : vector<2x128xf32>, vector<2x128xf32> -> vector<2x256xf32>
    %cst_148 = arith.constant dense<0.000000e+00> : vector<2x256xf32>
    %530 = tpu.matmul %522, %29, %cst_148 {dimension_numbers = #tpu.dot_dimension_numbers<[1], [0], [0], [1], [0, 0, 1, 1], [], []>} : vector<2x64xf32>, vector<64x256xf32>, vector<2x256xf32> -> vector<2x256xf32>
    %531 = arith.addf %529, %530 : vector<2x256xf32>
    %532 = math.tanh %531 : vector<2x256xf32>
    %533 = arith.negf %531 : vector<2x256xf32>
    %534 = math.exp %533 : vector<2x256xf32>
    %cst_149 = arith.constant 1.000000e+00 : f32
    %535 = vector.broadcast %cst_149 : f32 to vector<2x256xf32>
    %536 = arith.addf %535, %534 : vector<2x256xf32>
    %537 = arith.divf %535, %536 : vector<2x256xf32>
    %538 = arith.select %28, %532, %537 : vector<2x256xi1>, vector<2x256xf32>
    %539 = vector.extract_strided_slice %538 {offsets = [0, 0], sizes = [2, 32], strides = [1, 1]} : vector<2x256xf32> to vector<2x32xf32>
    %540 = vector.extract_strided_slice %538 {offsets = [0, 128], sizes = [2, 32], strides = [1, 1]} : vector<2x256xf32> to vector<2x32xf32>
    %541 = tpu.concatenate %539, %540 in 1 : vector<2x32xf32>, vector<2x32xf32> -> vector<2x64xf32>
    %542 = vector.extract_strided_slice %538 {offsets = [0, 32], sizes = [2, 32], strides = [1, 1]} : vector<2x256xf32> to vector<2x32xf32>
    %543 = vector.extract_strided_slice %538 {offsets = [0, 160], sizes = [2, 32], strides = [1, 1]} : vector<2x256xf32> to vector<2x32xf32>
    %544 = tpu.concatenate %542, %543 in 1 : vector<2x32xf32>, vector<2x32xf32> -> vector<2x64xf32>
    %545 = vector.extract_strided_slice %538 {offsets = [0, 64], sizes = [2, 32], strides = [1, 1]} : vector<2x256xf32> to vector<2x32xf32>
    %546 = vector.extract_strided_slice %538 {offsets = [0, 192], sizes = [2, 32], strides = [1, 1]} : vector<2x256xf32> to vector<2x32xf32>
    %547 = tpu.concatenate %545, %546 in 1 : vector<2x32xf32>, vector<2x32xf32> -> vector<2x64xf32>
    %548 = vector.extract_strided_slice %538 {offsets = [0, 96], sizes = [2, 32], strides = [1, 1]} : vector<2x256xf32> to vector<2x32xf32>
    %549 = vector.extract_strided_slice %538 {offsets = [0, 224], sizes = [2, 32], strides = [1, 1]} : vector<2x256xf32> to vector<2x32xf32>
    %550 = tpu.concatenate %548, %549 in 1 : vector<2x32xf32>, vector<2x32xf32> -> vector<2x64xf32>
    %551 = arith.mulf %544, %520 : vector<2x64xf32>
    %552 = arith.mulf %541, %547 : vector<2x64xf32>
    %553 = arith.addf %551, %552 : vector<2x64xf32>
    %554 = math.tanh %553 : vector<2x64xf32>
    %555 = arith.mulf %550, %554 : vector<2x64xf32>
    %556 = vector.extract_strided_slice %555 {offsets = [0, 0], sizes = [2, 32], strides = [1, 1]} : vector<2x64xf32> to vector<2x32xf32>
    %c30_150 = arith.constant 30 : index
    %c0_151 = arith.constant 0 : index
    %557 = vector.load %arg10[%c30_150, %c0_151] : memref<40x64xf32, #tpu.memory_space<vmem>>, vector<2x32xf32>
    tpu.vector_store %arg10[%c30_150, %c0_151], %556 {strides = array<i32>} : memref<40x64xf32, #tpu.memory_space<vmem>>, vector<2x32xf32>,
    %558 = vector.extract_strided_slice %555 {offsets = [0, 32], sizes = [2, 32], strides = [1, 1]} : vector<2x64xf32> to vector<2x32xf32>
    %c8_152 = arith.constant 8 : index
    %c32_153 = arith.constant 32 : index
    %559 = vector.load %arg10[%c8_152, %c32_153] : memref<40x64xf32, #tpu.memory_space<vmem>>, vector<2x32xf32>
    tpu.vector_store %arg10[%c8_152, %c32_153], %558 {strides = array<i32>} : memref<40x64xf32, #tpu.memory_space<vmem>>, vector<2x32xf32>,
    %c32_154 = arith.constant 32 : index
    %c0_155 = arith.constant 0 : index
    %560 = vector.load %arg9[%c32_154, %c0_155] : memref<40x256xf32, #tpu.memory_space<vmem>>, vector<2x128xf32>
    %c6_156 = arith.constant 6 : index
    %c128_157 = arith.constant 128 : index
    %561 = vector.load %arg9[%c6_156, %c128_157] : memref<40x256xf32, #tpu.memory_space<vmem>>, vector<2x128xf32>
    %562 = tpu.concatenate %560, %561 in 1 : vector<2x128xf32>, vector<2x128xf32> -> vector<2x256xf32>
    %cst_158 = arith.constant dense<0.000000e+00> : vector<2x256xf32>
    %563 = tpu.matmul %555, %29, %cst_158 {dimension_numbers = #tpu.dot_dimension_numbers<[1], [0], [0], [1], [0, 0, 1, 1], [], []>} : vector<2x64xf32>, vector<64x256xf32>, vector<2x256xf32> -> vector<2x256xf32>
    %564 = arith.addf %562, %563 : vector<2x256xf32>
    %565 = math.tanh %564 : vector<2x256xf32>
    %566 = arith.negf %564 : vector<2x256xf32>
    %567 = math.exp %566 : vector<2x256xf32>
    %cst_159 = arith.constant 1.000000e+00 : f32
    %568 = vector.broadcast %cst_159 : f32 to vector<2x256xf32>
    %569 = arith.addf %568, %567 : vector<2x256xf32>
    %570 = arith.divf %568, %569 : vector<2x256xf32>
    %571 = arith.select %28, %565, %570 : vector<2x256xi1>, vector<2x256xf32>
    %572 = vector.extract_strided_slice %571 {offsets = [0, 0], sizes = [2, 32], strides = [1, 1]} : vector<2x256xf32> to vector<2x32xf32>
    %573 = vector.extract_strided_slice %571 {offsets = [0, 128], sizes = [2, 32], strides = [1, 1]} : vector<2x256xf32> to vector<2x32xf32>
    %574 = tpu.concatenate %572, %573 in 1 : vector<2x32xf32>, vector<2x32xf32> -> vector<2x64xf32>
    %575 = vector.extract_strided_slice %571 {offsets = [0, 32], sizes = [2, 32], strides = [1, 1]} : vector<2x256xf32> to vector<2x32xf32>
    %576 = vector.extract_strided_slice %571 {offsets = [0, 160], sizes = [2, 32], strides = [1, 1]} : vector<2x256xf32> to vector<2x32xf32>
    %577 = tpu.concatenate %575, %576 in 1 : vector<2x32xf32>, vector<2x32xf32> -> vector<2x64xf32>
    %578 = vector.extract_strided_slice %571 {offsets = [0, 64], sizes = [2, 32], strides = [1, 1]} : vector<2x256xf32> to vector<2x32xf32>
    %579 = vector.extract_strided_slice %571 {offsets = [0, 192], sizes = [2, 32], strides = [1, 1]} : vector<2x256xf32> to vector<2x32xf32>
    %580 = tpu.concatenate %578, %579 in 1 : vector<2x32xf32>, vector<2x32xf32> -> vector<2x64xf32>
    %581 = vector.extract_strided_slice %571 {offsets = [0, 96], sizes = [2, 32], strides = [1, 1]} : vector<2x256xf32> to vector<2x32xf32>
    %582 = vector.extract_strided_slice %571 {offsets = [0, 224], sizes = [2, 32], strides = [1, 1]} : vector<2x256xf32> to vector<2x32xf32>
    %583 = tpu.concatenate %581, %582 in 1 : vector<2x32xf32>, vector<2x32xf32> -> vector<2x64xf32>
    %584 = arith.mulf %577, %553 : vector<2x64xf32>
    %585 = arith.mulf %574, %580 : vector<2x64xf32>
    %586 = arith.addf %584, %585 : vector<2x64xf32>
    %587 = math.tanh %586 : vector<2x64xf32>
    %588 = arith.mulf %583, %587 : vector<2x64xf32>
    %589 = vector.extract_strided_slice %588 {offsets = [0, 0], sizes = [2, 32], strides = [1, 1]} : vector<2x64xf32> to vector<2x32xf32>
    %c32_160 = arith.constant 32 : index
    %c0_161 = arith.constant 0 : index
    %590 = vector.load %arg10[%c32_160, %c0_161] : memref<40x64xf32, #tpu.memory_space<vmem>>, vector<2x32xf32>
    tpu.vector_store %arg10[%c32_160, %c0_161], %589 {strides = array<i32>} : memref<40x64xf32, #tpu.memory_space<vmem>>, vector<2x32xf32>,
    %591 = vector.extract_strided_slice %588 {offsets = [0, 32], sizes = [2, 32], strides = [1, 1]} : vector<2x64xf32> to vector<2x32xf32>
    %c6_162 = arith.constant 6 : index
    %c32_163 = arith.constant 32 : index
    %592 = vector.load %arg10[%c6_162, %c32_163] : memref<40x64xf32, #tpu.memory_space<vmem>>, vector<2x32xf32>
    tpu.vector_store %arg10[%c6_162, %c32_163], %591 {strides = array<i32>} : memref<40x64xf32, #tpu.memory_space<vmem>>, vector<2x32xf32>,
    %c34_164 = arith.constant 34 : index
    %c0_165 = arith.constant 0 : index
    %593 = vector.load %arg9[%c34_164, %c0_165] : memref<40x256xf32, #tpu.memory_space<vmem>>, vector<2x128xf32>
    %c4_166 = arith.constant 4 : index
    %c128_167 = arith.constant 128 : index
    %594 = vector.load %arg9[%c4_166, %c128_167] : memref<40x256xf32, #tpu.memory_space<vmem>>, vector<2x128xf32>
    %595 = tpu.concatenate %593, %594 in 1 : vector<2x128xf32>, vector<2x128xf32> -> vector<2x256xf32>
    %cst_168 = arith.constant dense<0.000000e+00> : vector<2x256xf32>
    %596 = tpu.matmul %588, %29, %cst_168 {dimension_numbers = #tpu.dot_dimension_numbers<[1], [0], [0], [1], [0, 0, 1, 1], [], []>} : vector<2x64xf32>, vector<64x256xf32>, vector<2x256xf32> -> vector<2x256xf32>
    %597 = arith.addf %595, %596 : vector<2x256xf32>
    %598 = math.tanh %597 : vector<2x256xf32>
    %599 = arith.negf %597 : vector<2x256xf32>
    %600 = math.exp %599 : vector<2x256xf32>
    %cst_169 = arith.constant 1.000000e+00 : f32
    %601 = vector.broadcast %cst_169 : f32 to vector<2x256xf32>
    %602 = arith.addf %601, %600 : vector<2x256xf32>
    %603 = arith.divf %601, %602 : vector<2x256xf32>
    %604 = arith.select %28, %598, %603 : vector<2x256xi1>, vector<2x256xf32>
    %605 = vector.extract_strided_slice %604 {offsets = [0, 0], sizes = [2, 32], strides = [1, 1]} : vector<2x256xf32> to vector<2x32xf32>
    %606 = vector.extract_strided_slice %604 {offsets = [0, 128], sizes = [2, 32], strides = [1, 1]} : vector<2x256xf32> to vector<2x32xf32>
    %607 = tpu.concatenate %605, %606 in 1 : vector<2x32xf32>, vector<2x32xf32> -> vector<2x64xf32>
    %608 = vector.extract_strided_slice %604 {offsets = [0, 32], sizes = [2, 32], strides = [1, 1]} : vector<2x256xf32> to vector<2x32xf32>
    %609 = vector.extract_strided_slice %604 {offsets = [0, 160], sizes = [2, 32], strides = [1, 1]} : vector<2x256xf32> to vector<2x32xf32>
    %610 = tpu.concatenate %608, %609 in 1 : vector<2x32xf32>, vector<2x32xf32> -> vector<2x64xf32>
    %611 = vector.extract_strided_slice %604 {offsets = [0, 64], sizes = [2, 32], strides = [1, 1]} : vector<2x256xf32> to vector<2x32xf32>
    %612 = vector.extract_strided_slice %604 {offsets = [0, 192], sizes = [2, 32], strides = [1, 1]} : vector<2x256xf32> to vector<2x32xf32>
    %613 = tpu.concatenate %611, %612 in 1 : vector<2x32xf32>, vector<2x32xf32> -> vector<2x64xf32>
    %614 = vector.extract_strided_slice %604 {offsets = [0, 96], sizes = [2, 32], strides = [1, 1]} : vector<2x256xf32> to vector<2x32xf32>
    %615 = vector.extract_strided_slice %604 {offsets = [0, 224], sizes = [2, 32], strides = [1, 1]} : vector<2x256xf32> to vector<2x32xf32>
    %616 = tpu.concatenate %614, %615 in 1 : vector<2x32xf32>, vector<2x32xf32> -> vector<2x64xf32>
    %617 = arith.mulf %610, %586 : vector<2x64xf32>
    %618 = arith.mulf %607, %613 : vector<2x64xf32>
    %619 = arith.addf %617, %618 : vector<2x64xf32>
    %620 = math.tanh %619 : vector<2x64xf32>
    %621 = arith.mulf %616, %620 : vector<2x64xf32>
    %622 = vector.extract_strided_slice %621 {offsets = [0, 0], sizes = [2, 32], strides = [1, 1]} : vector<2x64xf32> to vector<2x32xf32>
    %c34_170 = arith.constant 34 : index
    %c0_171 = arith.constant 0 : index
    %623 = vector.load %arg10[%c34_170, %c0_171] : memref<40x64xf32, #tpu.memory_space<vmem>>, vector<2x32xf32>
    tpu.vector_store %arg10[%c34_170, %c0_171], %622 {strides = array<i32>} : memref<40x64xf32, #tpu.memory_space<vmem>>, vector<2x32xf32>,
    %624 = vector.extract_strided_slice %621 {offsets = [0, 32], sizes = [2, 32], strides = [1, 1]} : vector<2x64xf32> to vector<2x32xf32>
    %c4_172 = arith.constant 4 : index
    %c32_173 = arith.constant 32 : index
    %625 = vector.load %arg10[%c4_172, %c32_173] : memref<40x64xf32, #tpu.memory_space<vmem>>, vector<2x32xf32>
    tpu.vector_store %arg10[%c4_172, %c32_173], %624 {strides = array<i32>} : memref<40x64xf32, #tpu.memory_space<vmem>>, vector<2x32xf32>,
    %c36_174 = arith.constant 36 : index
    %c0_175 = arith.constant 0 : index
    %626 = vector.load %arg9[%c36_174, %c0_175] : memref<40x256xf32, #tpu.memory_space<vmem>>, vector<2x128xf32>
    %c2_176 = arith.constant 2 : index
    %c128_177 = arith.constant 128 : index
    %627 = vector.load %arg9[%c2_176, %c128_177] : memref<40x256xf32, #tpu.memory_space<vmem>>, vector<2x128xf32>
    %628 = tpu.concatenate %626, %627 in 1 : vector<2x128xf32>, vector<2x128xf32> -> vector<2x256xf32>
    %cst_178 = arith.constant dense<0.000000e+00> : vector<2x256xf32>
    %629 = tpu.matmul %621, %29, %cst_178 {dimension_numbers = #tpu.dot_dimension_numbers<[1], [0], [0], [1], [0, 0, 1, 1], [], []>} : vector<2x64xf32>, vector<64x256xf32>, vector<2x256xf32> -> vector<2x256xf32>
    %630 = arith.addf %628, %629 : vector<2x256xf32>
    %631 = math.tanh %630 : vector<2x256xf32>
    %632 = arith.negf %630 : vector<2x256xf32>
    %633 = math.exp %632 : vector<2x256xf32>
    %cst_179 = arith.constant 1.000000e+00 : f32
    %634 = vector.broadcast %cst_179 : f32 to vector<2x256xf32>
    %635 = arith.addf %634, %633 : vector<2x256xf32>
    %636 = arith.divf %634, %635 : vector<2x256xf32>
    %637 = arith.select %28, %631, %636 : vector<2x256xi1>, vector<2x256xf32>
    %638 = vector.extract_strided_slice %637 {offsets = [0, 0], sizes = [2, 32], strides = [1, 1]} : vector<2x256xf32> to vector<2x32xf32>
    %639 = vector.extract_strided_slice %637 {offsets = [0, 128], sizes = [2, 32], strides = [1, 1]} : vector<2x256xf32> to vector<2x32xf32>
    %640 = tpu.concatenate %638, %639 in 1 : vector<2x32xf32>, vector<2x32xf32> -> vector<2x64xf32>
    %641 = vector.extract_strided_slice %637 {offsets = [0, 32], sizes = [2, 32], strides = [1, 1]} : vector<2x256xf32> to vector<2x32xf32>
    %642 = vector.extract_strided_slice %637 {offsets = [0, 160], sizes = [2, 32], strides = [1, 1]} : vector<2x256xf32> to vector<2x32xf32>
    %643 = tpu.concatenate %641, %642 in 1 : vector<2x32xf32>, vector<2x32xf32> -> vector<2x64xf32>
    %644 = vector.extract_strided_slice %637 {offsets = [0, 64], sizes = [2, 32], strides = [1, 1]} : vector<2x256xf32> to vector<2x32xf32>
    %645 = vector.extract_strided_slice %637 {offsets = [0, 192], sizes = [2, 32], strides = [1, 1]} : vector<2x256xf32> to vector<2x32xf32>
    %646 = tpu.concatenate %644, %645 in 1 : vector<2x32xf32>, vector<2x32xf32> -> vector<2x64xf32>
    %647 = vector.extract_strided_slice %637 {offsets = [0, 96], sizes = [2, 32], strides = [1, 1]} : vector<2x256xf32> to vector<2x32xf32>
    %648 = vector.extract_strided_slice %637 {offsets = [0, 224], sizes = [2, 32], strides = [1, 1]} : vector<2x256xf32> to vector<2x32xf32>
    %649 = tpu.concatenate %647, %648 in 1 : vector<2x32xf32>, vector<2x32xf32> -> vector<2x64xf32>
    %650 = arith.mulf %643, %619 : vector<2x64xf32>
    %651 = arith.mulf %640, %646 : vector<2x64xf32>
    %652 = arith.addf %650, %651 : vector<2x64xf32>
    %653 = math.tanh %652 : vector<2x64xf32>
    %654 = arith.mulf %649, %653 : vector<2x64xf32>
    %655 = vector.extract_strided_slice %654 {offsets = [0, 0], sizes = [2, 32], strides = [1, 1]} : vector<2x64xf32> to vector<2x32xf32>
    %c36_180 = arith.constant 36 : index
    %c0_181 = arith.constant 0 : index
    %656 = vector.load %arg10[%c36_180, %c0_181] : memref<40x64xf32, #tpu.memory_space<vmem>>, vector<2x32xf32>
    tpu.vector_store %arg10[%c36_180, %c0_181], %655 {strides = array<i32>} : memref<40x64xf32, #tpu.memory_space<vmem>>, vector<2x32xf32>,
    %657 = vector.extract_strided_slice %654 {offsets = [0, 32], sizes = [2, 32], strides = [1, 1]} : vector<2x64xf32> to vector<2x32xf32>
    %c2_182 = arith.constant 2 : index
    %c32_183 = arith.constant 32 : index
    %658 = vector.load %arg10[%c2_182, %c32_183] : memref<40x64xf32, #tpu.memory_space<vmem>>, vector<2x32xf32>
    tpu.vector_store %arg10[%c2_182, %c32_183], %657 {strides = array<i32>} : memref<40x64xf32, #tpu.memory_space<vmem>>, vector<2x32xf32>,
    %c38_184 = arith.constant 38 : index
    %c0_185 = arith.constant 0 : index
    %659 = vector.load %arg9[%c38_184, %c0_185] : memref<40x256xf32, #tpu.memory_space<vmem>>, vector<2x128xf32>
    %c0_186 = arith.constant 0 : index
    %c128_187 = arith.constant 128 : index
    %660 = vector.load %arg9[%c0_186, %c128_187] : memref<40x256xf32, #tpu.memory_space<vmem>>, vector<2x128xf32>
    %661 = tpu.concatenate %659, %660 in 1 : vector<2x128xf32>, vector<2x128xf32> -> vector<2x256xf32>
    %cst_188 = arith.constant dense<0.000000e+00> : vector<2x256xf32>
    %662 = tpu.matmul %654, %29, %cst_188 {dimension_numbers = #tpu.dot_dimension_numbers<[1], [0], [0], [1], [0, 0, 1, 1], [], []>} : vector<2x64xf32>, vector<64x256xf32>, vector<2x256xf32> -> vector<2x256xf32>
    %663 = arith.addf %661, %662 : vector<2x256xf32>
    %664 = math.tanh %663 : vector<2x256xf32>
    %665 = arith.negf %663 : vector<2x256xf32>
    %666 = math.exp %665 : vector<2x256xf32>
    %cst_189 = arith.constant 1.000000e+00 : f32
    %667 = vector.broadcast %cst_189 : f32 to vector<2x256xf32>
    %668 = arith.addf %667, %666 : vector<2x256xf32>
    %669 = arith.divf %667, %668 : vector<2x256xf32>
    %670 = arith.select %28, %664, %669 : vector<2x256xi1>, vector<2x256xf32>
    %671 = vector.extract_strided_slice %670 {offsets = [0, 0], sizes = [2, 32], strides = [1, 1]} : vector<2x256xf32> to vector<2x32xf32>
    %672 = vector.extract_strided_slice %670 {offsets = [0, 128], sizes = [2, 32], strides = [1, 1]} : vector<2x256xf32> to vector<2x32xf32>
    %673 = tpu.concatenate %671, %672 in 1 : vector<2x32xf32>, vector<2x32xf32> -> vector<2x64xf32>
    %674 = vector.extract_strided_slice %670 {offsets = [0, 32], sizes = [2, 32], strides = [1, 1]} : vector<2x256xf32> to vector<2x32xf32>
    %675 = vector.extract_strided_slice %670 {offsets = [0, 160], sizes = [2, 32], strides = [1, 1]} : vector<2x256xf32> to vector<2x32xf32>
    %676 = tpu.concatenate %674, %675 in 1 : vector<2x32xf32>, vector<2x32xf32> -> vector<2x64xf32>
    %677 = vector.extract_strided_slice %670 {offsets = [0, 64], sizes = [2, 32], strides = [1, 1]} : vector<2x256xf32> to vector<2x32xf32>
    %678 = vector.extract_strided_slice %670 {offsets = [0, 192], sizes = [2, 32], strides = [1, 1]} : vector<2x256xf32> to vector<2x32xf32>
    %679 = tpu.concatenate %677, %678 in 1 : vector<2x32xf32>, vector<2x32xf32> -> vector<2x64xf32>
    %680 = vector.extract_strided_slice %670 {offsets = [0, 96], sizes = [2, 32], strides = [1, 1]} : vector<2x256xf32> to vector<2x32xf32>
    %681 = vector.extract_strided_slice %670 {offsets = [0, 224], sizes = [2, 32], strides = [1, 1]} : vector<2x256xf32> to vector<2x32xf32>
    %682 = tpu.concatenate %680, %681 in 1 : vector<2x32xf32>, vector<2x32xf32> -> vector<2x64xf32>
    %683 = arith.mulf %676, %652 : vector<2x64xf32>
    %684 = arith.mulf %673, %679 : vector<2x64xf32>
    %685 = arith.addf %683, %684 : vector<2x64xf32>
    %686 = math.tanh %685 : vector<2x64xf32>
    %687 = arith.mulf %682, %686 : vector<2x64xf32>
    %688 = vector.extract_strided_slice %687 {offsets = [0, 0], sizes = [2, 32], strides = [1, 1]} : vector<2x64xf32> to vector<2x32xf32>
    %c38_190 = arith.constant 38 : index
    %c0_191 = arith.constant 0 : index
    %689 = vector.load %arg10[%c38_190, %c0_191] : memref<40x64xf32, #tpu.memory_space<vmem>>, vector<2x32xf32>
    tpu.vector_store %arg10[%c38_190, %c0_191], %688 {strides = array<i32>} : memref<40x64xf32, #tpu.memory_space<vmem>>, vector<2x32xf32>,
    %690 = vector.extract_strided_slice %687 {offsets = [0, 32], sizes = [2, 32], strides = [1, 1]} : vector<2x64xf32> to vector<2x32xf32>
    %c0_192 = arith.constant 0 : index
    %c32_193 = arith.constant 32 : index
    %691 = vector.load %arg10[%c0_192, %c32_193] : memref<40x64xf32, #tpu.memory_space<vmem>>, vector<2x32xf32>
    tpu.vector_store %arg10[%c0_192, %c32_193], %690 {strides = array<i32>} : memref<40x64xf32, #tpu.memory_space<vmem>>, vector<2x32xf32>,
    %cst_194 = arith.constant 0.000000e+00 : f32
    %692 = vector.broadcast %cst_194 : f32 to vector<36x16xf32>
    %c0_195 = arith.constant 0 : index
    %c0_196 = arith.constant 0 : index
    %693 = vector.load %arg10[%c0_195, %c0_196] : memref<40x64xf32, #tpu.memory_space<vmem>>, vector<36x64xf32>
    %c0_197 = arith.constant 0 : index
    %c0_198 = arith.constant 0 : index
    %c0_199 = arith.constant 0 : index
    %694 = vector.load %arg4[%c0_197, %c0_198, %c0_199] : memref<3x64x16xf32, #tpu.memory_space<vmem>>, vector<1x64x16xf32>
    %695 = vector.shape_cast %694 : vector<1x64x16xf32> to vector<64x16xf32>
    %cst_200 = arith.constant dense<0.000000e+00> : vector<36x16xf32>
    %696 = tpu.matmul %693, %695, %cst_200 {dimension_numbers = #tpu.dot_dimension_numbers<[1], [0], [0], [1], [0, 0, 1, 1], [], []>} : vector<36x64xf32>, vector<64x16xf32>, vector<36x16xf32> -> vector<36x16xf32>
    %697 = arith.addf %692, %696 : vector<36x16xf32>
    %c2_201 = arith.constant 2 : index
    %c0_202 = arith.constant 0 : index
    %698 = vector.load %arg10[%c2_201, %c0_202] : memref<40x64xf32, #tpu.memory_space<vmem>>, vector<36x64xf32>
    %c1 = arith.constant 1 : index
    %c0_203 = arith.constant 0 : index
    %c0_204 = arith.constant 0 : index
    %699 = vector.load %arg4[%c1, %c0_203, %c0_204] : memref<3x64x16xf32, #tpu.memory_space<vmem>>, vector<1x64x16xf32>
    %700 = vector.shape_cast %699 : vector<1x64x16xf32> to vector<64x16xf32>
    %cst_205 = arith.constant dense<0.000000e+00> : vector<36x16xf32>
    %701 = tpu.matmul %698, %700, %cst_205 {dimension_numbers = #tpu.dot_dimension_numbers<[1], [0], [0], [1], [0, 0, 1, 1], [], []>} : vector<36x64xf32>, vector<64x16xf32>, vector<36x16xf32> -> vector<36x16xf32>
    %702 = arith.addf %697, %701 : vector<36x16xf32>
    %c4_206 = arith.constant 4 : index
    %c0_207 = arith.constant 0 : index
    %703 = vector.load %arg10[%c4_206, %c0_207] : memref<40x64xf32, #tpu.memory_space<vmem>>, vector<36x64xf32>
    %c2_208 = arith.constant 2 : index
    %c0_209 = arith.constant 0 : index
    %c0_210 = arith.constant 0 : index
    %704 = vector.load %arg4[%c2_208, %c0_209, %c0_210] : memref<3x64x16xf32, #tpu.memory_space<vmem>>, vector<1x64x16xf32>
    %705 = vector.shape_cast %704 : vector<1x64x16xf32> to vector<64x16xf32>
    %cst_211 = arith.constant dense<0.000000e+00> : vector<36x16xf32>
    %706 = tpu.matmul %703, %705, %cst_211 {dimension_numbers = #tpu.dot_dimension_numbers<[1], [0], [0], [1], [0, 0, 1, 1], [], []>} : vector<36x64xf32>, vector<64x16xf32>, vector<36x16xf32> -> vector<36x16xf32>
    %707 = arith.addf %702, %706 : vector<36x16xf32>
    %c0_212 = arith.constant 0 : index
    %c0_213 = arith.constant 0 : index
    %708 = vector.load %arg5[%c0_212, %c0_213] : memref<1x16xf32, #tpu.memory_space<vmem>>, vector<1x16xf32>
    %709 = vector.broadcast %708 : vector<1x16xf32> to vector<36x16xf32>
    %710 = arith.addf %707, %709 : vector<36x16xf32>
    %cst_214 = arith.constant 0.000000e+00 : f32
    %711 = vector.broadcast %cst_214 : f32 to vector<2x128xf32>
    %c0_215 = arith.constant 0 : index
    %c0_216 = arith.constant 0 : index
    %712 = vector.load %arg7[%c0_215, %c0_216] : memref<1x128xf32, #tpu.memory_space<vmem>>, vector<1x128xf32>
    %713 = vector.broadcast %712 : vector<1x128xf32> to vector<2x128xf32>
    %714 = arith.addf %711, %713 : vector<2x128xf32>
    %715 = vector.extract_strided_slice %710 {offsets = [0, 0], sizes = [2, 16], strides = [1, 1]} : vector<36x16xf32> to vector<2x16xf32>
    %716 = vector.extract_strided_slice %710 {offsets = [2, 0], sizes = [2, 16], strides = [1, 1]} : vector<36x16xf32> to vector<2x16xf32>
    %717 = vector.extract_strided_slice %710 {offsets = [4, 0], sizes = [2, 16], strides = [1, 1]} : vector<36x16xf32> to vector<2x16xf32>
    %718 = arith.addf %715, %716 : vector<2x16xf32>
    %719 = arith.maximumf %715, %716 : vector<2x16xf32>
    %720 = arith.addf %718, %717 : vector<2x16xf32>
    %721 = arith.maximumf %719, %717 : vector<2x16xf32>
    %cst_217 = arith.constant 0.333333343 : f32
    %722 = vector.broadcast %cst_217 : f32 to vector<2x16xf32>
    %723 = arith.mulf %720, %722 : vector<2x16xf32>
    %724 = tpu.concatenate %723, %721 in 1 : vector<2x16xf32>, vector<2x16xf32> -> vector<2x32xf32>
    %c0_218 = arith.constant 0 : index
    %c0_219 = arith.constant 0 : index
    %c0_220 = arith.constant 0 : index
    %725 = vector.load %arg6[%c0_218, %c0_219, %c0_220] : memref<6x32x128xf32, #tpu.memory_space<vmem>>, vector<1x32x128xf32>
    %726 = vector.shape_cast %725 : vector<1x32x128xf32> to vector<32x128xf32>
    %cst_221 = arith.constant dense<0.000000e+00> : vector<2x128xf32>
    %727 = tpu.matmul %724, %726, %cst_221 {dimension_numbers = #tpu.dot_dimension_numbers<[1], [0], [0], [1], [0, 0, 1, 1], [], []>} : vector<2x32xf32>, vector<32x128xf32>, vector<2x128xf32> -> vector<2x128xf32>
    %728 = arith.addf %714, %727 : vector<2x128xf32>
    %729 = vector.extract_strided_slice %710 {offsets = [6, 0], sizes = [2, 16], strides = [1, 1]} : vector<36x16xf32> to vector<2x16xf32>
    %730 = vector.extract_strided_slice %710 {offsets = [8, 0], sizes = [2, 16], strides = [1, 1]} : vector<36x16xf32> to vector<2x16xf32>
    %731 = vector.extract_strided_slice %710 {offsets = [10, 0], sizes = [2, 16], strides = [1, 1]} : vector<36x16xf32> to vector<2x16xf32>
    %732 = arith.addf %729, %730 : vector<2x16xf32>
    %733 = arith.maximumf %729, %730 : vector<2x16xf32>
    %734 = arith.addf %732, %731 : vector<2x16xf32>
    %735 = arith.maximumf %733, %731 : vector<2x16xf32>
    %cst_222 = arith.constant 0.333333343 : f32
    %736 = vector.broadcast %cst_222 : f32 to vector<2x16xf32>
    %737 = arith.mulf %734, %736 : vector<2x16xf32>
    %738 = tpu.concatenate %737, %735 in 1 : vector<2x16xf32>, vector<2x16xf32> -> vector<2x32xf32>
    %c1_223 = arith.constant 1 : index
    %c0_224 = arith.constant 0 : index
    %c0_225 = arith.constant 0 : index
    %739 = vector.load %arg6[%c1_223, %c0_224, %c0_225] : memref<6x32x128xf32, #tpu.memory_space<vmem>>, vector<1x32x128xf32>
    %740 = vector.shape_cast %739 : vector<1x32x128xf32> to vector<32x128xf32>
    %cst_226 = arith.constant dense<0.000000e+00> : vector<2x128xf32>
    %741 = tpu.matmul %738, %740, %cst_226 {dimension_numbers = #tpu.dot_dimension_numbers<[1], [0], [0], [1], [0, 0, 1, 1], [], []>} : vector<2x32xf32>, vector<32x128xf32>, vector<2x128xf32> -> vector<2x128xf32>
    %742 = arith.addf %728, %741 : vector<2x128xf32>
    %743 = vector.extract_strided_slice %710 {offsets = [12, 0], sizes = [2, 16], strides = [1, 1]} : vector<36x16xf32> to vector<2x16xf32>
    %744 = vector.extract_strided_slice %710 {offsets = [14, 0], sizes = [2, 16], strides = [1, 1]} : vector<36x16xf32> to vector<2x16xf32>
    %745 = vector.extract_strided_slice %710 {offsets = [16, 0], sizes = [2, 16], strides = [1, 1]} : vector<36x16xf32> to vector<2x16xf32>
    %746 = arith.addf %743, %744 : vector<2x16xf32>
    %747 = arith.maximumf %743, %744 : vector<2x16xf32>
    %748 = arith.addf %746, %745 : vector<2x16xf32>
    %749 = arith.maximumf %747, %745 : vector<2x16xf32>
    %cst_227 = arith.constant 0.333333343 : f32
    %750 = vector.broadcast %cst_227 : f32 to vector<2x16xf32>
    %751 = arith.mulf %748, %750 : vector<2x16xf32>
    %752 = tpu.concatenate %751, %749 in 1 : vector<2x16xf32>, vector<2x16xf32> -> vector<2x32xf32>
    %c2_228 = arith.constant 2 : index
    %c0_229 = arith.constant 0 : index
    %c0_230 = arith.constant 0 : index
    %753 = vector.load %arg6[%c2_228, %c0_229, %c0_230] : memref<6x32x128xf32, #tpu.memory_space<vmem>>, vector<1x32x128xf32>
    %754 = vector.shape_cast %753 : vector<1x32x128xf32> to vector<32x128xf32>
    %cst_231 = arith.constant dense<0.000000e+00> : vector<2x128xf32>
    %755 = tpu.matmul %752, %754, %cst_231 {dimension_numbers = #tpu.dot_dimension_numbers<[1], [0], [0], [1], [0, 0, 1, 1], [], []>} : vector<2x32xf32>, vector<32x128xf32>, vector<2x128xf32> -> vector<2x128xf32>
    %756 = arith.addf %742, %755 : vector<2x128xf32>
    %757 = vector.extract_strided_slice %710 {offsets = [18, 0], sizes = [2, 16], strides = [1, 1]} : vector<36x16xf32> to vector<2x16xf32>
    %758 = vector.extract_strided_slice %710 {offsets = [20, 0], sizes = [2, 16], strides = [1, 1]} : vector<36x16xf32> to vector<2x16xf32>
    %759 = vector.extract_strided_slice %710 {offsets = [22, 0], sizes = [2, 16], strides = [1, 1]} : vector<36x16xf32> to vector<2x16xf32>
    %760 = arith.addf %757, %758 : vector<2x16xf32>
    %761 = arith.maximumf %757, %758 : vector<2x16xf32>
    %762 = arith.addf %760, %759 : vector<2x16xf32>
    %763 = arith.maximumf %761, %759 : vector<2x16xf32>
    %cst_232 = arith.constant 0.333333343 : f32
    %764 = vector.broadcast %cst_232 : f32 to vector<2x16xf32>
    %765 = arith.mulf %762, %764 : vector<2x16xf32>
    %766 = tpu.concatenate %765, %763 in 1 : vector<2x16xf32>, vector<2x16xf32> -> vector<2x32xf32>
    %c3 = arith.constant 3 : index
    %c0_233 = arith.constant 0 : index
    %c0_234 = arith.constant 0 : index
    %767 = vector.load %arg6[%c3, %c0_233, %c0_234] : memref<6x32x128xf32, #tpu.memory_space<vmem>>, vector<1x32x128xf32>
    %768 = vector.shape_cast %767 : vector<1x32x128xf32> to vector<32x128xf32>
    %cst_235 = arith.constant dense<0.000000e+00> : vector<2x128xf32>
    %769 = tpu.matmul %766, %768, %cst_235 {dimension_numbers = #tpu.dot_dimension_numbers<[1], [0], [0], [1], [0, 0, 1, 1], [], []>} : vector<2x32xf32>, vector<32x128xf32>, vector<2x128xf32> -> vector<2x128xf32>
    %770 = arith.addf %756, %769 : vector<2x128xf32>
    %771 = vector.extract_strided_slice %710 {offsets = [24, 0], sizes = [2, 16], strides = [1, 1]} : vector<36x16xf32> to vector<2x16xf32>
    %772 = vector.extract_strided_slice %710 {offsets = [26, 0], sizes = [2, 16], strides = [1, 1]} : vector<36x16xf32> to vector<2x16xf32>
    %773 = vector.extract_strided_slice %710 {offsets = [28, 0], sizes = [2, 16], strides = [1, 1]} : vector<36x16xf32> to vector<2x16xf32>
    %774 = arith.addf %771, %772 : vector<2x16xf32>
    %775 = arith.maximumf %771, %772 : vector<2x16xf32>
    %776 = arith.addf %774, %773 : vector<2x16xf32>
    %777 = arith.maximumf %775, %773 : vector<2x16xf32>
    %cst_236 = arith.constant 0.333333343 : f32
    %778 = vector.broadcast %cst_236 : f32 to vector<2x16xf32>
    %779 = arith.mulf %776, %778 : vector<2x16xf32>
    %780 = tpu.concatenate %779, %777 in 1 : vector<2x16xf32>, vector<2x16xf32> -> vector<2x32xf32>
    %c4_237 = arith.constant 4 : index
    %c0_238 = arith.constant 0 : index
    %c0_239 = arith.constant 0 : index
    %781 = vector.load %arg6[%c4_237, %c0_238, %c0_239] : memref<6x32x128xf32, #tpu.memory_space<vmem>>, vector<1x32x128xf32>
    %782 = vector.shape_cast %781 : vector<1x32x128xf32> to vector<32x128xf32>
    %cst_240 = arith.constant dense<0.000000e+00> : vector<2x128xf32>
    %783 = tpu.matmul %780, %782, %cst_240 {dimension_numbers = #tpu.dot_dimension_numbers<[1], [0], [0], [1], [0, 0, 1, 1], [], []>} : vector<2x32xf32>, vector<32x128xf32>, vector<2x128xf32> -> vector<2x128xf32>
    %784 = arith.addf %770, %783 : vector<2x128xf32>
    %785 = vector.extract_strided_slice %710 {offsets = [30, 0], sizes = [2, 16], strides = [1, 1]} : vector<36x16xf32> to vector<2x16xf32>
    %786 = vector.extract_strided_slice %710 {offsets = [32, 0], sizes = [2, 16], strides = [1, 1]} : vector<36x16xf32> to vector<2x16xf32>
    %787 = vector.extract_strided_slice %710 {offsets = [34, 0], sizes = [2, 16], strides = [1, 1]} : vector<36x16xf32> to vector<2x16xf32>
    %788 = arith.addf %785, %786 : vector<2x16xf32>
    %789 = arith.maximumf %785, %786 : vector<2x16xf32>
    %790 = arith.addf %788, %787 : vector<2x16xf32>
    %791 = arith.maximumf %789, %787 : vector<2x16xf32>
    %cst_241 = arith.constant 0.333333343 : f32
    %792 = vector.broadcast %cst_241 : f32 to vector<2x16xf32>
    %793 = arith.mulf %790, %792 : vector<2x16xf32>
    %794 = tpu.concatenate %793, %791 in 1 : vector<2x16xf32>, vector<2x16xf32> -> vector<2x32xf32>
    %c5 = arith.constant 5 : index
    %c0_242 = arith.constant 0 : index
    %c0_243 = arith.constant 0 : index
    %795 = vector.load %arg6[%c5, %c0_242, %c0_243] : memref<6x32x128xf32, #tpu.memory_space<vmem>>, vector<1x32x128xf32>
    %796 = vector.shape_cast %795 : vector<1x32x128xf32> to vector<32x128xf32>
    %cst_244 = arith.constant dense<0.000000e+00> : vector<2x128xf32>
    %797 = tpu.matmul %794, %796, %cst_244 {dimension_numbers = #tpu.dot_dimension_numbers<[1], [0], [0], [1], [0, 0, 1, 1], [], []>} : vector<2x32xf32>, vector<32x128xf32>, vector<2x128xf32> -> vector<2x128xf32>
    %798 = arith.addf %784, %797 : vector<2x128xf32>
    %cst_245 = arith.constant dense<0xFF800000> : vector<2xf32>
    %799 = vector.multi_reduction <maximumf>, %798, %cst_245 [1] : vector<2x128xf32> to vector<2xf32>
    %800 = vector.shape_cast %799 : vector<2xf32> to vector<2x1xf32>
    %801 = vector.broadcast %800 : vector<2x1xf32> to vector<2x128xf32>
    %802 = arith.subf %798, %801 : vector<2x128xf32>
    %803 = math.exp %802 : vector<2x128xf32>
    %cst_246 = arith.constant dense<0.000000e+00> : vector<2xf32>
    %804 = vector.multi_reduction <add>, %803, %cst_246 [1] : vector<2x128xf32> to vector<2xf32>
    %805 = vector.shape_cast %804 : vector<2xf32> to vector<2x1xf32>
    %806 = tpu.reciprocal %805 {approx = true} : vector<2x1xf32> -> vector<2x1xf32>
    %807 = arith.mulf %805, %806 : vector<2x1xf32>
    %cst_247 = arith.constant 2.000000e+00 : f32
    %808 = vector.broadcast %cst_247 : f32 to vector<2x1xf32>
    %809 = arith.subf %808, %807 : vector<2x1xf32>
    %810 = arith.mulf %806, %809 : vector<2x1xf32>
    %811 = arith.mulf %805, %810 : vector<2x1xf32>
    %cst_248 = arith.constant 2.000000e+00 : f32
    %812 = vector.broadcast %cst_248 : f32 to vector<2x1xf32>
    %813 = arith.subf %812, %811 : vector<2x1xf32>
    %814 = arith.mulf %810, %813 : vector<2x1xf32>
    %815 = vector.broadcast %814 : vector<2x1xf32> to vector<2x128xf32>
    %816 = arith.mulf %803, %815 : vector<2x128xf32>
    %817 = vector.extract_strided_slice %816 {offsets = [0, 0], sizes = [2, 6], strides = [1, 1]} : vector<2x128xf32> to vector<2x6xf32>
    %c0_249 = arith.constant 0 : index
    %c0_250 = arith.constant 0 : index
    %818 = vector.load %arg8[%c0_249, %c0_250] : memref<2x6xf32, #tpu.memory_space<vmem>>, vector<2x6xf32>
    tpu.vector_store %arg8[%c0_249, %c0_250], %817 {strides = array<i32>} : memref<2x6xf32, #tpu.memory_space<vmem>>, vector<2x6xf32>,
    return
  }
}

</mosaic_0001>

<llo_original>
// kernel: bilstm_cnn_forward.1
$region0: #{bilstm_cnn_forward.1}
  #allocation0 [shape = 'u32[]', space=smem, size = 0x4, offset = 0x4, fixed_abs, tag = 'smem constant byte address 0x4 - core index']
  #allocation1 [shape = 'u32[144,128]{1,0:T(1,128)}', space=vmem, size = 0x12000, scoped, tag = 'internal scratch']
  #allocation2 [shape = 'f32[40,256]{1,0:T(8,128)}', space=vmem, size = 0xa000, scoped, tag = 'scratch operand']
  #allocation3 [shape = 'f32[40,64]{1,0:T(8,128)}', space=vmem, size = 0x5000, scoped, tag = 'scratch operand']
  %s0 = inlined_call_operand.vmem [shape: f32[40,64], index: 0, kind: input, shape index: {}]
  %s1 = inlined_call_operand.vmem [shape: f32[64,256], index: 1, kind: input, shape index: {}]
  %s2 = inlined_call_operand.vmem [shape: f32[64,256], index: 2, kind: input, shape index: {}]
  %s3 = inlined_call_operand.vmem [shape: f32[1,256], index: 3, kind: input, shape index: {}]
  %s4 = inlined_call_operand.vmem [shape: f32[3,64,16], index: 4, kind: input, shape index: {}]
  %s5 = inlined_call_operand.vmem [shape: f32[1,16], index: 5, kind: input, shape index: {}]
  %s6 = inlined_call_operand.vmem [shape: f32[6,32,128], index: 6, kind: input, shape index: {}]
  %s7 = inlined_call_operand.vmem [shape: f32[1,128], index: 7, kind: input, shape index: {}]
  %s8 = inlined_call_operand.hbm [shape: f32[2,6], index: 8, kind: output, shape index: {}]
  %s9 = sld [smem:[#allocation0]]
  $region42: #{bilstm_cnn_forward.1} parent=0
    _
  %s11 = ssub.s32 1, %s9
  %s12 = scalar_select 0, %s11, %s9
  $region1: #{bilstm_cnn_forward.1} parent=0
    #allocation4 [shape = 'u8[1024]{0}', space=vmem, size = 0x400, scoped, tag = 'output window, operand 0, single buffered']
    #allocation5 [shape = 's32[1]{0}', space=sflag, size = 0x4, scoped, tag = 'scoped memory for bilstm_cnn_forward.1']
    %13 = vsyncpa [#allocation5], 0
    // Predicated region
    $region2: #{bilstm_cnn_forward.1} parent=1 // pred_check
      _
    $region3: #{bilstm_cnn_forward.1} parent=1 // pred_check_branch
      %15 = sbr.rel (0) target = $region5
    $region4: #{bilstm_cnn_forward.1} parent=1 // pred_region
      _
    $region5: #{bilstm_cnn_forward.1} parent=1 // pred_fallthru
      _
    // Predicated region
    $region6: #{bilstm_cnn_forward.1} parent=1 // pred_check
      _
    $region7: #{bilstm_cnn_forward.1} parent=1 // pred_check_branch
      %17 = sbr.rel (0) target = $region9
    $region8: #{bilstm_cnn_forward.1} parent=1 // pred_region
      _
    $region9: #{bilstm_cnn_forward.1} parent=1 // pred_fallthru
      _
    // Predicated region
    $region10: #{bilstm_cnn_forward.1} parent=1 // pred_check
      _
    $region11: #{bilstm_cnn_forward.1} parent=1 // pred_check_branch
      %19 = sbr.rel (0) target = $region13
    $region12: #{bilstm_cnn_forward.1} parent=1 // pred_region
      _
    $region13: #{bilstm_cnn_forward.1} parent=1 // pred_fallthru
      _
    // Predicated region
    $region14: #{bilstm_cnn_forward.1} parent=1 // pred_check
      _
    $region15: #{bilstm_cnn_forward.1} parent=1 // pred_check_branch
      %21 = sbr.rel (0) target = $region17
    $region16: #{bilstm_cnn_forward.1} parent=1 // pred_region
      _
    $region17: #{bilstm_cnn_forward.1} parent=1 // pred_fallthru
      _
    // Predicated region
    $region18: #{bilstm_cnn_forward.1} parent=1 // pred_check
      _
    $region19: #{bilstm_cnn_forward.1} parent=1 // pred_check_branch
      %23 = sbr.rel (0) target = $region21
    $region20: #{bilstm_cnn_forward.1} parent=1 // pred_region
      _
    $region21: #{bilstm_cnn_forward.1} parent=1 // pred_fallthru
      _
    // Predicated region
    $region22: #{bilstm_cnn_forward.1} parent=1 // pred_check
      _
    $region23: #{bilstm_cnn_forward.1} parent=1 // pred_check_branch
      %25 = sbr.rel (0) target = $region25
    $region24: #{bilstm_cnn_forward.1} parent=1 // pred_region
      _
    $region25: #{bilstm_cnn_forward.1} parent=1 // pred_fallthru
      _
    // Predicated region
    $region26: #{bilstm_cnn_forward.1} parent=1 // pred_check
      _
    $region27: #{bilstm_cnn_forward.1} parent=1 // pred_check_branch
      %27 = sbr.rel (0) target = $region29
    $region28: #{bilstm_cnn_forward.1} parent=1 // pred_region
      _
    $region29: #{bilstm_cnn_forward.1} parent=1 // pred_fallthru
      _
    // Predicated region
    $region30: #{bilstm_cnn_forward.1} parent=1 // pred_check
      _
    $region31: #{bilstm_cnn_forward.1} parent=1 // pred_check_branch
      %29 = sbr.rel (0) target = $region33
    $region32: #{bilstm_cnn_forward.1} parent=1 // pred_region
      _
    $region33: #{bilstm_cnn_forward.1} parent=1 // pred_fallthru
      _
    %v30 = vld [vmem:[%s0] sm:$0xff]
    %v31 = vld [vmem:[%s0 + $0x8] sm:$0xff]
    %v32 = vld [vmem:[%s0 + $0x10] sm:$0xff]
    %v33 = vld [vmem:[%s0 + $0x18] sm:$0xff]
    %v34 = vld [vmem:[%s0 + $0x20] sm:$0xff]
    %v35 = vld [vmem:[%s1] sm:$0xff]
    %v36 = vld [vmem:[%s1 + $0x8] sm:$0xff]
    %v37 = vld [vmem:[%s1 + $0x10] sm:$0xff]
    %v38 = vld [vmem:[%s1 + $0x18] sm:$0xff]
    %v39 = vld [vmem:[%s1 + $0x20] sm:$0xff]
    %v40 = vld [vmem:[%s1 + $0x28] sm:$0xff]
    %v41 = vld [vmem:[%s1 + $0x30] sm:$0xff]
    %v42 = vld [vmem:[%s1 + $0x38] sm:$0xff]
    %v43 = vld [vmem:[%s1 + $0x40] sm:$0xff]
    %v44 = vld [vmem:[%s1 + $0x48] sm:$0xff]
    %v45 = vld [vmem:[%s1 + $0x50] sm:$0xff]
    %v46 = vld [vmem:[%s1 + $0x58] sm:$0xff]
    %v47 = vld [vmem:[%s1 + $0x60] sm:$0xff]
    %v48 = vld [vmem:[%s1 + $0x68] sm:$0xff]
    %v49 = vld [vmem:[%s1 + $0x70] sm:$0xff]
    %v50 = vld [vmem:[%s1 + $0x78] sm:$0xff]
    %v51 = vld [vmem:[%s3] sm:$0x3]
    %v53 = vlaneseq
    %v54 = vshrl.u32 %v53, 7
    %v55 = vsub.s32 0, %v54
    %v56 = vrot.slane %v51, %v55
    %v57 = vlaneseq
    %v58 = vshrl.u32 %v57, 7
    %v59 = vsub.s32 1, %v58
    %v60 = vrot.slane %v51, %v59
    %vm63 = vcmask 523264
    %v65 = vsel %vm63, %v30, 0
    %v68 = vsel %vm63, %v31, 0
    %v71 = vsel %vm63, %v32, 0
    %v74 = vsel %vm63, %v33, 0
    %v77 = vsel %vm63, %v34, 0
    %79 = vmatprep.subr.mxu0 %v36
    %80 = vmatpush1.msra.mxu0 %v35
    %81 = vmatprep.subr.mxu0 %v38
    %82 = vmatpush1.msra.mxu0 %v37
    %83 = vmatprep.subr.mxu0 %v40
    %84 = vmatpush1.msra.mxu0 %v39
    %85 = vmatprep.subr.mxu0 %v42
    %86 = vmatpush1.msra.mxu0 %v41
    %87 = vmatprep.subr.mxu0 %v44
    %88 = vmatpush1.msra.mxu0 %v43
    %89 = vmatprep.subr.mxu0 %v46
    %90 = vmatpush1.msra.mxu0 %v45
    %91 = vmatprep.subr.mxu0 %v48
    %92 = vmatpush1.msra.mxu0 %v47
    %93 = vmatprep.subr.mxu0 %v50
    %94 = vmatpush1.msra.mxu0 %v49
    %95 = vmatprep.subr.mxu0 0.0
    %96 = vmatpush1.msra.mxu0 0.0
    %97 = vmatprep.subr.mxu0 0.0
    %98 = vmatpush1.msra.mxu0 0.0
    %99 = vmatprep.subr.mxu0 0.0
    %100 = vmatpush1.msra.mxu0 0.0
    %101 = vmatprep.subr.mxu0 0.0
    %102 = vmatpush1.msra.mxu0 0.0
    %103 = vmatprep.subr.mxu0 0.0
    %104 = vmatpush1.msra.mxu0 0.0
    %105 = vmatprep.subr.mxu0 0.0
    %106 = vmatpush1.msra.mxu0 0.0
    %107 = vmatprep.subr.mxu0 0.0
    %108 = vmatpush1.msra.mxu0 0.0
    %109 = vmatprep.subr.mxu0 0.0
    %110 = vmatpush1.msra.mxu0 0.0
    %111 = vmatprep.subr.mxu0 0.0
    %112 = vmatpush1.msra.mxu0 0.0
    %113 = vmatprep.subr.mxu0 0.0
    %114 = vmatpush1.msra.mxu0 0.0
    %115 = vmatprep.subr.mxu0 0.0
    %116 = vmatpush1.msra.mxu0 0.0
    %117 = vmatprep.subr.mxu0 0.0
    %118 = vmatpush1.msra.mxu0 0.0
    %119 = vmatprep.subr.mxu0 0.0
    %120 = vmatpush1.msra.mxu0 0.0
    %121 = vmatprep.subr.mxu0 0.0
    %122 = vmatpush1.msra.mxu0 0.0
    %123 = vmatprep.subr.mxu0 0.0
    %124 = vmatpush1.msra.mxu0 0.0
    %125 = vmatprep.subr.mxu0 0.0
    %126 = vmatpush1.msra.mxu0 0.0
    %127 = vmatprep.subr.mxu0 0.0
    %128 = vmatpush1.msra.mxu0 0.0
    %129 = vmatprep.subr.mxu0 0.0
    %130 = vmatpush1.msra.mxu0 0.0
    %131 = vmatprep.subr.mxu0 0.0
    %132 = vmatpush1.msra.mxu0 0.0
    %133 = vmatprep.subr.mxu0 0.0
    %134 = vmatpush1.msra.mxu0 0.0
    %135 = vmatprep.subr.mxu0 0.0
    %136 = vmatpush1.msra.mxu0 0.0
    %137 = vmatprep.subr.mxu0 0.0
    %138 = vmatpush1.msra.mxu0 0.0
    %139 = vmatprep.subr.mxu0 0.0
    %140 = vmatpush1.msra.mxu0 0.0
    %141 = vmatprep.subr.mxu0 0.0
    %142 = vmatpush1.msra.mxu0 0.0
    %143 = vmatprep.mubr.f32.mxu0 0.0
    %144 = vmatmul.mubr.f32.gmra.mrb[0].mxu0 %v65
    %v145 = vpop.f32.mrb[0].mxu0
    %v146 = vadd.f32 %v56, %v145
    %v147 = vpop.f32.mrb[0].mxu0
    %v148 = vadd.f32 %v60, %v147
    %149 = vmatprep.mubr.f32.mxu0 0.0
    %150 = vmatmul.mubr.f32.gmra.mrb[0].mxu0 %v68
    %v151 = vpop.f32.mrb[0].mxu0
    %v152 = vadd.f32 %v56, %v151
    %v153 = vpop.f32.mrb[0].mxu0
    %v154 = vadd.f32 %v60, %v153
    %155 = vmatprep.mubr.f32.mxu0 0.0
    %156 = vmatmul.mubr.f32.gmra.mrb[0].mxu0 %v71
    %v157 = vpop.f32.mrb[0].mxu0
    %v158 = vadd.f32 %v56, %v157
    %v159 = vpop.f32.mrb[0].mxu0
    %v160 = vadd.f32 %v60, %v159
    %161 = vmatprep.mubr.f32.mxu0 0.0
    %162 = vmatmul.mubr.f32.gmra.mrb[0].mxu0 %v74
    %v163 = vpop.f32.mrb[0].mxu0
    %v164 = vadd.f32 %v56, %v163
    %v165 = vpop.f32.mrb[0].mxu0
    %v166 = vadd.f32 %v60, %v165
    %167 = vmatprep.mubr.f32.mxu0 0.0
    %168 = vmatmul.mubr.f32.gmra.mrb[0].mxu0 %v77
    %v169 = vpop.f32.mrb[0].mxu0
    %v170 = vadd.f32 %v56, %v169
    %v171 = vpop.f32.mrb[0].mxu0
    %v172 = vadd.f32 %v60, %v171
    %173 = vdwg.mxu0
    %174 = vst [vmem:[#allocation2] sm:$0xff] %v146
    %175 = vst [vmem:[#allocation2 + $0x8] sm:$0xff] %v148
    %176 = vst [vmem:[#allocation2 + $0x10] sm:$0xff] %v152
    %177 = vst [vmem:[#allocation2 + $0x18] sm:$0xff] %v154
    %178 = vst [vmem:[#allocation2 + $0x20] sm:$0xff] %v158
    %179 = vst [vmem:[#allocation2 + $0x28] sm:$0xff] %v160
    %180 = vst [vmem:[#allocation2 + $0x30] sm:$0xff] %v164
    %181 = vst [vmem:[#allocation2 + $0x38] sm:$0xff] %v166
    %182 = vst [vmem:[#allocation2 + $0x40] sm:$0xff] %v170
    %183 = vst [vmem:[#allocation2 + $0x48] sm:$0xff] %v172
    %v184 = vlaneseq
    %v185 = vand.u32 %v184, 127
    %v186 = vadd.s32 %v185, 128
    %vm187 = vcmp.lt.s32.totalorder %v185, 0
    %v188 = vsub.s32 0, %v185
    %v189 = vsel %vm187, %v188, %v185
    %v190 = vshrl.u32 %v189, 7
    %v191 = vand.u32 %v189, 127
    %v192 = vsub.s32 0, %v191
    %v193 = vsel %vm187, %v192, %v191
    %vm194 = vcmp.lt.s32.totalorder %v186, 0
    %v195 = vsub.s32 0, %v186
    %v196 = vsel %vm194, %v195, %v186
    %v197 = vshrl.u32 %v196, 7
    %v198 = vand.u32 %v196, 127
    %v199 = vsub.s32 0, %v198
    %v200 = vsel %vm194, %v199, %v198
    %vm201 = vcmp.ne.s32.totalorder %v193, 0
    %vm202 = vcmp.ne.s32.totalorder %v200, 0
    %vm203 = vcmp.lt.s32.totalorder %v193, 0
    %vm204 = vcmp.lt.s32.totalorder %v200, 0
    %vm205 = vmand %vm203, %vm201
    %vm206 = vmand %vm204, %vm202
    %v207 = vadd.s32 %v193, 128
    %v208 = vadd.s32 %v200, 128
    %v209 = vsel %vm205, %v207, %v193
    %v210 = vsel %vm206, %v208, %v200
    %vm211 = vcmp.ge.s32.totalorder %v209, 64
    %vm212 = vcmp.ge.s32.totalorder %v210, 64
    %vm213 = vcmp.lt.s32.totalorder %v209, 96
    %vm214 = vcmp.lt.s32.totalorder %v210, 96
    %vm215 = vmand %vm211, %vm213
    %vm216 = vmand %vm212, %vm214
    %v217 = vld [vmem:[%s2] sm:$0xff]
    %v218 = vld [vmem:[%s2 + $0x8] sm:$0xff]
    %v219 = vld [vmem:[%s2 + $0x10] sm:$0xff]
    %v220 = vld [vmem:[%s2 + $0x18] sm:$0xff]
    %v221 = vld [vmem:[%s2 + $0x20] sm:$0xff]
    %v222 = vld [vmem:[%s2 + $0x28] sm:$0xff]
    %v223 = vld [vmem:[%s2 + $0x30] sm:$0xff]
    %v224 = vld [vmem:[%s2 + $0x38] sm:$0xff]
    %v225 = vld [vmem:[%s2 + $0x40] sm:$0xff]
    %v226 = vld [vmem:[%s2 + $0x48] sm:$0xff]
    %v227 = vld [vmem:[%s2 + $0x50] sm:$0xff]
    %v228 = vld [vmem:[%s2 + $0x58] sm:$0xff]
    %v229 = vld [vmem:[%s2 + $0x60] sm:$0xff]
    %v230 = vld [vmem:[%s2 + $0x68] sm:$0xff]
    %v231 = vld [vmem:[%s2 + $0x70] sm:$0xff]
    %v232 = vld [vmem:[%s2 + $0x78] sm:$0xff]
    %v233 = vld [vmem:[#allocation2] sm:$0x3]
    %v234 = vld [vmem:[#allocation2 + $0x48] sm:$0xc0]
    %v236 = vrot.slane %v234, 6
    %v239 = vsel %vm63, 0.0, 0
    %241 = vmatprep.subr.mxu0 %v218
    %242 = vmatpush1.msra.mxu0 %v217
    %243 = vmatprep.subr.mxu0 %v220
    %244 = vmatpush1.msra.mxu0 %v219
    %245 = vmatprep.subr.mxu0 %v222
    %246 = vmatpush1.msra.mxu0 %v221
    %247 = vmatprep.subr.mxu0 %v224
    %248 = vmatpush1.msra.mxu0 %v223
    %249 = vmatprep.subr.mxu0 %v226
    %250 = vmatpush1.msra.mxu0 %v225
    %251 = vmatprep.subr.mxu0 %v228
    %252 = vmatpush1.msra.mxu0 %v227
    %253 = vmatprep.subr.mxu0 %v230
    %254 = vmatpush1.msra.mxu0 %v229
    %255 = vmatprep.subr.mxu0 %v232
    %256 = vmatpush1.msra.mxu0 %v231
    %257 = vmatprep.subr.mxu0 0.0
    %258 = vmatpush1.msra.mxu0 0.0
    %259 = vmatprep.subr.mxu0 0.0
    %260 = vmatpush1.msra.mxu0 0.0
    %261 = vmatprep.subr.mxu0 0.0
    %262 = vmatpush1.msra.mxu0 0.0
    %263 = vmatprep.subr.mxu0 0.0
    %264 = vmatpush1.msra.mxu0 0.0
    %265 = vmatprep.subr.mxu0 0.0
    %266 = vmatpush1.msra.mxu0 0.0
    %267 = vmatprep.subr.mxu0 0.0
    %268 = vmatpush1.msra.mxu0 0.0
    %269 = vmatprep.subr.mxu0 0.0
    %270 = vmatpush1.msra.mxu0 0.0
    %271 = vmatprep.subr.mxu0 0.0
    %272 = vmatpush1.msra.mxu0 0.0
    %273 = vmatprep.subr.mxu0 0.0
    %274 = vmatpush1.msra.mxu0 0.0
    %275 = vmatprep.subr.mxu0 0.0
    %276 = vmatpush1.msra.mxu0 0.0
    %277 = vmatprep.subr.mxu0 0.0
    %278 = vmatpush1.msra.mxu0 0.0
    %279 = vmatprep.subr.mxu0 0.0
    %280 = vmatpush1.msra.mxu0 0.0
    %281 = vmatprep.subr.mxu0 0.0
    %282 = vmatpush1.msra.mxu0 0.0
    %283 = vmatprep.subr.mxu0 0.0
    %284 = vmatpush1.msra.mxu0 0.0
    %285 = vmatprep.subr.mxu0 0.0
    %286 = vmatpush1.msra.mxu0 0.0
    %287 = vmatprep.subr.mxu0 0.0
    %288 = vmatpush1.msra.mxu0 0.0
    %289 = vmatprep.subr.mxu0 0.0
    %290 = vmatpush1.msra.mxu0 0.0
    %291 = vmatprep.subr.mxu0 0.0
    %292 = vmatpush1.msra.mxu0 0.0
    %293 = vmatprep.subr.mxu0 0.0
    %294 = vmatpush1.msra.mxu0 0.0
    %295 = vmatprep.subr.mxu0 0.0
    %296 = vmatpush1.msra.mxu0 0.0
    %297 = vmatprep.subr.mxu0 0.0
    %298 = vmatpush1.msra.mxu0 0.0
    %299 = vmatprep.subr.mxu0 0.0
    %300 = vmatpush1.msra.mxu0 0.0
    %301 = vmatprep.subr.mxu0 0.0
    %302 = vmatpush1.msra.mxu0 0.0
    %303 = vmatprep.subr.mxu0 0.0
    %304 = vmatpush1.msra.mxu0 0.0
    %305 = vmatprep.mubr.f32.mxu0 0.0
    %306 = vmatmul.mubr.f32.gmra.mrb[0].mxu0 %v239
    %v307 = vpop.f32.mrb[0].mxu0
    %v308 = vadd.f32 0.0, %v307
    %v309 = vpop.f32.mrb[0].mxu0
    %v310 = vadd.f32 0.0, %v309
    %311 = vdwg.mxu0
    %v312 = vadd.f32 %v233, %v308
    %v313 = vadd.f32 %v236, %v310
    %v314 = vtanh.pop %v312
    %v315 = vtanh.pop %v313
    %v316 = vxor.u32 %v312, 2147483648
    %v317 = vxor.u32 %v313, 2147483648
    %v318 = vmul.f32 %v316, 1.442695
    %v319 = vpow.pop %v318
    %v320 = vmul.f32 %v317, 1.442695
    %v321 = vpow.pop %v320
    %v322 = vadd.f32 %v319, 1.0
    %v323 = vadd.f32 %v321, 1.0
    %v324 = vrcp.pop %v322
    %v325 = vmul.f32 1.0, %v324
    %v326 = vrcp.pop %v323
    %v327 = vmul.f32 1.0, %v326
    %v328 = vsel %vm215, %v314, %v325
    %v329 = vsel %vm216, %v315, %v327
    %331 = vrot.lane.b32.xlu0 %v329, 32
    %v332 = vpop.permute.xlu0 %331
    %vm334 = vcmask 261120
    %v335 = vsel %vm334, %v328, %v332
    %337 = vrot.lane.b32.xlu0 %v328, 96
    %v338 = vpop.permute.xlu0 %337
    %v340 = vsel %vm334, %v338, %v329
    %341 = vrot.lane.b32.xlu0 %v328, 64
    %v342 = vpop.permute.xlu0 %341
    %344 = vrot.lane.b32.xlu0 %v329, 96
    %v345 = vpop.permute.xlu0 %344
    %v347 = vsel %vm334, %v342, %v345
    %348 = vrot.lane.b32.xlu0 %v328, 32
    %v349 = vpop.permute.xlu0 %348
    %351 = vrot.lane.b32.xlu0 %v329, 64
    %v352 = vpop.permute.xlu0 %351
    %v354 = vsel %vm334, %v349, %v352
    %v355 = vmul.f32 %v340, 0.0
    %v356 = vmul.f32 %v335, %v347
    %v357 = vadd.f32 %v355, %v356
    %v358 = vtanh.pop %v357
    %v359 = vmul.f32 %v354, %v358
    %vm360 = vcmask 254976
    %361 = vst.msk [vmem:[#allocation3] sm:$0x3] %vm360, %v359
    %vm362 = vcmask 517376
    %363 = vst.msk [vmem:[#allocation3 + $0x26] sm:$0x3] %vm362, %v359
    %v364 = vld [vmem:[#allocation2] sm:$0xc]
    %v365 = vld [vmem:[#allocation2 + $0x48] sm:$0x30]
    %v367 = vrot.slane %v365, 2
    %v370 = vsel %vm63, %v359, 0
    %372 = vmatprep.subr.mxu0 %v218
    %373 = vmatpush1.msra.mxu0 %v217
    %374 = vmatprep.subr.mxu0 %v220
    %375 = vmatpush1.msra.mxu0 %v219
    %376 = vmatprep.subr.mxu0 %v222
    %377 = vmatpush1.msra.mxu0 %v221
    %378 = vmatprep.subr.mxu0 %v224
    %379 = vmatpush1.msra.mxu0 %v223
    %380 = vmatprep.subr.mxu0 %v226
    %381 = vmatpush1.msra.mxu0 %v225
    %382 = vmatprep.subr.mxu0 %v228
    %383 = vmatpush1.msra.mxu0 %v227
    %384 = vmatprep.subr.mxu0 %v230
    %385 = vmatpush1.msra.mxu0 %v229
    %386 = vmatprep.subr.mxu0 %v232
    %387 = vmatpush1.msra.mxu0 %v231
    %388 = vmatprep.subr.mxu0 0.0
    %389 = vmatpush1.msra.mxu0 0.0
    %390 = vmatprep.subr.mxu0 0.0
    %391 = vmatpush1.msra.mxu0 0.0
    %392 = vmatprep.subr.mxu0 0.0
    %393 = vmatpush1.msra.mxu0 0.0
    %394 = vmatprep.subr.mxu0 0.0
    %395 = vmatpush1.msra.mxu0 0.0
    %396 = vmatprep.subr.mxu0 0.0
    %397 = vmatpush1.msra.mxu0 0.0
    %398 = vmatprep.subr.mxu0 0.0
    %399 = vmatpush1.msra.mxu0 0.0
    %400 = vmatprep.subr.mxu0 0.0
    %401 = vmatpush1.msra.mxu0 0.0
    %402 = vmatprep.subr.mxu0 0.0
    %403 = vmatpush1.msra.mxu0 0.0
    %404 = vmatprep.subr.mxu0 0.0
    %405 = vmatpush1.msra.mxu0 0.0
    %406 = vmatprep.subr.mxu0 0.0
    %407 = vmatpush1.msra.mxu0 0.0
    %408 = vmatprep.subr.mxu0 0.0
    %409 = vmatpush1.msra.mxu0 0.0
    %410 = vmatprep.subr.mxu0 0.0
    %411 = vmatpush1.msra.mxu0 0.0
    %412 = vmatprep.subr.mxu0 0.0
    %413 = vmatpush1.msra.mxu0 0.0
    %414 = vmatprep.subr.mxu0 0.0
    %415 = vmatpush1.msra.mxu0 0.0
    %416 = vmatprep.subr.mxu0 0.0
    %417 = vmatpush1.msra.mxu0 0.0
    %418 = vmatprep.subr.mxu0 0.0
    %419 = vmatpush1.msra.mxu0 0.0
    %420 = vmatprep.subr.mxu0 0.0
    %421 = vmatpush1.msra.mxu0 0.0
    %422 = vmatprep.subr.mxu0 0.0
    %423 = vmatpush1.msra.mxu0 0.0
    %424 = vmatprep.subr.mxu0 0.0
    %425 = vmatpush1.msra.mxu0 0.0
    %426 = vmatprep.subr.mxu0 0.0
    %427 = vmatpush1.msra.mxu0 0.0
    %428 = vmatprep.subr.mxu0 0.0
    %429 = vmatpush1.msra.mxu0 0.0
    %430 = vmatprep.subr.mxu0 0.0
    %431 = vmatpush1.msra.mxu0 0.0
    %432 = vmatprep.subr.mxu0 0.0
    %433 = vmatpush1.msra.mxu0 0.0
    %434 = vmatprep.subr.mxu0 0.0
    %435 = vmatpush1.msra.mxu0 0.0
    %436 = vmatprep.mubr.f32.mxu0 0.0
    %437 = vmatmul.mubr.f32.gmra.mrb[0].mxu0 %v370
    %v438 = vpop.f32.mrb[0].mxu0
    %v439 = vadd.f32 0.0, %v438
    %v440 = vpop.f32.mrb[0].mxu0
    %v441 = vadd.f32 0.0, %v440
    %442 = vdwg.mxu0
    %v445 = vrot.slane %v439, 6
    %v446 = vrot.slane %v441, 6
    %v449 = vadd.f32 %v364, %v445
    %v450 = vadd.f32 %v367, %v446
    %v451 = vtanh.pop %v449
    %v452 = vtanh.pop %v450
    %v453 = vxor.u32 %v449, 2147483648
    %v454 = vxor.u32 %v450, 2147483648
    %v455 = vmul.f32 %v453, 1.442695
    %v456 = vpow.pop %v455
    %v457 = vmul.f32 %v454, 1.442695
    %v458 = vpow.pop %v457
    %v459 = vadd.f32 %v456, 1.0
    %v460 = vadd.f32 %v458, 1.0
    %v461 = vrcp.pop %v459
    %v462 = vmul.f32 1.0, %v461
    %v463 = vrcp.pop %v460
    %v464 = vmul.f32 1.0, %v463
    %v465 = vsel %vm215, %v451, %v462
    %v466 = vsel %vm216, %v452, %v464
    %468 = vrot.lane.b32.xlu0 %v466, 32
    %v469 = vpop.permute.xlu0 %468
    %v471 = vsel %vm334, %v465, %v469
    %473 = vrot.lane.b32.xlu0 %v465, 96
    %v474 = vpop.permute.xlu0 %473
    %v476 = vsel %vm334, %v474, %v466
    %477 = vrot.lane.b32.xlu0 %v465, 64
    %v478 = vpop.permute.xlu0 %477
    %480 = vrot.lane.b32.xlu0 %v466, 96
    %v481 = vpop.permute.xlu0 %480
    %v483 = vsel %vm334, %v478, %v481
    %484 = vrot.lane.b32.xlu0 %v465, 32
    %v485 = vpop.permute.xlu0 %484
    %487 = vrot.lane.b32.xlu0 %v466, 64
    %v488 = vpop.permute.xlu0 %487
    %v490 = vsel %vm334, %v485, %v488
    %v492 = vrot.slane %v357, 6
    %v494 = vmul.f32 %v476, %v492
    %v495 = vmul.f32 %v471, %v483
    %v496 = vadd.f32 %v494, %v495
    %v497 = vtanh.pop %v496
    %v498 = vmul.f32 %v490, %v497
    %vm499 = vcmask 257026
    %500 = vst.msk [vmem:[#allocation3] sm:$0xc] %vm499, %v498
    %vm501 = vcmask 519426
    %502 = vst.msk [vmem:[#allocation3 + $0x22] sm:$0xc] %vm501, %v498
    %v503 = vld [vmem:[#allocation2] sm:$0x30]
    %v504 = vld [vmem:[#allocation2 + $0x48] sm:$0xc]
    %v506 = vrot.slane %v504, 6
    %v509 = vrot.slane %v498, 2
    %v510 = vsel %vm63, %v509, 0
    %512 = vmatprep.subr.mxu0 %v218
    %513 = vmatpush1.msra.mxu0 %v217
    %514 = vmatprep.subr.mxu0 %v220
    %515 = vmatpush1.msra.mxu0 %v219
    %516 = vmatprep.subr.mxu0 %v222
    %517 = vmatpush1.msra.mxu0 %v221
    %518 = vmatprep.subr.mxu0 %v224
    %519 = vmatpush1.msra.mxu0 %v223
    %520 = vmatprep.subr.mxu0 %v226
    %521 = vmatpush1.msra.mxu0 %v225
    %522 = vmatprep.subr.mxu0 %v228
    %523 = vmatpush1.msra.mxu0 %v227
    %524 = vmatprep.subr.mxu0 %v230
    %525 = vmatpush1.msra.mxu0 %v229
    %526 = vmatprep.subr.mxu0 %v232
    %527 = vmatpush1.msra.mxu0 %v231
    %528 = vmatprep.subr.mxu0 0.0
    %529 = vmatpush1.msra.mxu0 0.0
    %530 = vmatprep.subr.mxu0 0.0
    %531 = vmatpush1.msra.mxu0 0.0
    %532 = vmatprep.subr.mxu0 0.0
    %533 = vmatpush1.msra.mxu0 0.0
    %534 = vmatprep.subr.mxu0 0.0
    %535 = vmatpush1.msra.mxu0 0.0
    %536 = vmatprep.subr.mxu0 0.0
    %537 = vmatpush1.msra.mxu0 0.0
    %538 = vmatprep.subr.mxu0 0.0
    %539 = vmatpush1.msra.mxu0 0.0
    %540 = vmatprep.subr.mxu0 0.0
    %541 = vmatpush1.msra.mxu0 0.0
    %542 = vmatprep.subr.mxu0 0.0
    %543 = vmatpush1.msra.mxu0 0.0
    %544 = vmatprep.subr.mxu0 0.0
    %545 = vmatpush1.msra.mxu0 0.0
    %546 = vmatprep.subr.mxu0 0.0
    %547 = vmatpush1.msra.mxu0 0.0
    %548 = vmatprep.subr.mxu0 0.0
    %549 = vmatpush1.msra.mxu0 0.0
    %550 = vmatprep.subr.mxu0 0.0
    %551 = vmatpush1.msra.mxu0 0.0
    %552 = vmatprep.subr.mxu0 0.0
    %553 = vmatpush1.msra.mxu0 0.0
    %554 = vmatprep.subr.mxu0 0.0
    %555 = vmatpush1.msra.mxu0 0.0
    %556 = vmatprep.subr.mxu0 0.0
    %557 = vmatpush1.msra.mxu0 0.0
    %558 = vmatprep.subr.mxu0 0.0
    %559 = vmatpush1.msra.mxu0 0.0
    %560 = vmatprep.subr.mxu0 0.0
    %561 = vmatpush1.msra.mxu0 0.0
    %562 = vmatprep.subr.mxu0 0.0
    %563 = vmatpush1.msra.mxu0 0.0
    %564 = vmatprep.subr.mxu0 0.0
    %565 = vmatpush1.msra.mxu0 0.0
    %566 = vmatprep.subr.mxu0 0.0
    %567 = vmatpush1.msra.mxu0 0.0
    %568 = vmatprep.subr.mxu0 0.0
    %569 = vmatpush1.msra.mxu0 0.0
    %570 = vmatprep.subr.mxu0 0.0
    %571 = vmatpush1.msra.mxu0 0.0
    %572 = vmatprep.subr.mxu0 0.0
    %573 = vmatpush1.msra.mxu0 0.0
    %574 = vmatprep.subr.mxu0 0.0
    %575 = vmatpush1.msra.mxu0 0.0
    %576 = vmatprep.mubr.f32.mxu0 0.0
    %577 = vmatmul.mubr.f32.gmra.mrb[0].mxu0 %v510
    %v578 = vpop.f32.mrb[0].mxu0
    %v579 = vadd.f32 0.0, %v578
    %v580 = vpop.f32.mrb[0].mxu0
    %v581 = vadd.f32 0.0, %v580
    %582 = vdwg.mxu0
    %v585 = vrot.slane %v579, 4
    %v586 = vrot.slane %v581, 4
    %v589 = vadd.f32 %v503, %v585
    %v590 = vadd.f32 %v506, %v586
    %v591 = vtanh.pop %v589
    %v592 = vtanh.pop %v590
    %v593 = vxor.u32 %v589, 2147483648
    %v594 = vxor.u32 %v590, 2147483648
    %v595 = vmul.f32 %v593, 1.442695
    %v596 = vpow.pop %v595
    %v597 = vmul.f32 %v594, 1.442695
    %v598 = vpow.pop %v597
    %v599 = vadd.f32 %v596, 1.0
    %v600 = vadd.f32 %v598, 1.0
    %v601 = vrcp.pop %v599
    %v602 = vmul.f32 1.0, %v601
    %v603 = vrcp.pop %v600
    %v604 = vmul.f32 1.0, %v603
    %v605 = vsel %vm215, %v591, %v602
    %v606 = vsel %vm216, %v592, %v604
    %608 = vrot.lane.b32.xlu0 %v606, 32
    %v609 = vpop.permute.xlu0 %608
    %v611 = vsel %vm334, %v605, %v609
    %613 = vrot.lane.b32.xlu0 %v605, 96
    %v614 = vpop.permute.xlu0 %613
    %v616 = vsel %vm334, %v614, %v606
    %617 = vrot.lane.b32.xlu0 %v605, 64
    %v618 = vpop.permute.xlu0 %617
    %620 = vrot.lane.b32.xlu0 %v606, 96
    %v621 = vpop.permute.xlu0 %620
    %v623 = vsel %vm334, %v618, %v621
    %624 = vrot.lane.b32.xlu0 %v605, 32
    %v625 = vpop.permute.xlu0 %624
    %627 = vrot.lane.b32.xlu0 %v606, 64
    %v628 = vpop.permute.xlu0 %627
    %v630 = vsel %vm334, %v625, %v628
    %v632 = vrot.slane %v496, 6
    %v634 = vmul.f32 %v616, %v632
    %v635 = vmul.f32 %v611, %v623
    %v636 = vadd.f32 %v634, %v635
    %v637 = vtanh.pop %v636
    %v638 = vmul.f32 %v630, %v637
    %vm639 = vcmask 259076
    %640 = vst.msk [vmem:[#allocation3] sm:$0x30] %vm639, %v638
    %vm641 = vcmask 521476
    %642 = vst.msk [vmem:[#allocation3 + $0x1e] sm:$0x30] %vm641, %v638
    %v643 = vld [vmem:[#allocation2] sm:$0xc0]
    %v644 = vld [vmem:[#allocation2 + $0x48] sm:$0x3]
    %v646 = vrot.slane %v644, 2
    %v649 = vrot.slane %v638, 4
    %v650 = vsel %vm63, %v649, 0
    %652 = vmatprep.subr.mxu0 %v218
    %653 = vmatpush1.msra.mxu0 %v217
    %654 = vmatprep.subr.mxu0 %v220
    %655 = vmatpush1.msra.mxu0 %v219
    %656 = vmatprep.subr.mxu0 %v222
    %657 = vmatpush1.msra.mxu0 %v221
    %658 = vmatprep.subr.mxu0 %v224
    %659 = vmatpush1.msra.mxu0 %v223
    %660 = vmatprep.subr.mxu0 %v226
    %661 = vmatpush1.msra.mxu0 %v225
    %662 = vmatprep.subr.mxu0 %v228
    %663 = vmatpush1.msra.mxu0 %v227
    %664 = vmatprep.subr.mxu0 %v230
    %665 = vmatpush1.msra.mxu0 %v229
    %666 = vmatprep.subr.mxu0 %v232
    %667 = vmatpush1.msra.mxu0 %v231
    %668 = vmatprep.subr.mxu0 0.0
    %669 = vmatpush1.msra.mxu0 0.0
    %670 = vmatprep.subr.mxu0 0.0
    %671 = vmatpush1.msra.mxu0 0.0
    %672 = vmatprep.subr.mxu0 0.0
    %673 = vmatpush1.msra.mxu0 0.0
    %674 = vmatprep.subr.mxu0 0.0
    %675 = vmatpush1.msra.mxu0 0.0
    %676 = vmatprep.subr.mxu0 0.0
    %677 = vmatpush1.msra.mxu0 0.0
    %678 = vmatprep.subr.mxu0 0.0
    %679 = vmatpush1.msra.mxu0 0.0
    %680 = vmatprep.subr.mxu0 0.0
    %681 = vmatpush1.msra.mxu0 0.0
    %682 = vmatprep.subr.mxu0 0.0
    %683 = vmatpush1.msra.mxu0 0.0
    %684 = vmatprep.subr.mxu0 0.0
    %685 = vmatpush1.msra.mxu0 0.0
    %686 = vmatprep.subr.mxu0 0.0
    %687 = vmatpush1.msra.mxu0 0.0
    %688 = vmatprep.subr.mxu0 0.0
    %689 = vmatpush1.msra.mxu0 0.0
    %690 = vmatprep.subr.mxu0 0.0
    %691 = vmatpush1.msra.mxu0 0.0
    %692 = vmatprep.subr.mxu0 0.0
    %693 = vmatpush1.msra.mxu0 0.0
    %694 = vmatprep.subr.mxu0 0.0
    %695 = vmatpush1.msra.mxu0 0.0
    %696 = vmatprep.subr.mxu0 0.0
    %697 = vmatpush1.msra.mxu0 0.0
    %698 = vmatprep.subr.mxu0 0.0
    %699 = vmatpush1.msra.mxu0 0.0
    %700 = vmatprep.subr.mxu0 0.0
    %701 = vmatpush1.msra.mxu0 0.0
    %702 = vmatprep.subr.mxu0 0.0
    %703 = vmatpush1.msra.mxu0 0.0
    %704 = vmatprep.subr.mxu0 0.0
    %705 = vmatpush1.msra.mxu0 0.0
    %706 = vmatprep.subr.mxu0 0.0
    %707 = vmatpush1.msra.mxu0 0.0
    %708 = vmatprep.subr.mxu0 0.0
    %709 = vmatpush1.msra.mxu0 0.0
    %710 = vmatprep.subr.mxu0 0.0
    %711 = vmatpush1.msra.mxu0 0.0
    %712 = vmatprep.subr.mxu0 0.0
    %713 = vmatpush1.msra.mxu0 0.0
    %714 = vmatprep.subr.mxu0 0.0
    %715 = vmatpush1.msra.mxu0 0.0
    %716 = vmatprep.mubr.f32.mxu0 0.0
    %717 = vmatmul.mubr.f32.gmra.mrb[0].mxu0 %v650
    %v718 = vpop.f32.mrb[0].mxu0
    %v719 = vadd.f32 0.0, %v718
    %v720 = vpop.f32.mrb[0].mxu0
    %v721 = vadd.f32 0.0, %v720
    %722 = vdwg.mxu0
    %v725 = vrot.slane %v719, 2
    %v726 = vrot.slane %v721, 2
    %v729 = vadd.f32 %v643, %v725
    %v730 = vadd.f32 %v646, %v726
    %v731 = vtanh.pop %v729
    %v732 = vtanh.pop %v730
    %v733 = vxor.u32 %v729, 2147483648
    %v734 = vxor.u32 %v730, 2147483648
    %v735 = vmul.f32 %v733, 1.442695
    %v736 = vpow.pop %v735
    %v737 = vmul.f32 %v734, 1.442695
    %v738 = vpow.pop %v737
    %v739 = vadd.f32 %v736, 1.0
    %v740 = vadd.f32 %v738, 1.0
    %v741 = vrcp.pop %v739
    %v742 = vmul.f32 1.0, %v741
    %v743 = vrcp.pop %v740
    %v744 = vmul.f32 1.0, %v743
    %v745 = vsel %vm215, %v731, %v742
    %v746 = vsel %vm216, %v732, %v744
    %748 = vrot.lane.b32.xlu0 %v746, 32
    %v749 = vpop.permute.xlu0 %748
    %v751 = vsel %vm334, %v745, %v749
    %753 = vrot.lane.b32.xlu0 %v745, 96
    %v754 = vpop.permute.xlu0 %753
    %v756 = vsel %vm334, %v754, %v746
    %757 = vrot.lane.b32.xlu0 %v745, 64
    %v758 = vpop.permute.xlu0 %757
    %760 = vrot.lane.b32.xlu0 %v746, 96
    %v761 = vpop.permute.xlu0 %760
    %v763 = vsel %vm334, %v758, %v761
    %764 = vrot.lane.b32.xlu0 %v745, 32
    %v765 = vpop.permute.xlu0 %764
    %767 = vrot.lane.b32.xlu0 %v746, 64
    %v768 = vpop.permute.xlu0 %767
    %v770 = vsel %vm334, %v765, %v768
    %v772 = vrot.slane %v636, 6
    %v774 = vmul.f32 %v756, %v772
    %v775 = vmul.f32 %v751, %v763
    %v776 = vadd.f32 %v774, %v775
    %v777 = vtanh.pop %v776
    %v778 = vmul.f32 %v770, %v777
    %vm779 = vcmask 261126
    %780 = vst.msk [vmem:[#allocation3] sm:$0xc0] %vm779, %v778
    %vm781 = vcmask 523526
    %782 = vst.msk [vmem:[#allocation3 + $0x1a] sm:$0xc0] %vm781, %v778
    %v783 = vld [vmem:[#allocation2 + $0x10] sm:$0x3]
    %v784 = vld [vmem:[#allocation2 + $0x38] sm:$0xc0]
    %v786 = vrot.slane %v784, 6
    %v789 = vrot.slane %v778, 6
    %v790 = vsel %vm63, %v789, 0
    %792 = vmatprep.subr.mxu0 %v218
    %793 = vmatpush1.msra.mxu0 %v217
    %794 = vmatprep.subr.mxu0 %v220
    %795 = vmatpush1.msra.mxu0 %v219
    %796 = vmatprep.subr.mxu0 %v222
    %797 = vmatpush1.msra.mxu0 %v221
    %798 = vmatprep.subr.mxu0 %v224
    %799 = vmatpush1.msra.mxu0 %v223
    %800 = vmatprep.subr.mxu0 %v226
    %801 = vmatpush1.msra.mxu0 %v225
    %802 = vmatprep.subr.mxu0 %v228
    %803 = vmatpush1.msra.mxu0 %v227
    %804 = vmatprep.subr.mxu0 %v230
    %805 = vmatpush1.msra.mxu0 %v229
    %806 = vmatprep.subr.mxu0 %v232
    %807 = vmatpush1.msra.mxu0 %v231
    %808 = vmatprep.subr.mxu0 0.0
    %809 = vmatpush1.msra.mxu0 0.0
    %810 = vmatprep.subr.mxu0 0.0
    %811 = vmatpush1.msra.mxu0 0.0
    %812 = vmatprep.subr.mxu0 0.0
    %813 = vmatpush1.msra.mxu0 0.0
    %814 = vmatprep.subr.mxu0 0.0
    %815 = vmatpush1.msra.mxu0 0.0
    %816 = vmatprep.subr.mxu0 0.0
    %817 = vmatpush1.msra.mxu0 0.0
    %818 = vmatprep.subr.mxu0 0.0
    %819 = vmatpush1.msra.mxu0 0.0
    %820 = vmatprep.subr.mxu0 0.0
    %821 = vmatpush1.msra.mxu0 0.0
    %822 = vmatprep.subr.mxu0 0.0
    %823 = vmatpush1.msra.mxu0 0.0
    %824 = vmatprep.subr.mxu0 0.0
    %825 = vmatpush1.msra.mxu0 0.0
    %826 = vmatprep.subr.mxu0 0.0
    %827 = vmatpush1.msra.mxu0 0.0
    %828 = vmatprep.subr.mxu0 0.0
    %829 = vmatpush1.msra.mxu0 0.0
    %830 = vmatprep.subr.mxu0 0.0
    %831 = vmatpush1.msra.mxu0 0.0
    %832 = vmatprep.subr.mxu0 0.0
    %833 = vmatpush1.msra.mxu0 0.0
    %834 = vmatprep.subr.mxu0 0.0
    %835 = vmatpush1.msra.mxu0 0.0
    %836 = vmatprep.subr.mxu0 0.0
    %837 = vmatpush1.msra.mxu0 0.0
    %838 = vmatprep.subr.mxu0 0.0
    %839 = vmatpush1.msra.mxu0 0.0
    %840 = vmatprep.subr.mxu0 0.0
    %841 = vmatpush1.msra.mxu0 0.0
    %842 = vmatprep.subr.mxu0 0.0
    %843 = vmatpush1.msra.mxu0 0.0
    %844 = vmatprep.subr.mxu0 0.0
    %845 = vmatpush1.msra.mxu0 0.0
    %846 = vmatprep.subr.mxu0 0.0
    %847 = vmatpush1.msra.mxu0 0.0
    %848 = vmatprep.subr.mxu0 0.0
    %849 = vmatpush1.msra.mxu0 0.0
    %850 = vmatprep.subr.mxu0 0.0
    %851 = vmatpush1.msra.mxu0 0.0
    %852 = vmatprep.subr.mxu0 0.0
    %853 = vmatpush1.msra.mxu0 0.0
    %854 = vmatprep.subr.mxu0 0.0
    %855 = vmatpush1.msra.mxu0 0.0
    %856 = vmatprep.mubr.f32.mxu0 0.0
    %857 = vmatmul.mubr.f32.gmra.mrb[0].mxu0 %v790
    %v858 = vpop.f32.mrb[0].mxu0
    %v859 = vadd.f32 0.0, %v858
    %v860 = vpop.f32.mrb[0].mxu0
    %v861 = vadd.f32 0.0, %v860
    %862 = vdwg.mxu0
    %v863 = vadd.f32 %v783, %v859
    %v864 = vadd.f32 %v786, %v861
    %v865 = vtanh.pop %v863
    %v866 = vtanh.pop %v864
    %v867 = vxor.u32 %v863, 2147483648
    %v868 = vxor.u32 %v864, 2147483648
    %v869 = vmul.f32 %v867, 1.442695
    %v870 = vpow.pop %v869
    %v871 = vmul.f32 %v868, 1.442695
    %v872 = vpow.pop %v871
    %v873 = vadd.f32 %v870, 1.0
    %v874 = vadd.f32 %v872, 1.0
    %v875 = vrcp.pop %v873
    %v876 = vmul.f32 1.0, %v875
    %v877 = vrcp.pop %v874
    %v878 = vmul.f32 1.0, %v877
    %v879 = vsel %vm215, %v865, %v876
    %v880 = vsel %vm216, %v866, %v878
    %882 = vrot.lane.b32.xlu0 %v880, 32
    %v883 = vpop.permute.xlu0 %882
    %v885 = vsel %vm334, %v879, %v883
    %887 = vrot.lane.b32.xlu0 %v879, 96
    %v888 = vpop.permute.xlu0 %887
    %v890 = vsel %vm334, %v888, %v880
    %891 = vrot.lane.b32.xlu0 %v879, 64
    %v892 = vpop.permute.xlu0 %891
    %894 = vrot.lane.b32.xlu0 %v880, 96
    %v895 = vpop.permute.xlu0 %894
    %v897 = vsel %vm334, %v892, %v895
    %898 = vrot.lane.b32.xlu0 %v879, 32
    %v899 = vpop.permute.xlu0 %898
    %901 = vrot.lane.b32.xlu0 %v880, 64
    %v902 = vpop.permute.xlu0 %901
    %v904 = vsel %vm334, %v899, %v902
    %v906 = vrot.slane %v776, 6
    %v908 = vmul.f32 %v890, %v906
    %v909 = vmul.f32 %v885, %v897
    %v910 = vadd.f32 %v908, %v909
    %v911 = vtanh.pop %v910
    %v912 = vmul.f32 %v904, %v911
    %913 = vst.msk [vmem:[#allocation3 + $0x8] sm:$0x3] %vm360, %v912
    %914 = vst.msk [vmem:[#allocation3 + $0x1e] sm:$0x3] %vm362, %v912
    %v915 = vld [vmem:[#allocation2 + $0x10] sm:$0xc]
    %v916 = vld [vmem:[#allocation2 + $0x38] sm:$0x30]
    %v918 = vrot.slane %v916, 2
    %v921 = vsel %vm63, %v912, 0
    %923 = vmatprep.subr.mxu0 %v218
    %924 = vmatpush1.msra.mxu0 %v217
    %925 = vmatprep.subr.mxu0 %v220
    %926 = vmatpush1.msra.mxu0 %v219
    %927 = vmatprep.subr.mxu0 %v222
    %928 = vmatpush1.msra.mxu0 %v221
    %929 = vmatprep.subr.mxu0 %v224
    %930 = vmatpush1.msra.mxu0 %v223
    %931 = vmatprep.subr.mxu0 %v226
    %932 = vmatpush1.msra.mxu0 %v225
    %933 = vmatprep.subr.mxu0 %v228
    %934 = vmatpush1.msra.mxu0 %v227
    %935 = vmatprep.subr.mxu0 %v230
    %936 = vmatpush1.msra.mxu0 %v229
    %937 = vmatprep.subr.mxu0 %v232
    %938 = vmatpush1.msra.mxu0 %v231
    %939 = vmatprep.subr.mxu0 0.0
    %940 = vmatpush1.msra.mxu0 0.0
    %941 = vmatprep.subr.mxu0 0.0
    %942 = vmatpush1.msra.mxu0 0.0
    %943 = vmatprep.subr.mxu0 0.0
    %944 = vmatpush1.msra.mxu0 0.0
    %945 = vmatprep.subr.mxu0 0.0
    %946 = vmatpush1.msra.mxu0 0.0
    %947 = vmatprep.subr.mxu0 0.0
    %948 = vmatpush1.msra.mxu0 0.0
    %949 = vmatprep.subr.mxu0 0.0
    %950 = vmatpush1.msra.mxu0 0.0
    %951 = vmatprep.subr.mxu0 0.0
    %952 = vmatpush1.msra.mxu0 0.0
    %953 = vmatprep.subr.mxu0 0.0
    %954 = vmatpush1.msra.mxu0 0.0
    %955 = vmatprep.subr.mxu0 0.0
    %956 = vmatpush1.msra.mxu0 0.0
    %957 = vmatprep.subr.mxu0 0.0
    %958 = vmatpush1.msra.mxu0 0.0
    %959 = vmatprep.subr.mxu0 0.0
    %960 = vmatpush1.msra.mxu0 0.0
    %961 = vmatprep.subr.mxu0 0.0
    %962 = vmatpush1.msra.mxu0 0.0
    %963 = vmatprep.subr.mxu0 0.0
    %964 = vmatpush1.msra.mxu0 0.0
    %965 = vmatprep.subr.mxu0 0.0
    %966 = vmatpush1.msra.mxu0 0.0
    %967 = vmatprep.subr.mxu0 0.0
    %968 = vmatpush1.msra.mxu0 0.0
    %969 = vmatprep.subr.mxu0 0.0
    %970 = vmatpush1.msra.mxu0 0.0
    %971 = vmatprep.subr.mxu0 0.0
    %972 = vmatpush1.msra.mxu0 0.0
    %973 = vmatprep.subr.mxu0 0.0
    %974 = vmatpush1.msra.mxu0 0.0
    %975 = vmatprep.subr.mxu0 0.0
    %976 = vmatpush1.msra.mxu0 0.0
    %977 = vmatprep.subr.mxu0 0.0
    %978 = vmatpush1.msra.mxu0 0.0
    %979 = vmatprep.subr.mxu0 0.0
    %980 = vmatpush1.msra.mxu0 0.0
    %981 = vmatprep.subr.mxu0 0.0
    %982 = vmatpush1.msra.mxu0 0.0
    %983 = vmatprep.subr.mxu0 0.0
    %984 = vmatpush1.msra.mxu0 0.0
    %985 = vmatprep.subr.mxu0 0.0
    %986 = vmatpush1.msra.mxu0 0.0
    %987 = vmatprep.mubr.f32.mxu0 0.0
    %988 = vmatmul.mubr.f32.gmra.mrb[0].mxu0 %v921
    %v989 = vpop.f32.mrb[0].mxu0
    %v990 = vadd.f32 0.0, %v989
    %v991 = vpop.f32.mrb[0].mxu0
    %v992 = vadd.f32 0.0, %v991
    %993 = vdwg.mxu0
    %v996 = vrot.slane %v990, 6
    %v997 = vrot.slane %v992, 6
    %v1000 = vadd.f32 %v915, %v996
    %v1001 = vadd.f32 %v918, %v997
    %v1002 = vtanh.pop %v1000
    %v1003 = vtanh.pop %v1001
    %v1004 = vxor.u32 %v1000, 2147483648
    %v1005 = vxor.u32 %v1001, 2147483648
    %v1006 = vmul.f32 %v1004, 1.442695
    %v1007 = vpow.pop %v1006
    %v1008 = vmul.f32 %v1005, 1.442695
    %v1009 = vpow.pop %v1008
    %v1010 = vadd.f32 %v1007, 1.0
    %v1011 = vadd.f32 %v1009, 1.0
    %v1012 = vrcp.pop %v1010
    %v1013 = vmul.f32 1.0, %v1012
    %v1014 = vrcp.pop %v1011
    %v1015 = vmul.f32 1.0, %v1014
    %v1016 = vsel %vm215, %v1002, %v1013
    %v1017 = vsel %vm216, %v1003, %v1015
    %1019 = vrot.lane.b32.xlu0 %v1017, 32
    %v1020 = vpop.permute.xlu0 %1019
    %v1022 = vsel %vm334, %v1016, %v1020
    %1024 = vrot.lane.b32.xlu0 %v1016, 96
    %v1025 = vpop.permute.xlu0 %1024
    %v1027 = vsel %vm334, %v1025, %v1017
    %1028 = vrot.lane.b32.xlu0 %v1016, 64
    %v1029 = vpop.permute.xlu0 %1028
    %1031 = vrot.lane.b32.xlu0 %v1017, 96
    %v1032 = vpop.permute.xlu0 %1031
    %v1034 = vsel %vm334, %v1029, %v1032
    %1035 = vrot.lane.b32.xlu0 %v1016, 32
    %v1036 = vpop.permute.xlu0 %1035
    %1038 = vrot.lane.b32.xlu0 %v1017, 64
    %v1039 = vpop.permute.xlu0 %1038
    %v1041 = vsel %vm334, %v1036, %v1039
    %v1043 = vrot.slane %v910, 6
    %v1045 = vmul.f32 %v1027, %v1043
    %v1046 = vmul.f32 %v1022, %v1034
    %v1047 = vadd.f32 %v1045, %v1046
    %v1048 = vtanh.pop %v1047
    %v1049 = vmul.f32 %v1041, %v1048
    %1050 = vst.msk [vmem:[#allocation3 + $0x8] sm:$0xc] %vm499, %v1049
    %1051 = vst.msk [vmem:[#allocation3 + $0x1a] sm:$0xc] %vm501, %v1049
    %v1052 = vld [vmem:[#allocation2 + $0x10] sm:$0x30]
    %v1053 = vld [vmem:[#allocation2 + $0x38] sm:$0xc]
    %v1055 = vrot.slane %v1053, 6
    %v1058 = vrot.slane %v1049, 2
    %v1059 = vsel %vm63, %v1058, 0
    %1061 = vmatprep.subr.mxu0 %v218
    %1062 = vmatpush1.msra.mxu0 %v217
    %1063 = vmatprep.subr.mxu0 %v220
    %1064 = vmatpush1.msra.mxu0 %v219
    %1065 = vmatprep.subr.mxu0 %v222
    %1066 = vmatpush1.msra.mxu0 %v221
    %1067 = vmatprep.subr.mxu0 %v224
    %1068 = vmatpush1.msra.mxu0 %v223
    %1069 = vmatprep.subr.mxu0 %v226
    %1070 = vmatpush1.msra.mxu0 %v225
    %1071 = vmatprep.subr.mxu0 %v228
    %1072 = vmatpush1.msra.mxu0 %v227
    %1073 = vmatprep.subr.mxu0 %v230
    %1074 = vmatpush1.msra.mxu0 %v229
    %1075 = vmatprep.subr.mxu0 %v232
    %1076 = vmatpush1.msra.mxu0 %v231
    %1077 = vmatprep.subr.mxu0 0.0
    %1078 = vmatpush1.msra.mxu0 0.0
    %1079 = vmatprep.subr.mxu0 0.0
    %1080 = vmatpush1.msra.mxu0 0.0
    %1081 = vmatprep.subr.mxu0 0.0
    %1082 = vmatpush1.msra.mxu0 0.0
    %1083 = vmatprep.subr.mxu0 0.0
    %1084 = vmatpush1.msra.mxu0 0.0
    %1085 = vmatprep.subr.mxu0 0.0
    %1086 = vmatpush1.msra.mxu0 0.0
    %1087 = vmatprep.subr.mxu0 0.0
    %1088 = vmatpush1.msra.mxu0 0.0
    %1089 = vmatprep.subr.mxu0 0.0
    %1090 = vmatpush1.msra.mxu0 0.0
    %1091 = vmatprep.subr.mxu0 0.0
    %1092 = vmatpush1.msra.mxu0 0.0
    %1093 = vmatprep.subr.mxu0 0.0
    %1094 = vmatpush1.msra.mxu0 0.0
    %1095 = vmatprep.subr.mxu0 0.0
    %1096 = vmatpush1.msra.mxu0 0.0
    %1097 = vmatprep.subr.mxu0 0.0
    %1098 = vmatpush1.msra.mxu0 0.0
    %1099 = vmatprep.subr.mxu0 0.0
    %1100 = vmatpush1.msra.mxu0 0.0
    %1101 = vmatprep.subr.mxu0 0.0
    %1102 = vmatpush1.msra.mxu0 0.0
    %1103 = vmatprep.subr.mxu0 0.0
    %1104 = vmatpush1.msra.mxu0 0.0
    %1105 = vmatprep.subr.mxu0 0.0
    %1106 = vmatpush1.msra.mxu0 0.0
    %1107 = vmatprep.subr.mxu0 0.0
    %1108 = vmatpush1.msra.mxu0 0.0
    %1109 = vmatprep.subr.mxu0 0.0
    %1110 = vmatpush1.msra.mxu0 0.0
    %1111 = vmatprep.subr.mxu0 0.0
    %1112 = vmatpush1.msra.mxu0 0.0
    %1113 = vmatprep.subr.mxu0 0.0
    %1114 = vmatpush1.msra.mxu0 0.0
    %1115 = vmatprep.subr.mxu0 0.0
    %1116 = vmatpush1.msra.mxu0 0.0
    %1117 = vmatprep.subr.mxu0 0.0
    %1118 = vmatpush1.msra.mxu0 0.0
    %1119 = vmatprep.subr.mxu0 0.0
    %1120 = vmatpush1.msra.mxu0 0.0
    %1121 = vmatprep.subr.mxu0 0.0
    %1122 = vmatpush1.msra.mxu0 0.0
    %1123 = vmatprep.subr.mxu0 0.0
    %1124 = vmatpush1.msra.mxu0 0.0
    %1125 = vmatprep.mubr.f32.mxu0 0.0
    %1126 = vmatmul.mubr.f32.gmra.mrb[0].mxu0 %v1059
    %v1127 = vpop.f32.mrb[0].mxu0
    %v1128 = vadd.f32 0.0, %v1127
    %v1129 = vpop.f32.mrb[0].mxu0
    %v1130 = vadd.f32 0.0, %v1129
    %1131 = vdwg.mxu0
    %v1134 = vrot.slane %v1128, 4
    %v1135 = vrot.slane %v1130, 4
    %v1138 = vadd.f32 %v1052, %v1134
    %v1139 = vadd.f32 %v1055, %v1135
    %v1140 = vtanh.pop %v1138
    %v1141 = vtanh.pop %v1139
    %v1142 = vxor.u32 %v1138, 2147483648
    %v1143 = vxor.u32 %v1139, 2147483648
    %v1144 = vmul.f32 %v1142, 1.442695
    %v1145 = vpow.pop %v1144
    %v1146 = vmul.f32 %v1143, 1.442695
    %v1147 = vpow.pop %v1146
    %v1148 = vadd.f32 %v1145, 1.0
    %v1149 = vadd.f32 %v1147, 1.0
    %v1150 = vrcp.pop %v1148
    %v1151 = vmul.f32 1.0, %v1150
    %v1152 = vrcp.pop %v1149
    %v1153 = vmul.f32 1.0, %v1152
    %v1154 = vsel %vm215, %v1140, %v1151
    %v1155 = vsel %vm216, %v1141, %v1153
    %1157 = vrot.lane.b32.xlu0 %v1155, 32
    %v1158 = vpop.permute.xlu0 %1157
    %v1160 = vsel %vm334, %v1154, %v1158
    %1162 = vrot.lane.b32.xlu0 %v1154, 96
    %v1163 = vpop.permute.xlu0 %1162
    %v1165 = vsel %vm334, %v1163, %v1155
    %1166 = vrot.lane.b32.xlu0 %v1154, 64
    %v1167 = vpop.permute.xlu0 %1166
    %1169 = vrot.lane.b32.xlu0 %v1155, 96
    %v1170 = vpop.permute.xlu0 %1169
    %v1172 = vsel %vm334, %v1167, %v1170
    %1173 = vrot.lane.b32.xlu0 %v1154, 32
    %v1174 = vpop.permute.xlu0 %1173
    %1176 = vrot.lane.b32.xlu0 %v1155, 64
    %v1177 = vpop.permute.xlu0 %1176
    %v1179 = vsel %vm334, %v1174, %v1177
    %v1181 = vrot.slane %v1047, 6
    %v1183 = vmul.f32 %v1165, %v1181
    %v1184 = vmul.f32 %v1160, %v1172
    %v1185 = vadd.f32 %v1183, %v1184
    %v1186 = vtanh.pop %v1185
    %v1187 = vmul.f32 %v1179, %v1186
    %1188 = vst.msk [vmem:[#allocation3 + $0x8] sm:$0x30] %vm639, %v1187
    %1189 = vst.msk [vmem:[#allocation3 + $0x16] sm:$0x30] %vm641, %v1187
    %v1190 = vld [vmem:[#allocation2 + $0x10] sm:$0xc0]
    %v1191 = vld [vmem:[#allocation2 + $0x38] sm:$0x3]
    %v1193 = vrot.slane %v1191, 2
    %v1196 = vrot.slane %v1187, 4
    %v1197 = vsel %vm63, %v1196, 0
    %1199 = vmatprep.subr.mxu0 %v218
    %1200 = vmatpush1.msra.mxu0 %v217
    %1201 = vmatprep.subr.mxu0 %v220
    %1202 = vmatpush1.msra.mxu0 %v219
    %1203 = vmatprep.subr.mxu0 %v222
    %1204 = vmatpush1.msra.mxu0 %v221
    %1205 = vmatprep.subr.mxu0 %v224
    %1206 = vmatpush1.msra.mxu0 %v223
    %1207 = vmatprep.subr.mxu0 %v226
    %1208 = vmatpush1.msra.mxu0 %v225
    %1209 = vmatprep.subr.mxu0 %v228
    %1210 = vmatpush1.msra.mxu0 %v227
    %1211 = vmatprep.subr.mxu0 %v230
    %1212 = vmatpush1.msra.mxu0 %v229
    %1213 = vmatprep.subr.mxu0 %v232
    %1214 = vmatpush1.msra.mxu0 %v231
    %1215 = vmatprep.subr.mxu0 0.0
    %1216 = vmatpush1.msra.mxu0 0.0
    %1217 = vmatprep.subr.mxu0 0.0
    %1218 = vmatpush1.msra.mxu0 0.0
    %1219 = vmatprep.subr.mxu0 0.0
    %1220 = vmatpush1.msra.mxu0 0.0
    %1221 = vmatprep.subr.mxu0 0.0
    %1222 = vmatpush1.msra.mxu0 0.0
    %1223 = vmatprep.subr.mxu0 0.0
    %1224 = vmatpush1.msra.mxu0 0.0
    %1225 = vmatprep.subr.mxu0 0.0
    %1226 = vmatpush1.msra.mxu0 0.0
    %1227 = vmatprep.subr.mxu0 0.0
    %1228 = vmatpush1.msra.mxu0 0.0
    %1229 = vmatprep.subr.mxu0 0.0
    %1230 = vmatpush1.msra.mxu0 0.0
    %1231 = vmatprep.subr.mxu0 0.0
    %1232 = vmatpush1.msra.mxu0 0.0
    %1233 = vmatprep.subr.mxu0 0.0
    %1234 = vmatpush1.msra.mxu0 0.0
    %1235 = vmatprep.subr.mxu0 0.0
    %1236 = vmatpush1.msra.mxu0 0.0
    %1237 = vmatprep.subr.mxu0 0.0
    %1238 = vmatpush1.msra.mxu0 0.0
    %1239 = vmatprep.subr.mxu0 0.0
    %1240 = vmatpush1.msra.mxu0 0.0
    %1241 = vmatprep.subr.mxu0 0.0
    %1242 = vmatpush1.msra.mxu0 0.0
    %1243 = vmatprep.subr.mxu0 0.0
    %1244 = vmatpush1.msra.mxu0 0.0
    %1245 = vmatprep.subr.mxu0 0.0
    %1246 = vmatpush1.msra.mxu0 0.0
    %1247 = vmatprep.subr.mxu0 0.0
    %1248 = vmatpush1.msra.mxu0 0.0
    %1249 = vmatprep.subr.mxu0 0.0
    %1250 = vmatpush1.msra.mxu0 0.0
    %1251 = vmatprep.subr.mxu0 0.0
    %1252 = vmatpush1.msra.mxu0 0.0
    %1253 = vmatprep.subr.mxu0 0.0
    %1254 = vmatpush1.msra.mxu0 0.0
    %1255 = vmatprep.subr.mxu0 0.0
    %1256 = vmatpush1.msra.mxu0 0.0
    %1257 = vmatprep.subr.mxu0 0.0
    %1258 = vmatpush1.msra.mxu0 0.0
    %1259 = vmatprep.subr.mxu0 0.0
    %1260 = vmatpush1.msra.mxu0 0.0
    %1261 = vmatprep.subr.mxu0 0.0
    %1262 = vmatpush1.msra.mxu0 0.0
    %1263 = vmatprep.mubr.f32.mxu0 0.0
    %1264 = vmatmul.mubr.f32.gmra.mrb[0].mxu0 %v1197
    %v1265 = vpop.f32.mrb[0].mxu0
    %v1266 = vadd.f32 0.0, %v1265
    %v1267 = vpop.f32.mrb[0].mxu0
    %v1268 = vadd.f32 0.0, %v1267
    %1269 = vdwg.mxu0
    %v1272 = vrot.slane %v1266, 2
    %v1273 = vrot.slane %v1268, 2
    %v1276 = vadd.f32 %v1190, %v1272
    %v1277 = vadd.f32 %v1193, %v1273
    %v1278 = vtanh.pop %v1276
    %v1279 = vtanh.pop %v1277
    %v1280 = vxor.u32 %v1276, 2147483648
    %v1281 = vxor.u32 %v1277, 2147483648
    %v1282 = vmul.f32 %v1280, 1.442695
    %v1283 = vpow.pop %v1282
    %v1284 = vmul.f32 %v1281, 1.442695
    %v1285 = vpow.pop %v1284
    %v1286 = vadd.f32 %v1283, 1.0
    %v1287 = vadd.f32 %v1285, 1.0
    %v1288 = vrcp.pop %v1286
    %v1289 = vmul.f32 1.0, %v1288
    %v1290 = vrcp.pop %v1287
    %v1291 = vmul.f32 1.0, %v1290
    %v1292 = vsel %vm215, %v1278, %v1289
    %v1293 = vsel %vm216, %v1279, %v1291
    %1295 = vrot.lane.b32.xlu0 %v1293, 32
    %v1296 = vpop.permute.xlu0 %1295
    %v1298 = vsel %vm334, %v1292, %v1296
    %1300 = vrot.lane.b32.xlu0 %v1292, 96
    %v1301 = vpop.permute.xlu0 %1300
    %v1303 = vsel %vm334, %v1301, %v1293
    %1304 = vrot.lane.b32.xlu0 %v1292, 64
    %v1305 = vpop.permute.xlu0 %1304
    %1307 = vrot.lane.b32.xlu0 %v1293, 96
    %v1308 = vpop.permute.xlu0 %1307
    %v1310 = vsel %vm334, %v1305, %v1308
    %1311 = vrot.lane.b32.xlu0 %v1292, 32
    %v1312 = vpop.permute.xlu0 %1311
    %1314 = vrot.lane.b32.xlu0 %v1293, 64
    %v1315 = vpop.permute.xlu0 %1314
    %v1317 = vsel %vm334, %v1312, %v1315
    %v1319 = vrot.slane %v1185, 6
    %v1321 = vmul.f32 %v1303, %v1319
    %v1322 = vmul.f32 %v1298, %v1310
    %v1323 = vadd.f32 %v1321, %v1322
    %v1324 = vtanh.pop %v1323
    %v1325 = vmul.f32 %v1317, %v1324
    %1326 = vst.msk [vmem:[#allocation3 + $0x8] sm:$0xc0] %vm779, %v1325
    %1327 = vst.msk [vmem:[#allocation3 + $0x12] sm:$0xc0] %vm781, %v1325
    %v1328 = vld [vmem:[#allocation2 + $0x20] sm:$0x3]
    %v1329 = vld [vmem:[#allocation2 + $0x28] sm:$0xc0]
    %v1331 = vrot.slane %v1329, 6
    %v1334 = vrot.slane %v1325, 6
    %v1335 = vsel %vm63, %v1334, 0
    %1337 = vmatprep.subr.mxu0 %v218
    %1338 = vmatpush1.msra.mxu0 %v217
    %1339 = vmatprep.subr.mxu0 %v220
    %1340 = vmatpush1.msra.mxu0 %v219
    %1341 = vmatprep.subr.mxu0 %v222
    %1342 = vmatpush1.msra.mxu0 %v221
    %1343 = vmatprep.subr.mxu0 %v224
    %1344 = vmatpush1.msra.mxu0 %v223
    %1345 = vmatprep.subr.mxu0 %v226
    %1346 = vmatpush1.msra.mxu0 %v225
    %1347 = vmatprep.subr.mxu0 %v228
    %1348 = vmatpush1.msra.mxu0 %v227
    %1349 = vmatprep.subr.mxu0 %v230
    %1350 = vmatpush1.msra.mxu0 %v229
    %1351 = vmatprep.subr.mxu0 %v232
    %1352 = vmatpush1.msra.mxu0 %v231
    %1353 = vmatprep.subr.mxu0 0.0
    %1354 = vmatpush1.msra.mxu0 0.0
    %1355 = vmatprep.subr.mxu0 0.0
    %1356 = vmatpush1.msra.mxu0 0.0
    %1357 = vmatprep.subr.mxu0 0.0
    %1358 = vmatpush1.msra.mxu0 0.0
    %1359 = vmatprep.subr.mxu0 0.0
    %1360 = vmatpush1.msra.mxu0 0.0
    %1361 = vmatprep.subr.mxu0 0.0
    %1362 = vmatpush1.msra.mxu0 0.0
    %1363 = vmatprep.subr.mxu0 0.0
    %1364 = vmatpush1.msra.mxu0 0.0
    %1365 = vmatprep.subr.mxu0 0.0
    %1366 = vmatpush1.msra.mxu0 0.0
    %1367 = vmatprep.subr.mxu0 0.0
    %1368 = vmatpush1.msra.mxu0 0.0
    %1369 = vmatprep.subr.mxu0 0.0
    %1370 = vmatpush1.msra.mxu0 0.0
    %1371 = vmatprep.subr.mxu0 0.0
    %1372 = vmatpush1.msra.mxu0 0.0
    %1373 = vmatprep.subr.mxu0 0.0
    %1374 = vmatpush1.msra.mxu0 0.0
    %1375 = vmatprep.subr.mxu0 0.0
    %1376 = vmatpush1.msra.mxu0 0.0
    %1377 = vmatprep.subr.mxu0 0.0
    %1378 = vmatpush1.msra.mxu0 0.0
    %1379 = vmatprep.subr.mxu0 0.0
    %1380 = vmatpush1.msra.mxu0 0.0
    %1381 = vmatprep.subr.mxu0 0.0
    %1382 = vmatpush1.msra.mxu0 0.0
    %1383 = vmatprep.subr.mxu0 0.0
    %1384 = vmatpush1.msra.mxu0 0.0
    %1385 = vmatprep.subr.mxu0 0.0
    %1386 = vmatpush1.msra.mxu0 0.0
    %1387 = vmatprep.subr.mxu0 0.0
    %1388 = vmatpush1.msra.mxu0 0.0
    %1389 = vmatprep.subr.mxu0 0.0
    %1390 = vmatpush1.msra.mxu0 0.0
    %1391 = vmatprep.subr.mxu0 0.0
    %1392 = vmatpush1.msra.mxu0 0.0
    %1393 = vmatprep.subr.mxu0 0.0
    %1394 = vmatpush1.msra.mxu0 0.0
    %1395 = vmatprep.subr.mxu0 0.0
    %1396 = vmatpush1.msra.mxu0 0.0
    %1397 = vmatprep.subr.mxu0 0.0
    %1398 = vmatpush1.msra.mxu0 0.0
    %1399 = vmatprep.subr.mxu0 0.0
    %1400 = vmatpush1.msra.mxu0 0.0
    %1401 = vmatprep.mubr.f32.mxu0 0.0
    %1402 = vmatmul.mubr.f32.gmra.mrb[0].mxu0 %v1335
    %v1403 = vpop.f32.mrb[0].mxu0
    %v1404 = vadd.f32 0.0, %v1403
    %v1405 = vpop.f32.mrb[0].mxu0
    %v1406 = vadd.f32 0.0, %v1405
    %1407 = vdwg.mxu0
    %v1408 = vadd.f32 %v1328, %v1404
    %v1409 = vadd.f32 %v1331, %v1406
    %v1410 = vtanh.pop %v1408
    %v1411 = vtanh.pop %v1409
    %v1412 = vxor.u32 %v1408, 2147483648
    %v1413 = vxor.u32 %v1409, 2147483648
    %v1414 = vmul.f32 %v1412, 1.442695
    %v1415 = vpow.pop %v1414
    %v1416 = vmul.f32 %v1413, 1.442695
    %v1417 = vpow.pop %v1416
    %v1418 = vadd.f32 %v1415, 1.0
    %v1419 = vadd.f32 %v1417, 1.0
    %v1420 = vrcp.pop %v1418
    %v1421 = vmul.f32 1.0, %v1420
    %v1422 = vrcp.pop %v1419
    %v1423 = vmul.f32 1.0, %v1422
    %v1424 = vsel %vm215, %v1410, %v1421
    %v1425 = vsel %vm216, %v1411, %v1423
    %1427 = vrot.lane.b32.xlu0 %v1425, 32
    %v1428 = vpop.permute.xlu0 %1427
    %v1430 = vsel %vm334, %v1424, %v1428
    %1432 = vrot.lane.b32.xlu0 %v1424, 96
    %v1433 = vpop.permute.xlu0 %1432
    %v1435 = vsel %vm334, %v1433, %v1425
    %1436 = vrot.lane.b32.xlu0 %v1424, 64
    %v1437 = vpop.permute.xlu0 %1436
    %1439 = vrot.lane.b32.xlu0 %v1425, 96
    %v1440 = vpop.permute.xlu0 %1439
    %v1442 = vsel %vm334, %v1437, %v1440
    %1443 = vrot.lane.b32.xlu0 %v1424, 32
    %v1444 = vpop.permute.xlu0 %1443
    %1446 = vrot.lane.b32.xlu0 %v1425, 64
    %v1447 = vpop.permute.xlu0 %1446
    %v1449 = vsel %vm334, %v1444, %v1447
    %v1451 = vrot.slane %v1323, 6
    %v1453 = vmul.f32 %v1435, %v1451
    %v1454 = vmul.f32 %v1430, %v1442
    %v1455 = vadd.f32 %v1453, %v1454
    %v1456 = vtanh.pop %v1455
    %v1457 = vmul.f32 %v1449, %v1456
    %1458 = vst.msk [vmem:[#allocation3 + $0x10] sm:$0x3] %vm360, %v1457
    %1459 = vst.msk [vmem:[#allocation3 + $0x16] sm:$0x3] %vm362, %v1457
    %v1460 = vld [vmem:[#allocation2 + $0x20] sm:$0xc]
    %v1461 = vld [vmem:[#allocation2 + $0x28] sm:$0x30]
    %v1463 = vrot.slane %v1461, 2
    %v1466 = vsel %vm63, %v1457, 0
    %1468 = vmatprep.subr.mxu0 %v218
    %1469 = vmatpush1.msra.mxu0 %v217
    %1470 = vmatprep.subr.mxu0 %v220
    %1471 = vmatpush1.msra.mxu0 %v219
    %1472 = vmatprep.subr.mxu0 %v222
    %1473 = vmatpush1.msra.mxu0 %v221
    %1474 = vmatprep.subr.mxu0 %v224
    %1475 = vmatpush1.msra.mxu0 %v223
    %1476 = vmatprep.subr.mxu0 %v226
    %1477 = vmatpush1.msra.mxu0 %v225
    %1478 = vmatprep.subr.mxu0 %v228
    %1479 = vmatpush1.msra.mxu0 %v227
    %1480 = vmatprep.subr.mxu0 %v230
    %1481 = vmatpush1.msra.mxu0 %v229
    %1482 = vmatprep.subr.mxu0 %v232
    %1483 = vmatpush1.msra.mxu0 %v231
    %1484 = vmatprep.subr.mxu0 0.0
    %1485 = vmatpush1.msra.mxu0 0.0
    %1486 = vmatprep.subr.mxu0 0.0
    %1487 = vmatpush1.msra.mxu0 0.0
    %1488 = vmatprep.subr.mxu0 0.0
    %1489 = vmatpush1.msra.mxu0 0.0
    %1490 = vmatprep.subr.mxu0 0.0
    %1491 = vmatpush1.msra.mxu0 0.0
    %1492 = vmatprep.subr.mxu0 0.0
    %1493 = vmatpush1.msra.mxu0 0.0
    %1494 = vmatprep.subr.mxu0 0.0
    %1495 = vmatpush1.msra.mxu0 0.0
    %1496 = vmatprep.subr.mxu0 0.0
    %1497 = vmatpush1.msra.mxu0 0.0
    %1498 = vmatprep.subr.mxu0 0.0
    %1499 = vmatpush1.msra.mxu0 0.0
    %1500 = vmatprep.subr.mxu0 0.0
    %1501 = vmatpush1.msra.mxu0 0.0
    %1502 = vmatprep.subr.mxu0 0.0
    %1503 = vmatpush1.msra.mxu0 0.0
    %1504 = vmatprep.subr.mxu0 0.0
    %1505 = vmatpush1.msra.mxu0 0.0
    %1506 = vmatprep.subr.mxu0 0.0
    %1507 = vmatpush1.msra.mxu0 0.0
    %1508 = vmatprep.subr.mxu0 0.0
    %1509 = vmatpush1.msra.mxu0 0.0
    %1510 = vmatprep.subr.mxu0 0.0
    %1511 = vmatpush1.msra.mxu0 0.0
    %1512 = vmatprep.subr.mxu0 0.0
    %1513 = vmatpush1.msra.mxu0 0.0
    %1514 = vmatprep.subr.mxu0 0.0
    %1515 = vmatpush1.msra.mxu0 0.0
    %1516 = vmatprep.subr.mxu0 0.0
    %1517 = vmatpush1.msra.mxu0 0.0
    %1518 = vmatprep.subr.mxu0 0.0
    %1519 = vmatpush1.msra.mxu0 0.0
    %1520 = vmatprep.subr.mxu0 0.0
    %1521 = vmatpush1.msra.mxu0 0.0
    %1522 = vmatprep.subr.mxu0 0.0
    %1523 = vmatpush1.msra.mxu0 0.0
    %1524 = vmatprep.subr.mxu0 0.0
    %1525 = vmatpush1.msra.mxu0 0.0
    %1526 = vmatprep.subr.mxu0 0.0
    %1527 = vmatpush1.msra.mxu0 0.0
    %1528 = vmatprep.subr.mxu0 0.0
    %1529 = vmatpush1.msra.mxu0 0.0
    %1530 = vmatprep.subr.mxu0 0.0
    %1531 = vmatpush1.msra.mxu0 0.0
    %1532 = vmatprep.mubr.f32.mxu0 0.0
    %1533 = vmatmul.mubr.f32.gmra.mrb[0].mxu0 %v1466
    %v1534 = vpop.f32.mrb[0].mxu0
    %v1535 = vadd.f32 0.0, %v1534
    %v1536 = vpop.f32.mrb[0].mxu0
    %v1537 = vadd.f32 0.0, %v1536
    %1538 = vdwg.mxu0
    %v1541 = vrot.slane %v1535, 6
    %v1542 = vrot.slane %v1537, 6
    %v1545 = vadd.f32 %v1460, %v1541
    %v1546 = vadd.f32 %v1463, %v1542
    %v1547 = vtanh.pop %v1545
    %v1548 = vtanh.pop %v1546
    %v1549 = vxor.u32 %v1545, 2147483648
    %v1550 = vxor.u32 %v1546, 2147483648
    %v1551 = vmul.f32 %v1549, 1.442695
    %v1552 = vpow.pop %v1551
    %v1553 = vmul.f32 %v1550, 1.442695
    %v1554 = vpow.pop %v1553
    %v1555 = vadd.f32 %v1552, 1.0
    %v1556 = vadd.f32 %v1554, 1.0
    %v1557 = vrcp.pop %v1555
    %v1558 = vmul.f32 1.0, %v1557
    %v1559 = vrcp.pop %v1556
    %v1560 = vmul.f32 1.0, %v1559
    %v1561 = vsel %vm215, %v1547, %v1558
    %v1562 = vsel %vm216, %v1548, %v1560
    %1564 = vrot.lane.b32.xlu0 %v1562, 32
    %v1565 = vpop.permute.xlu0 %1564
    %v1567 = vsel %vm334, %v1561, %v1565
    %1569 = vrot.lane.b32.xlu0 %v1561, 96
    %v1570 = vpop.permute.xlu0 %1569
    %v1572 = vsel %vm334, %v1570, %v1562
    %1573 = vrot.lane.b32.xlu0 %v1561, 64
    %v1574 = vpop.permute.xlu0 %1573
    %1576 = vrot.lane.b32.xlu0 %v1562, 96
    %v1577 = vpop.permute.xlu0 %1576
    %v1579 = vsel %vm334, %v1574, %v1577
    %1580 = vrot.lane.b32.xlu0 %v1561, 32
    %v1581 = vpop.permute.xlu0 %1580
    %1583 = vrot.lane.b32.xlu0 %v1562, 64
    %v1584 = vpop.permute.xlu0 %1583
    %v1586 = vsel %vm334, %v1581, %v1584
    %v1588 = vrot.slane %v1455, 6
    %v1590 = vmul.f32 %v1572, %v1588
    %v1591 = vmul.f32 %v1567, %v1579
    %v1592 = vadd.f32 %v1590, %v1591
    %v1593 = vtanh.pop %v1592
    %v1594 = vmul.f32 %v1586, %v1593
    %1595 = vst.msk [vmem:[#allocation3 + $0x10] sm:$0xc] %vm499, %v1594
    %1596 = vst.msk [vmem:[#allocation3 + $0x12] sm:$0xc] %vm501, %v1594
    %v1597 = vld [vmem:[#allocation2 + $0x20] sm:$0x30]
    %v1598 = vld [vmem:[#allocation2 + $0x28] sm:$0xc]
    %v1600 = vrot.slane %v1598, 6
    %v1603 = vrot.slane %v1594, 2
    %v1604 = vsel %vm63, %v1603, 0
    %1606 = vmatprep.subr.mxu0 %v218
    %1607 = vmatpush1.msra.mxu0 %v217
    %1608 = vmatprep.subr.mxu0 %v220
    %1609 = vmatpush1.msra.mxu0 %v219
    %1610 = vmatprep.subr.mxu0 %v222
    %1611 = vmatpush1.msra.mxu0 %v221
    %1612 = vmatprep.subr.mxu0 %v224
    %1613 = vmatpush1.msra.mxu0 %v223
    %1614 = vmatprep.subr.mxu0 %v226
    %1615 = vmatpush1.msra.mxu0 %v225
    %1616 = vmatprep.subr.mxu0 %v228
    %1617 = vmatpush1.msra.mxu0 %v227
    %1618 = vmatprep.subr.mxu0 %v230
    %1619 = vmatpush1.msra.mxu0 %v229
    %1620 = vmatprep.subr.mxu0 %v232
    %1621 = vmatpush1.msra.mxu0 %v231
    %1622 = vmatprep.subr.mxu0 0.0
    %1623 = vmatpush1.msra.mxu0 0.0
    %1624 = vmatprep.subr.mxu0 0.0
    %1625 = vmatpush1.msra.mxu0 0.0
    %1626 = vmatprep.subr.mxu0 0.0
    %1627 = vmatpush1.msra.mxu0 0.0
    %1628 = vmatprep.subr.mxu0 0.0
    %1629 = vmatpush1.msra.mxu0 0.0
    %1630 = vmatprep.subr.mxu0 0.0
    %1631 = vmatpush1.msra.mxu0 0.0
    %1632 = vmatprep.subr.mxu0 0.0
    %1633 = vmatpush1.msra.mxu0 0.0
    %1634 = vmatprep.subr.mxu0 0.0
    %1635 = vmatpush1.msra.mxu0 0.0
    %1636 = vmatprep.subr.mxu0 0.0
    %1637 = vmatpush1.msra.mxu0 0.0
    %1638 = vmatprep.subr.mxu0 0.0
    %1639 = vmatpush1.msra.mxu0 0.0
    %1640 = vmatprep.subr.mxu0 0.0
    %1641 = vmatpush1.msra.mxu0 0.0
    %1642 = vmatprep.subr.mxu0 0.0
    %1643 = vmatpush1.msra.mxu0 0.0
    %1644 = vmatprep.subr.mxu0 0.0
    %1645 = vmatpush1.msra.mxu0 0.0
    %1646 = vmatprep.subr.mxu0 0.0
    %1647 = vmatpush1.msra.mxu0 0.0
    %1648 = vmatprep.subr.mxu0 0.0
    %1649 = vmatpush1.msra.mxu0 0.0
    %1650 = vmatprep.subr.mxu0 0.0
    %1651 = vmatpush1.msra.mxu0 0.0
    %1652 = vmatprep.subr.mxu0 0.0
    %1653 = vmatpush1.msra.mxu0 0.0
    %1654 = vmatprep.subr.mxu0 0.0
    %1655 = vmatpush1.msra.mxu0 0.0
    %1656 = vmatprep.subr.mxu0 0.0
    %1657 = vmatpush1.msra.mxu0 0.0
    %1658 = vmatprep.subr.mxu0 0.0
    %1659 = vmatpush1.msra.mxu0 0.0
    %1660 = vmatprep.subr.mxu0 0.0
    %1661 = vmatpush1.msra.mxu0 0.0
    %1662 = vmatprep.subr.mxu0 0.0
    %1663 = vmatpush1.msra.mxu0 0.0
    %1664 = vmatprep.subr.mxu0 0.0
    %1665 = vmatpush1.msra.mxu0 0.0
    %1666 = vmatprep.subr.mxu0 0.0
    %1667 = vmatpush1.msra.mxu0 0.0
    %1668 = vmatprep.subr.mxu0 0.0
    %1669 = vmatpush1.msra.mxu0 0.0
    %1670 = vmatprep.mubr.f32.mxu0 0.0
    %1671 = vmatmul.mubr.f32.gmra.mrb[0].mxu0 %v1604
    %v1672 = vpop.f32.mrb[0].mxu0
    %v1673 = vadd.f32 0.0, %v1672
    %v1674 = vpop.f32.mrb[0].mxu0
    %v1675 = vadd.f32 0.0, %v1674
    %1676 = vdwg.mxu0
    %v1679 = vrot.slane %v1673, 4
    %v1680 = vrot.slane %v1675, 4
    %v1683 = vadd.f32 %v1597, %v1679
    %v1684 = vadd.f32 %v1600, %v1680
    %v1685 = vtanh.pop %v1683
    %v1686 = vtanh.pop %v1684
    %v1687 = vxor.u32 %v1683, 2147483648
    %v1688 = vxor.u32 %v1684, 2147483648
    %v1689 = vmul.f32 %v1687, 1.442695
    %v1690 = vpow.pop %v1689
    %v1691 = vmul.f32 %v1688, 1.442695
    %v1692 = vpow.pop %v1691
    %v1693 = vadd.f32 %v1690, 1.0
    %v1694 = vadd.f32 %v1692, 1.0
    %v1695 = vrcp.pop %v1693
    %v1696 = vmul.f32 1.0, %v1695
    %v1697 = vrcp.pop %v1694
    %v1698 = vmul.f32 1.0, %v1697
    %v1699 = vsel %vm215, %v1685, %v1696
    %v1700 = vsel %vm216, %v1686, %v1698
    %1702 = vrot.lane.b32.xlu0 %v1700, 32
    %v1703 = vpop.permute.xlu0 %1702
    %v1705 = vsel %vm334, %v1699, %v1703
    %1707 = vrot.lane.b32.xlu0 %v1699, 96
    %v1708 = vpop.permute.xlu0 %1707
    %v1710 = vsel %vm334, %v1708, %v1700
    %1711 = vrot.lane.b32.xlu0 %v1699, 64
    %v1712 = vpop.permute.xlu0 %1711
    %1714 = vrot.lane.b32.xlu0 %v1700, 96
    %v1715 = vpop.permute.xlu0 %1714
    %v1717 = vsel %vm334, %v1712, %v1715
    %1718 = vrot.lane.b32.xlu0 %v1699, 32
    %v1719 = vpop.permute.xlu0 %1718
    %1721 = vrot.lane.b32.xlu0 %v1700, 64
    %v1722 = vpop.permute.xlu0 %1721
    %v1724 = vsel %vm334, %v1719, %v1722
    %v1726 = vrot.slane %v1592, 6
    %v1728 = vmul.f32 %v1710, %v1726
    %v1729 = vmul.f32 %v1705, %v1717
    %v1730 = vadd.f32 %v1728, %v1729
    %v1731 = vtanh.pop %v1730
    %v1732 = vmul.f32 %v1724, %v1731
    %1733 = vst.msk [vmem:[#allocation3 + $0x10] sm:$0x30] %vm639, %v1732
    %1734 = vst.msk [vmem:[#allocation3 + $0xe] sm:$0x30] %vm641, %v1732
    %v1735 = vld [vmem:[#allocation2 + $0x20] sm:$0xc0]
    %v1736 = vld [vmem:[#allocation2 + $0x28] sm:$0x3]
    %v1738 = vrot.slane %v1736, 2
    %v1741 = vrot.slane %v1732, 4
    %v1742 = vsel %vm63, %v1741, 0
    %1744 = vmatprep.subr.mxu0 %v218
    %1745 = vmatpush1.msra.mxu0 %v217
    %1746 = vmatprep.subr.mxu0 %v220
    %1747 = vmatpush1.msra.mxu0 %v219
    %1748 = vmatprep.subr.mxu0 %v222
    %1749 = vmatpush1.msra.mxu0 %v221
    %1750 = vmatprep.subr.mxu0 %v224
    %1751 = vmatpush1.msra.mxu0 %v223
    %1752 = vmatprep.subr.mxu0 %v226
    %1753 = vmatpush1.msra.mxu0 %v225
    %1754 = vmatprep.subr.mxu0 %v228
    %1755 = vmatpush1.msra.mxu0 %v227
    %1756 = vmatprep.subr.mxu0 %v230
    %1757 = vmatpush1.msra.mxu0 %v229
    %1758 = vmatprep.subr.mxu0 %v232
    %1759 = vmatpush1.msra.mxu0 %v231
    %1760 = vmatprep.subr.mxu0 0.0
    %1761 = vmatpush1.msra.mxu0 0.0
    %1762 = vmatprep.subr.mxu0 0.0
    %1763 = vmatpush1.msra.mxu0 0.0
    %1764 = vmatprep.subr.mxu0 0.0
    %1765 = vmatpush1.msra.mxu0 0.0
    %1766 = vmatprep.subr.mxu0 0.0
    %1767 = vmatpush1.msra.mxu0 0.0
    %1768 = vmatprep.subr.mxu0 0.0
    %1769 = vmatpush1.msra.mxu0 0.0
    %1770 = vmatprep.subr.mxu0 0.0
    %1771 = vmatpush1.msra.mxu0 0.0
    %1772 = vmatprep.subr.mxu0 0.0
    %1773 = vmatpush1.msra.mxu0 0.0
    %1774 = vmatprep.subr.mxu0 0.0
    %1775 = vmatpush1.msra.mxu0 0.0
    %1776 = vmatprep.subr.mxu0 0.0
    %1777 = vmatpush1.msra.mxu0 0.0
    %1778 = vmatprep.subr.mxu0 0.0
    %1779 = vmatpush1.msra.mxu0 0.0
    %1780 = vmatprep.subr.mxu0 0.0
    %1781 = vmatpush1.msra.mxu0 0.0
    %1782 = vmatprep.subr.mxu0 0.0
    %1783 = vmatpush1.msra.mxu0 0.0
    %1784 = vmatprep.subr.mxu0 0.0
    %1785 = vmatpush1.msra.mxu0 0.0
    %1786 = vmatprep.subr.mxu0 0.0
    %1787 = vmatpush1.msra.mxu0 0.0
    %1788 = vmatprep.subr.mxu0 0.0
    %1789 = vmatpush1.msra.mxu0 0.0
    %1790 = vmatprep.subr.mxu0 0.0
    %1791 = vmatpush1.msra.mxu0 0.0
    %1792 = vmatprep.subr.mxu0 0.0
    %1793 = vmatpush1.msra.mxu0 0.0
    %1794 = vmatprep.subr.mxu0 0.0
    %1795 = vmatpush1.msra.mxu0 0.0
    %1796 = vmatprep.subr.mxu0 0.0
    %1797 = vmatpush1.msra.mxu0 0.0
    %1798 = vmatprep.subr.mxu0 0.0
    %1799 = vmatpush1.msra.mxu0 0.0
    %1800 = vmatprep.subr.mxu0 0.0
    %1801 = vmatpush1.msra.mxu0 0.0
    %1802 = vmatprep.subr.mxu0 0.0
    %1803 = vmatpush1.msra.mxu0 0.0
    %1804 = vmatprep.subr.mxu0 0.0
    %1805 = vmatpush1.msra.mxu0 0.0
    %1806 = vmatprep.subr.mxu0 0.0
    %1807 = vmatpush1.msra.mxu0 0.0
    %1808 = vmatprep.mubr.f32.mxu0 0.0
    %1809 = vmatmul.mubr.f32.gmra.mrb[0].mxu0 %v1742
    %v1810 = vpop.f32.mrb[0].mxu0
    %v1811 = vadd.f32 0.0, %v1810
    %v1812 = vpop.f32.mrb[0].mxu0
    %v1813 = vadd.f32 0.0, %v1812
    %1814 = vdwg.mxu0
    %v1817 = vrot.slane %v1811, 2
    %v1818 = vrot.slane %v1813, 2
    %v1821 = vadd.f32 %v1735, %v1817
    %v1822 = vadd.f32 %v1738, %v1818
    %v1823 = vtanh.pop %v1821
    %v1824 = vtanh.pop %v1822
    %v1825 = vxor.u32 %v1821, 2147483648
    %v1826 = vxor.u32 %v1822, 2147483648
    %v1827 = vmul.f32 %v1825, 1.442695
    %v1828 = vpow.pop %v1827
    %v1829 = vmul.f32 %v1826, 1.442695
    %v1830 = vpow.pop %v1829
    %v1831 = vadd.f32 %v1828, 1.0
    %v1832 = vadd.f32 %v1830, 1.0
    %v1833 = vrcp.pop %v1831
    %v1834 = vmul.f32 1.0, %v1833
    %v1835 = vrcp.pop %v1832
    %v1836 = vmul.f32 1.0, %v1835
    %v1837 = vsel %vm215, %v1823, %v1834
    %v1838 = vsel %vm216, %v1824, %v1836
    %1840 = vrot.lane.b32.xlu0 %v1838, 32
    %v1841 = vpop.permute.xlu0 %1840
    %v1843 = vsel %vm334, %v1837, %v1841
    %1845 = vrot.lane.b32.xlu0 %v1837, 96
    %v1846 = vpop.permute.xlu0 %1845
    %v1848 = vsel %vm334, %v1846, %v1838
    %1849 = vrot.lane.b32.xlu0 %v1837, 64
    %v1850 = vpop.permute.xlu0 %1849
    %1852 = vrot.lane.b32.xlu0 %v1838, 96
    %v1853 = vpop.permute.xlu0 %1852
    %v1855 = vsel %vm334, %v1850, %v1853
    %1856 = vrot.lane.b32.xlu0 %v1837, 32
    %v1857 = vpop.permute.xlu0 %1856
    %1859 = vrot.lane.b32.xlu0 %v1838, 64
    %v1860 = vpop.permute.xlu0 %1859
    %v1862 = vsel %vm334, %v1857, %v1860
    %v1864 = vrot.slane %v1730, 6
    %v1866 = vmul.f32 %v1848, %v1864
    %v1867 = vmul.f32 %v1843, %v1855
    %v1868 = vadd.f32 %v1866, %v1867
    %v1869 = vtanh.pop %v1868
    %v1870 = vmul.f32 %v1862, %v1869
    %1871 = vst.msk [vmem:[#allocation3 + $0x10] sm:$0xc0] %vm779, %v1870
    %1872 = vst.msk [vmem:[#allocation3 + $0xa] sm:$0xc0] %vm781, %v1870
    %v1873 = vld [vmem:[#allocation2 + $0x30] sm:$0x3]
    %v1874 = vld [vmem:[#allocation2 + $0x18] sm:$0xc0]
    %v1876 = vrot.slane %v1874, 6
    %v1879 = vrot.slane %v1870, 6
    %v1880 = vsel %vm63, %v1879, 0
    %1882 = vmatprep.subr.mxu0 %v218
    %1883 = vmatpush1.msra.mxu0 %v217
    %1884 = vmatprep.subr.mxu0 %v220
    %1885 = vmatpush1.msra.mxu0 %v219
    %1886 = vmatprep.subr.mxu0 %v222
    %1887 = vmatpush1.msra.mxu0 %v221
    %1888 = vmatprep.subr.mxu0 %v224
    %1889 = vmatpush1.msra.mxu0 %v223
    %1890 = vmatprep.subr.mxu0 %v226
    %1891 = vmatpush1.msra.mxu0 %v225
    %1892 = vmatprep.subr.mxu0 %v228
    %1893 = vmatpush1.msra.mxu0 %v227
    %1894 = vmatprep.subr.mxu0 %v230
    %1895 = vmatpush1.msra.mxu0 %v229
    %1896 = vmatprep.subr.mxu0 %v232
    %1897 = vmatpush1.msra.mxu0 %v231
    %1898 = vmatprep.subr.mxu0 0.0
    %1899 = vmatpush1.msra.mxu0 0.0
    %1900 = vmatprep.subr.mxu0 0.0
    %1901 = vmatpush1.msra.mxu0 0.0
    %1902 = vmatprep.subr.mxu0 0.0
    %1903 = vmatpush1.msra.mxu0 0.0
    %1904 = vmatprep.subr.mxu0 0.0
    %1905 = vmatpush1.msra.mxu0 0.0
    %1906 = vmatprep.subr.mxu0 0.0
    %1907 = vmatpush1.msra.mxu0 0.0
    %1908 = vmatprep.subr.mxu0 0.0
    %1909 = vmatpush1.msra.mxu0 0.0
    %1910 = vmatprep.subr.mxu0 0.0
    %1911 = vmatpush1.msra.mxu0 0.0
    %1912 = vmatprep.subr.mxu0 0.0
    %1913 = vmatpush1.msra.mxu0 0.0
    %1914 = vmatprep.subr.mxu0 0.0
    %1915 = vmatpush1.msra.mxu0 0.0
    %1916 = vmatprep.subr.mxu0 0.0
    %1917 = vmatpush1.msra.mxu0 0.0
    %1918 = vmatprep.subr.mxu0 0.0
    %1919 = vmatpush1.msra.mxu0 0.0
    %1920 = vmatprep.subr.mxu0 0.0
    %1921 = vmatpush1.msra.mxu0 0.0
    %1922 = vmatprep.subr.mxu0 0.0
    %1923 = vmatpush1.msra.mxu0 0.0
    %1924 = vmatprep.subr.mxu0 0.0
    %1925 = vmatpush1.msra.mxu0 0.0
    %1926 = vmatprep.subr.mxu0 0.0
    %1927 = vmatpush1.msra.mxu0 0.0
    %1928 = vmatprep.subr.mxu0 0.0
    %1929 = vmatpush1.msra.mxu0 0.0
    %1930 = vmatprep.subr.mxu0 0.0
    %1931 = vmatpush1.msra.mxu0 0.0
    %1932 = vmatprep.subr.mxu0 0.0
    %1933 = vmatpush1.msra.mxu0 0.0
    %1934 = vmatprep.subr.mxu0 0.0
    %1935 = vmatpush1.msra.mxu0 0.0
    %1936 = vmatprep.subr.mxu0 0.0
    %1937 = vmatpush1.msra.mxu0 0.0
    %1938 = vmatprep.subr.mxu0 0.0
    %1939 = vmatpush1.msra.mxu0 0.0
    %1940 = vmatprep.subr.mxu0 0.0
    %1941 = vmatpush1.msra.mxu0 0.0
    %1942 = vmatprep.subr.mxu0 0.0
    %1943 = vmatpush1.msra.mxu0 0.0
    %1944 = vmatprep.subr.mxu0 0.0
    %1945 = vmatpush1.msra.mxu0 0.0
    %1946 = vmatprep.mubr.f32.mxu0 0.0
    %1947 = vmatmul.mubr.f32.gmra.mrb[0].mxu0 %v1880
    %v1948 = vpop.f32.mrb[0].mxu0
    %v1949 = vadd.f32 0.0, %v1948
    %v1950 = vpop.f32.mrb[0].mxu0
    %v1951 = vadd.f32 0.0, %v1950
    %1952 = vdwg.mxu0
    %v1953 = vadd.f32 %v1873, %v1949
    %v1954 = vadd.f32 %v1876, %v1951
    %v1955 = vtanh.pop %v1953
    %v1956 = vtanh.pop %v1954
    %v1957 = vxor.u32 %v1953, 2147483648
    %v1958 = vxor.u32 %v1954, 2147483648
    %v1959 = vmul.f32 %v1957, 1.442695
    %v1960 = vpow.pop %v1959
    %v1961 = vmul.f32 %v1958, 1.442695
    %v1962 = vpow.pop %v1961
    %v1963 = vadd.f32 %v1960, 1.0
    %v1964 = vadd.f32 %v1962, 1.0
    %v1965 = vrcp.pop %v1963
    %v1966 = vmul.f32 1.0, %v1965
    %v1967 = vrcp.pop %v1964
    %v1968 = vmul.f32 1.0, %v1967
    %v1969 = vsel %vm215, %v1955, %v1966
    %v1970 = vsel %vm216, %v1956, %v1968
    %1972 = vrot.lane.b32.xlu0 %v1970, 32
    %v1973 = vpop.permute.xlu0 %1972
    %v1975 = vsel %vm334, %v1969, %v1973
    %1977 = vrot.lane.b32.xlu0 %v1969, 96
    %v1978 = vpop.permute.xlu0 %1977
    %v1980 = vsel %vm334, %v1978, %v1970
    %1981 = vrot.lane.b32.xlu0 %v1969, 64
    %v1982 = vpop.permute.xlu0 %1981
    %1984 = vrot.lane.b32.xlu0 %v1970, 96
    %v1985 = vpop.permute.xlu0 %1984
    %v1987 = vsel %vm334, %v1982, %v1985
    %1988 = vrot.lane.b32.xlu0 %v1969, 32
    %v1989 = vpop.permute.xlu0 %1988
    %1991 = vrot.lane.b32.xlu0 %v1970, 64
    %v1992 = vpop.permute.xlu0 %1991
    %v1994 = vsel %vm334, %v1989, %v1992
    %v1996 = vrot.slane %v1868, 6
    %v1998 = vmul.f32 %v1980, %v1996
    %v1999 = vmul.f32 %v1975, %v1987
    %v2000 = vadd.f32 %v1998, %v1999
    %v2001 = vtanh.pop %v2000
    %v2002 = vmul.f32 %v1994, %v2001
    %2003 = vst.msk [vmem:[#allocation3 + $0x18] sm:$0x3] %vm360, %v2002
    %2004 = vst.msk [vmem:[#allocation3 + $0xe] sm:$0x3] %vm362, %v2002
    %v2005 = vld [vmem:[#allocation2 + $0x30] sm:$0xc]
    %v2006 = vld [vmem:[#allocation2 + $0x18] sm:$0x30]
    %v2008 = vrot.slane %v2006, 2
    %v2011 = vsel %vm63, %v2002, 0
    %2013 = vmatprep.subr.mxu0 %v218
    %2014 = vmatpush1.msra.mxu0 %v217
    %2015 = vmatprep.subr.mxu0 %v220
    %2016 = vmatpush1.msra.mxu0 %v219
    %2017 = vmatprep.subr.mxu0 %v222
    %2018 = vmatpush1.msra.mxu0 %v221
    %2019 = vmatprep.subr.mxu0 %v224
    %2020 = vmatpush1.msra.mxu0 %v223
    %2021 = vmatprep.subr.mxu0 %v226
    %2022 = vmatpush1.msra.mxu0 %v225
    %2023 = vmatprep.subr.mxu0 %v228
    %2024 = vmatpush1.msra.mxu0 %v227
    %2025 = vmatprep.subr.mxu0 %v230
    %2026 = vmatpush1.msra.mxu0 %v229
    %2027 = vmatprep.subr.mxu0 %v232
    %2028 = vmatpush1.msra.mxu0 %v231
    %2029 = vmatprep.subr.mxu0 0.0
    %2030 = vmatpush1.msra.mxu0 0.0
    %2031 = vmatprep.subr.mxu0 0.0
    %2032 = vmatpush1.msra.mxu0 0.0
    %2033 = vmatprep.subr.mxu0 0.0
    %2034 = vmatpush1.msra.mxu0 0.0
    %2035 = vmatprep.subr.mxu0 0.0
    %2036 = vmatpush1.msra.mxu0 0.0
    %2037 = vmatprep.subr.mxu0 0.0
    %2038 = vmatpush1.msra.mxu0 0.0
    %2039 = vmatprep.subr.mxu0 0.0
    %2040 = vmatpush1.msra.mxu0 0.0
    %2041 = vmatprep.subr.mxu0 0.0
    %2042 = vmatpush1.msra.mxu0 0.0
    %2043 = vmatprep.subr.mxu0 0.0
    %2044 = vmatpush1.msra.mxu0 0.0
    %2045 = vmatprep.subr.mxu0 0.0
    %2046 = vmatpush1.msra.mxu0 0.0
    %2047 = vmatprep.subr.mxu0 0.0
    %2048 = vmatpush1.msra.mxu0 0.0
    %2049 = vmatprep.subr.mxu0 0.0
    %2050 = vmatpush1.msra.mxu0 0.0
    %2051 = vmatprep.subr.mxu0 0.0
    %2052 = vmatpush1.msra.mxu0 0.0
    %2053 = vmatprep.subr.mxu0 0.0
    %2054 = vmatpush1.msra.mxu0 0.0
    %2055 = vmatprep.subr.mxu0 0.0
    %2056 = vmatpush1.msra.mxu0 0.0
    %2057 = vmatprep.subr.mxu0 0.0
    %2058 = vmatpush1.msra.mxu0 0.0
    %2059 = vmatprep.subr.mxu0 0.0
    %2060 = vmatpush1.msra.mxu0 0.0
    %2061 = vmatprep.subr.mxu0 0.0
    %2062 = vmatpush1.msra.mxu0 0.0
    %2063 = vmatprep.subr.mxu0 0.0
    %2064 = vmatpush1.msra.mxu0 0.0
    %2065 = vmatprep.subr.mxu0 0.0
    %2066 = vmatpush1.msra.mxu0 0.0
    %2067 = vmatprep.subr.mxu0 0.0
    %2068 = vmatpush1.msra.mxu0 0.0
    %2069 = vmatprep.subr.mxu0 0.0
    %2070 = vmatpush1.msra.mxu0 0.0
    %2071 = vmatprep.subr.mxu0 0.0
    %2072 = vmatpush1.msra.mxu0 0.0
    %2073 = vmatprep.subr.mxu0 0.0
    %2074 = vmatpush1.msra.mxu0 0.0
    %2075 = vmatprep.subr.mxu0 0.0
    %2076 = vmatpush1.msra.mxu0 0.0
    %2077 = vmatprep.mubr.f32.mxu0 0.0
    %2078 = vmatmul.mubr.f32.gmra.mrb[0].mxu0 %v2011
    %v2079 = vpop.f32.mrb[0].mxu0
    %v2080 = vadd.f32 0.0, %v2079
    %v2081 = vpop.f32.mrb[0].mxu0
    %v2082 = vadd.f32 0.0, %v2081
    %2083 = vdwg.mxu0
    %v2086 = vrot.slane %v2080, 6
    %v2087 = vrot.slane %v2082, 6
    %v2090 = vadd.f32 %v2005, %v2086
    %v2091 = vadd.f32 %v2008, %v2087
    %v2092 = vtanh.pop %v2090
    %v2093 = vtanh.pop %v2091
    %v2094 = vxor.u32 %v2090, 2147483648
    %v2095 = vxor.u32 %v2091, 2147483648
    %v2096 = vmul.f32 %v2094, 1.442695
    %v2097 = vpow.pop %v2096
    %v2098 = vmul.f32 %v2095, 1.442695
    %v2099 = vpow.pop %v2098
    %v2100 = vadd.f32 %v2097, 1.0
    %v2101 = vadd.f32 %v2099, 1.0
    %v2102 = vrcp.pop %v2100
    %v2103 = vmul.f32 1.0, %v2102
    %v2104 = vrcp.pop %v2101
    %v2105 = vmul.f32 1.0, %v2104
    %v2106 = vsel %vm215, %v2092, %v2103
    %v2107 = vsel %vm216, %v2093, %v2105
    %2109 = vrot.lane.b32.xlu0 %v2107, 32
    %v2110 = vpop.permute.xlu0 %2109
    %v2112 = vsel %vm334, %v2106, %v2110
    %2114 = vrot.lane.b32.xlu0 %v2106, 96
    %v2115 = vpop.permute.xlu0 %2114
    %v2117 = vsel %vm334, %v2115, %v2107
    %2118 = vrot.lane.b32.xlu0 %v2106, 64
    %v2119 = vpop.permute.xlu0 %2118
    %2121 = vrot.lane.b32.xlu0 %v2107, 96
    %v2122 = vpop.permute.xlu0 %2121
    %v2124 = vsel %vm334, %v2119, %v2122
    %2125 = vrot.lane.b32.xlu0 %v2106, 32
    %v2126 = vpop.permute.xlu0 %2125
    %2128 = vrot.lane.b32.xlu0 %v2107, 64
    %v2129 = vpop.permute.xlu0 %2128
    %v2131 = vsel %vm334, %v2126, %v2129
    %v2133 = vrot.slane %v2000, 6
    %v2135 = vmul.f32 %v2117, %v2133
    %v2136 = vmul.f32 %v2112, %v2124
    %v2137 = vadd.f32 %v2135, %v2136
    %v2138 = vtanh.pop %v2137
    %v2139 = vmul.f32 %v2131, %v2138
    %2140 = vst.msk [vmem:[#allocation3 + $0x18] sm:$0xc] %vm499, %v2139
    %2141 = vst.msk [vmem:[#allocation3 + $0xa] sm:$0xc] %vm501, %v2139
    %v2142 = vld [vmem:[#allocation2 + $0x30] sm:$0x30]
    %v2143 = vld [vmem:[#allocation2 + $0x18] sm:$0xc]
    %v2145 = vrot.slane %v2143, 6
    %v2148 = vrot.slane %v2139, 2
    %v2149 = vsel %vm63, %v2148, 0
    %2151 = vmatprep.subr.mxu0 %v218
    %2152 = vmatpush1.msra.mxu0 %v217
    %2153 = vmatprep.subr.mxu0 %v220
    %2154 = vmatpush1.msra.mxu0 %v219
    %2155 = vmatprep.subr.mxu0 %v222
    %2156 = vmatpush1.msra.mxu0 %v221
    %2157 = vmatprep.subr.mxu0 %v224
    %2158 = vmatpush1.msra.mxu0 %v223
    %2159 = vmatprep.subr.mxu0 %v226
    %2160 = vmatpush1.msra.mxu0 %v225
    %2161 = vmatprep.subr.mxu0 %v228
    %2162 = vmatpush1.msra.mxu0 %v227
    %2163 = vmatprep.subr.mxu0 %v230
    %2164 = vmatpush1.msra.mxu0 %v229
    %2165 = vmatprep.subr.mxu0 %v232
    %2166 = vmatpush1.msra.mxu0 %v231
    %2167 = vmatprep.subr.mxu0 0.0
    %2168 = vmatpush1.msra.mxu0 0.0
    %2169 = vmatprep.subr.mxu0 0.0
    %2170 = vmatpush1.msra.mxu0 0.0
    %2171 = vmatprep.subr.mxu0 0.0
    %2172 = vmatpush1.msra.mxu0 0.0
    %2173 = vmatprep.subr.mxu0 0.0
    %2174 = vmatpush1.msra.mxu0 0.0
    %2175 = vmatprep.subr.mxu0 0.0
    %2176 = vmatpush1.msra.mxu0 0.0
    %2177 = vmatprep.subr.mxu0 0.0
    %2178 = vmatpush1.msra.mxu0 0.0
    %2179 = vmatprep.subr.mxu0 0.0
    %2180 = vmatpush1.msra.mxu0 0.0
    %2181 = vmatprep.subr.mxu0 0.0
    %2182 = vmatpush1.msra.mxu0 0.0
    %2183 = vmatprep.subr.mxu0 0.0
    %2184 = vmatpush1.msra.mxu0 0.0
    %2185 = vmatprep.subr.mxu0 0.0
    %2186 = vmatpush1.msra.mxu0 0.0
    %2187 = vmatprep.subr.mxu0 0.0
    %2188 = vmatpush1.msra.mxu0 0.0
    %2189 = vmatprep.subr.mxu0 0.0
    %2190 = vmatpush1.msra.mxu0 0.0
    %2191 = vmatprep.subr.mxu0 0.0
    %2192 = vmatpush1.msra.mxu0 0.0
    %2193 = vmatprep.subr.mxu0 0.0
    %2194 = vmatpush1.msra.mxu0 0.0
    %2195 = vmatprep.subr.mxu0 0.0
    %2196 = vmatpush1.msra.mxu0 0.0
    %2197 = vmatprep.subr.mxu0 0.0
    %2198 = vmatpush1.msra.mxu0 0.0
    %2199 = vmatprep.subr.mxu0 0.0
    %2200 = vmatpush1.msra.mxu0 0.0
    %2201 = vmatprep.subr.mxu0 0.0
    %2202 = vmatpush1.msra.mxu0 0.0
    %2203 = vmatprep.subr.mxu0 0.0
    %2204 = vmatpush1.msra.mxu0 0.0
    %2205 = vmatprep.subr.mxu0 0.0
    %2206 = vmatpush1.msra.mxu0 0.0
    %2207 = vmatprep.subr.mxu0 0.0
    %2208 = vmatpush1.msra.mxu0 0.0
    %2209 = vmatprep.subr.mxu0 0.0
    %2210 = vmatpush1.msra.mxu0 0.0
    %2211 = vmatprep.subr.mxu0 0.0
    %2212 = vmatpush1.msra.mxu0 0.0
    %2213 = vmatprep.subr.mxu0 0.0
    %2214 = vmatpush1.msra.mxu0 0.0
    %2215 = vmatprep.mubr.f32.mxu0 0.0
    %2216 = vmatmul.mubr.f32.gmra.mrb[0].mxu0 %v2149
    %v2217 = vpop.f32.mrb[0].mxu0
    %v2218 = vadd.f32 0.0, %v2217
    %v2219 = vpop.f32.mrb[0].mxu0
    %v2220 = vadd.f32 0.0, %v2219
    %2221 = vdwg.mxu0
    %v2224 = vrot.slane %v2218, 4
    %v2225 = vrot.slane %v2220, 4
    %v2228 = vadd.f32 %v2142, %v2224
    %v2229 = vadd.f32 %v2145, %v2225
    %v2230 = vtanh.pop %v2228
    %v2231 = vtanh.pop %v2229
    %v2232 = vxor.u32 %v2228, 2147483648
    %v2233 = vxor.u32 %v2229, 2147483648
    %v2234 = vmul.f32 %v2232, 1.442695
    %v2235 = vpow.pop %v2234
    %v2236 = vmul.f32 %v2233, 1.442695
    %v2237 = vpow.pop %v2236
    %v2238 = vadd.f32 %v2235, 1.0
    %v2239 = vadd.f32 %v2237, 1.0
    %v2240 = vrcp.pop %v2238
    %v2241 = vmul.f32 1.0, %v2240
    %v2242 = vrcp.pop %v2239
    %v2243 = vmul.f32 1.0, %v2242
    %v2244 = vsel %vm215, %v2230, %v2241
    %v2245 = vsel %vm216, %v2231, %v2243
    %2247 = vrot.lane.b32.xlu0 %v2245, 32
    %v2248 = vpop.permute.xlu0 %2247
    %v2250 = vsel %vm334, %v2244, %v2248
    %2252 = vrot.lane.b32.xlu0 %v2244, 96
    %v2253 = vpop.permute.xlu0 %2252
    %v2255 = vsel %vm334, %v2253, %v2245
    %2256 = vrot.lane.b32.xlu0 %v2244, 64
    %v2257 = vpop.permute.xlu0 %2256
    %2259 = vrot.lane.b32.xlu0 %v2245, 96
    %v2260 = vpop.permute.xlu0 %2259
    %v2262 = vsel %vm334, %v2257, %v2260
    %2263 = vrot.lane.b32.xlu0 %v2244, 32
    %v2264 = vpop.permute.xlu0 %2263
    %2266 = vrot.lane.b32.xlu0 %v2245, 64
    %v2267 = vpop.permute.xlu0 %2266
    %v2269 = vsel %vm334, %v2264, %v2267
    %v2271 = vrot.slane %v2137, 6
    %v2273 = vmul.f32 %v2255, %v2271
    %v2274 = vmul.f32 %v2250, %v2262
    %v2275 = vadd.f32 %v2273, %v2274
    %v2276 = vtanh.pop %v2275
    %v2277 = vmul.f32 %v2269, %v2276
    %2278 = vst.msk [vmem:[#allocation3 + $0x18] sm:$0x30] %vm639, %v2277
    %2279 = vst.msk [vmem:[#allocation3 + $0x6] sm:$0x30] %vm641, %v2277
    %v2280 = vld [vmem:[#allocation2 + $0x30] sm:$0xc0]
    %v2281 = vld [vmem:[#allocation2 + $0x18] sm:$0x3]
    %v2283 = vrot.slane %v2281, 2
    %v2286 = vrot.slane %v2277, 4
    %v2287 = vsel %vm63, %v2286, 0
    %2289 = vmatprep.subr.mxu0 %v218
    %2290 = vmatpush1.msra.mxu0 %v217
    %2291 = vmatprep.subr.mxu0 %v220
    %2292 = vmatpush1.msra.mxu0 %v219
    %2293 = vmatprep.subr.mxu0 %v222
    %2294 = vmatpush1.msra.mxu0 %v221
    %2295 = vmatprep.subr.mxu0 %v224
    %2296 = vmatpush1.msra.mxu0 %v223
    %2297 = vmatprep.subr.mxu0 %v226
    %2298 = vmatpush1.msra.mxu0 %v225
    %2299 = vmatprep.subr.mxu0 %v228
    %2300 = vmatpush1.msra.mxu0 %v227
    %2301 = vmatprep.subr.mxu0 %v230
    %2302 = vmatpush1.msra.mxu0 %v229
    %2303 = vmatprep.subr.mxu0 %v232
    %2304 = vmatpush1.msra.mxu0 %v231
    %2305 = vmatprep.subr.mxu0 0.0
    %2306 = vmatpush1.msra.mxu0 0.0
    %2307 = vmatprep.subr.mxu0 0.0
    %2308 = vmatpush1.msra.mxu0 0.0
    %2309 = vmatprep.subr.mxu0 0.0
    %2310 = vmatpush1.msra.mxu0 0.0
    %2311 = vmatprep.subr.mxu0 0.0
    %2312 = vmatpush1.msra.mxu0 0.0
    %2313 = vmatprep.subr.mxu0 0.0
    %2314 = vmatpush1.msra.mxu0 0.0
    %2315 = vmatprep.subr.mxu0 0.0
    %2316 = vmatpush1.msra.mxu0 0.0
    %2317 = vmatprep.subr.mxu0 0.0
    %2318 = vmatpush1.msra.mxu0 0.0
    %2319 = vmatprep.subr.mxu0 0.0
    %2320 = vmatpush1.msra.mxu0 0.0
    %2321 = vmatprep.subr.mxu0 0.0
    %2322 = vmatpush1.msra.mxu0 0.0
    %2323 = vmatprep.subr.mxu0 0.0
    %2324 = vmatpush1.msra.mxu0 0.0
    %2325 = vmatprep.subr.mxu0 0.0
    %2326 = vmatpush1.msra.mxu0 0.0
    %2327 = vmatprep.subr.mxu0 0.0
    %2328 = vmatpush1.msra.mxu0 0.0
    %2329 = vmatprep.subr.mxu0 0.0
    %2330 = vmatpush1.msra.mxu0 0.0
    %2331 = vmatprep.subr.mxu0 0.0
    %2332 = vmatpush1.msra.mxu0 0.0
    %2333 = vmatprep.subr.mxu0 0.0
    %2334 = vmatpush1.msra.mxu0 0.0
    %2335 = vmatprep.subr.mxu0 0.0
    %2336 = vmatpush1.msra.mxu0 0.0
    %2337 = vmatprep.subr.mxu0 0.0
    %2338 = vmatpush1.msra.mxu0 0.0
    %2339 = vmatprep.subr.mxu0 0.0
    %2340 = vmatpush1.msra.mxu0 0.0
    %2341 = vmatprep.subr.mxu0 0.0
    %2342 = vmatpush1.msra.mxu0 0.0
    %2343 = vmatprep.subr.mxu0 0.0
    %2344 = vmatpush1.msra.mxu0 0.0
    %2345 = vmatprep.subr.mxu0 0.0
    %2346 = vmatpush1.msra.mxu0 0.0
    %2347 = vmatprep.subr.mxu0 0.0
    %2348 = vmatpush1.msra.mxu0 0.0
    %2349 = vmatprep.subr.mxu0 0.0
    %2350 = vmatpush1.msra.mxu0 0.0
    %2351 = vmatprep.subr.mxu0 0.0
    %2352 = vmatpush1.msra.mxu0 0.0
    %2353 = vmatprep.mubr.f32.mxu0 0.0
    %2354 = vmatmul.mubr.f32.gmra.mrb[0].mxu0 %v2287
    %v2355 = vpop.f32.mrb[0].mxu0
    %v2356 = vadd.f32 0.0, %v2355
    %v2357 = vpop.f32.mrb[0].mxu0
    %v2358 = vadd.f32 0.0, %v2357
    %2359 = vdwg.mxu0
    %v2362 = vrot.slane %v2356, 2
    %v2363 = vrot.slane %v2358, 2
    %v2366 = vadd.f32 %v2280, %v2362
    %v2367 = vadd.f32 %v2283, %v2363
    %v2368 = vtanh.pop %v2366
    %v2369 = vtanh.pop %v2367
    %v2370 = vxor.u32 %v2366, 2147483648
    %v2371 = vxor.u32 %v2367, 2147483648
    %v2372 = vmul.f32 %v2370, 1.442695
    %v2373 = vpow.pop %v2372
    %v2374 = vmul.f32 %v2371, 1.442695
    %v2375 = vpow.pop %v2374
    %v2376 = vadd.f32 %v2373, 1.0
    %v2377 = vadd.f32 %v2375, 1.0
    %v2378 = vrcp.pop %v2376
    %v2379 = vmul.f32 1.0, %v2378
    %v2380 = vrcp.pop %v2377
    %v2381 = vmul.f32 1.0, %v2380
    %v2382 = vsel %vm215, %v2368, %v2379
    %v2383 = vsel %vm216, %v2369, %v2381
    %2385 = vrot.lane.b32.xlu0 %v2383, 32
    %v2386 = vpop.permute.xlu0 %2385
    %v2388 = vsel %vm334, %v2382, %v2386
    %2390 = vrot.lane.b32.xlu0 %v2382, 96
    %v2391 = vpop.permute.xlu0 %2390
    %v2393 = vsel %vm334, %v2391, %v2383
    %2394 = vrot.lane.b32.xlu0 %v2382, 64
    %v2395 = vpop.permute.xlu0 %2394
    %2397 = vrot.lane.b32.xlu0 %v2383, 96
    %v2398 = vpop.permute.xlu0 %2397
    %v2400 = vsel %vm334, %v2395, %v2398
    %2401 = vrot.lane.b32.xlu0 %v2382, 32
    %v2402 = vpop.permute.xlu0 %2401
    %2404 = vrot.lane.b32.xlu0 %v2383, 64
    %v2405 = vpop.permute.xlu0 %2404
    %v2407 = vsel %vm334, %v2402, %v2405
    %v2409 = vrot.slane %v2275, 6
    %v2411 = vmul.f32 %v2393, %v2409
    %v2412 = vmul.f32 %v2388, %v2400
    %v2413 = vadd.f32 %v2411, %v2412
    %v2414 = vtanh.pop %v2413
    %v2415 = vmul.f32 %v2407, %v2414
    %2416 = vst.msk [vmem:[#allocation3 + $0x18] sm:$0xc0] %vm779, %v2415
    %2417 = vst.msk [vmem:[#allocation3 + $0x2] sm:$0xc0] %vm781, %v2415
    %v2418 = vld [vmem:[#allocation2 + $0x40] sm:$0x3]
    %v2419 = vld [vmem:[#allocation2 + $0x8] sm:$0xc0]
    %v2421 = vrot.slane %v2419, 6
    %v2424 = vrot.slane %v2415, 6
    %v2425 = vsel %vm63, %v2424, 0
    %2427 = vmatprep.subr.mxu0 %v218
    %2428 = vmatpush1.msra.mxu0 %v217
    %2429 = vmatprep.subr.mxu0 %v220
    %2430 = vmatpush1.msra.mxu0 %v219
    %2431 = vmatprep.subr.mxu0 %v222
    %2432 = vmatpush1.msra.mxu0 %v221
    %2433 = vmatprep.subr.mxu0 %v224
    %2434 = vmatpush1.msra.mxu0 %v223
    %2435 = vmatprep.subr.mxu0 %v226
    %2436 = vmatpush1.msra.mxu0 %v225
    %2437 = vmatprep.subr.mxu0 %v228
    %2438 = vmatpush1.msra.mxu0 %v227
    %2439 = vmatprep.subr.mxu0 %v230
    %2440 = vmatpush1.msra.mxu0 %v229
    %2441 = vmatprep.subr.mxu0 %v232
    %2442 = vmatpush1.msra.mxu0 %v231
    %2443 = vmatprep.subr.mxu0 0.0
    %2444 = vmatpush1.msra.mxu0 0.0
    %2445 = vmatprep.subr.mxu0 0.0
    %2446 = vmatpush1.msra.mxu0 0.0
    %2447 = vmatprep.subr.mxu0 0.0
    %2448 = vmatpush1.msra.mxu0 0.0
    %2449 = vmatprep.subr.mxu0 0.0
    %2450 = vmatpush1.msra.mxu0 0.0
    %2451 = vmatprep.subr.mxu0 0.0
    %2452 = vmatpush1.msra.mxu0 0.0
    %2453 = vmatprep.subr.mxu0 0.0
    %2454 = vmatpush1.msra.mxu0 0.0
    %2455 = vmatprep.subr.mxu0 0.0
    %2456 = vmatpush1.msra.mxu0 0.0
    %2457 = vmatprep.subr.mxu0 0.0
    %2458 = vmatpush1.msra.mxu0 0.0
    %2459 = vmatprep.subr.mxu0 0.0
    %2460 = vmatpush1.msra.mxu0 0.0
    %2461 = vmatprep.subr.mxu0 0.0
    %2462 = vmatpush1.msra.mxu0 0.0
    %2463 = vmatprep.subr.mxu0 0.0
    %2464 = vmatpush1.msra.mxu0 0.0
    %2465 = vmatprep.subr.mxu0 0.0
    %2466 = vmatpush1.msra.mxu0 0.0
    %2467 = vmatprep.subr.mxu0 0.0
    %2468 = vmatpush1.msra.mxu0 0.0
    %2469 = vmatprep.subr.mxu0 0.0
    %2470 = vmatpush1.msra.mxu0 0.0
    %2471 = vmatprep.subr.mxu0 0.0
    %2472 = vmatpush1.msra.mxu0 0.0
    %2473 = vmatprep.subr.mxu0 0.0
    %2474 = vmatpush1.msra.mxu0 0.0
    %2475 = vmatprep.subr.mxu0 0.0
    %2476 = vmatpush1.msra.mxu0 0.0
    %2477 = vmatprep.subr.mxu0 0.0
    %2478 = vmatpush1.msra.mxu0 0.0
    %2479 = vmatprep.subr.mxu0 0.0
    %2480 = vmatpush1.msra.mxu0 0.0
    %2481 = vmatprep.subr.mxu0 0.0
    %2482 = vmatpush1.msra.mxu0 0.0
    %2483 = vmatprep.subr.mxu0 0.0
    %2484 = vmatpush1.msra.mxu0 0.0
    %2485 = vmatprep.subr.mxu0 0.0
    %2486 = vmatpush1.msra.mxu0 0.0
    %2487 = vmatprep.subr.mxu0 0.0
    %2488 = vmatpush1.msra.mxu0 0.0
    %2489 = vmatprep.subr.mxu0 0.0
    %2490 = vmatpush1.msra.mxu0 0.0
    %2491 = vmatprep.mubr.f32.mxu0 0.0
    %2492 = vmatmul.mubr.f32.gmra.mrb[0].mxu0 %v2425
    %v2493 = vpop.f32.mrb[0].mxu0
    %v2494 = vadd.f32 0.0, %v2493
    %v2495 = vpop.f32.mrb[0].mxu0
    %v2496 = vadd.f32 0.0, %v2495
    %2497 = vdwg.mxu0
    %v2498 = vadd.f32 %v2418, %v2494
    %v2499 = vadd.f32 %v2421, %v2496
    %v2500 = vtanh.pop %v2498
    %v2501 = vtanh.pop %v2499
    %v2502 = vxor.u32 %v2498, 2147483648
    %v2503 = vxor.u32 %v2499, 2147483648
    %v2504 = vmul.f32 %v2502, 1.442695
    %v2505 = vpow.pop %v2504
    %v2506 = vmul.f32 %v2503, 1.442695
    %v2507 = vpow.pop %v2506
    %v2508 = vadd.f32 %v2505, 1.0
    %v2509 = vadd.f32 %v2507, 1.0
    %v2510 = vrcp.pop %v2508
    %v2511 = vmul.f32 1.0, %v2510
    %v2512 = vrcp.pop %v2509
    %v2513 = vmul.f32 1.0, %v2512
    %v2514 = vsel %vm215, %v2500, %v2511
    %v2515 = vsel %vm216, %v2501, %v2513
    %2517 = vrot.lane.b32.xlu0 %v2515, 32
    %v2518 = vpop.permute.xlu0 %2517
    %v2520 = vsel %vm334, %v2514, %v2518
    %2522 = vrot.lane.b32.xlu0 %v2514, 96
    %v2523 = vpop.permute.xlu0 %2522
    %v2525 = vsel %vm334, %v2523, %v2515
    %2526 = vrot.lane.b32.xlu0 %v2514, 64
    %v2527 = vpop.permute.xlu0 %2526
    %2529 = vrot.lane.b32.xlu0 %v2515, 96
    %v2530 = vpop.permute.xlu0 %2529
    %v2532 = vsel %vm334, %v2527, %v2530
    %2533 = vrot.lane.b32.xlu0 %v2514, 32
    %v2534 = vpop.permute.xlu0 %2533
    %2536 = vrot.lane.b32.xlu0 %v2515, 64
    %v2537 = vpop.permute.xlu0 %2536
    %v2539 = vsel %vm334, %v2534, %v2537
    %v2541 = vrot.slane %v2413, 6
    %v2543 = vmul.f32 %v2525, %v2541
    %v2544 = vmul.f32 %v2520, %v2532
    %v2545 = vadd.f32 %v2543, %v2544
    %v2546 = vtanh.pop %v2545
    %v2547 = vmul.f32 %v2539, %v2546
    %2548 = vst.msk [vmem:[#allocation3 + $0x20] sm:$0x3] %vm360, %v2547
    %2549 = vst.msk [vmem:[#allocation3 + $0x6] sm:$0x3] %vm362, %v2547
    %v2550 = vld [vmem:[#allocation2 + $0x40] sm:$0xc]
    %v2551 = vld [vmem:[#allocation2 + $0x8] sm:$0x30]
    %v2553 = vrot.slane %v2551, 2
    %v2556 = vsel %vm63, %v2547, 0
    %2558 = vmatprep.subr.mxu0 %v218
    %2559 = vmatpush1.msra.mxu0 %v217
    %2560 = vmatprep.subr.mxu0 %v220
    %2561 = vmatpush1.msra.mxu0 %v219
    %2562 = vmatprep.subr.mxu0 %v222
    %2563 = vmatpush1.msra.mxu0 %v221
    %2564 = vmatprep.subr.mxu0 %v224
    %2565 = vmatpush1.msra.mxu0 %v223
    %2566 = vmatprep.subr.mxu0 %v226
    %2567 = vmatpush1.msra.mxu0 %v225
    %2568 = vmatprep.subr.mxu0 %v228
    %2569 = vmatpush1.msra.mxu0 %v227
    %2570 = vmatprep.subr.mxu0 %v230
    %2571 = vmatpush1.msra.mxu0 %v229
    %2572 = vmatprep.subr.mxu0 %v232
    %2573 = vmatpush1.msra.mxu0 %v231
    %2574 = vmatprep.subr.mxu0 0.0
    %2575 = vmatpush1.msra.mxu0 0.0
    %2576 = vmatprep.subr.mxu0 0.0
    %2577 = vmatpush1.msra.mxu0 0.0
    %2578 = vmatprep.subr.mxu0 0.0
    %2579 = vmatpush1.msra.mxu0 0.0
    %2580 = vmatprep.subr.mxu0 0.0
    %2581 = vmatpush1.msra.mxu0 0.0
    %2582 = vmatprep.subr.mxu0 0.0
    %2583 = vmatpush1.msra.mxu0 0.0
    %2584 = vmatprep.subr.mxu0 0.0
    %2585 = vmatpush1.msra.mxu0 0.0
    %2586 = vmatprep.subr.mxu0 0.0
    %2587 = vmatpush1.msra.mxu0 0.0
    %2588 = vmatprep.subr.mxu0 0.0
    %2589 = vmatpush1.msra.mxu0 0.0
    %2590 = vmatprep.subr.mxu0 0.0
    %2591 = vmatpush1.msra.mxu0 0.0
    %2592 = vmatprep.subr.mxu0 0.0
    %2593 = vmatpush1.msra.mxu0 0.0
    %2594 = vmatprep.subr.mxu0 0.0
    %2595 = vmatpush1.msra.mxu0 0.0
    %2596 = vmatprep.subr.mxu0 0.0
    %2597 = vmatpush1.msra.mxu0 0.0
    %2598 = vmatprep.subr.mxu0 0.0
    %2599 = vmatpush1.msra.mxu0 0.0
    %2600 = vmatprep.subr.mxu0 0.0
    %2601 = vmatpush1.msra.mxu0 0.0
    %2602 = vmatprep.subr.mxu0 0.0
    %2603 = vmatpush1.msra.mxu0 0.0
    %2604 = vmatprep.subr.mxu0 0.0
    %2605 = vmatpush1.msra.mxu0 0.0
    %2606 = vmatprep.subr.mxu0 0.0
    %2607 = vmatpush1.msra.mxu0 0.0
    %2608 = vmatprep.subr.mxu0 0.0
    %2609 = vmatpush1.msra.mxu0 0.0
    %2610 = vmatprep.subr.mxu0 0.0
    %2611 = vmatpush1.msra.mxu0 0.0
    %2612 = vmatprep.subr.mxu0 0.0
    %2613 = vmatpush1.msra.mxu0 0.0
    %2614 = vmatprep.subr.mxu0 0.0
    %2615 = vmatpush1.msra.mxu0 0.0
    %2616 = vmatprep.subr.mxu0 0.0
    %2617 = vmatpush1.msra.mxu0 0.0
    %2618 = vmatprep.subr.mxu0 0.0
    %2619 = vmatpush1.msra.mxu0 0.0
    %2620 = vmatprep.subr.mxu0 0.0
    %2621 = vmatpush1.msra.mxu0 0.0
    %2622 = vmatprep.mubr.f32.mxu0 0.0
    %2623 = vmatmul.mubr.f32.gmra.mrb[0].mxu0 %v2556
    %v2624 = vpop.f32.mrb[0].mxu0
    %v2625 = vadd.f32 0.0, %v2624
    %v2626 = vpop.f32.mrb[0].mxu0
    %v2627 = vadd.f32 0.0, %v2626
    %2628 = vdwg.mxu0
    %v2631 = vrot.slane %v2625, 6
    %v2632 = vrot.slane %v2627, 6
    %v2635 = vadd.f32 %v2550, %v2631
    %v2636 = vadd.f32 %v2553, %v2632
    %v2637 = vtanh.pop %v2635
    %v2638 = vtanh.pop %v2636
    %v2639 = vxor.u32 %v2635, 2147483648
    %v2640 = vxor.u32 %v2636, 2147483648
    %v2641 = vmul.f32 %v2639, 1.442695
    %v2642 = vpow.pop %v2641
    %v2643 = vmul.f32 %v2640, 1.442695
    %v2644 = vpow.pop %v2643
    %v2645 = vadd.f32 %v2642, 1.0
    %v2646 = vadd.f32 %v2644, 1.0
    %v2647 = vrcp.pop %v2645
    %v2648 = vmul.f32 1.0, %v2647
    %v2649 = vrcp.pop %v2646
    %v2650 = vmul.f32 1.0, %v2649
    %v2651 = vsel %vm215, %v2637, %v2648
    %v2652 = vsel %vm216, %v2638, %v2650
    %2654 = vrot.lane.b32.xlu0 %v2652, 32
    %v2655 = vpop.permute.xlu0 %2654
    %v2657 = vsel %vm334, %v2651, %v2655
    %2659 = vrot.lane.b32.xlu0 %v2651, 96
    %v2660 = vpop.permute.xlu0 %2659
    %v2662 = vsel %vm334, %v2660, %v2652
    %2663 = vrot.lane.b32.xlu0 %v2651, 64
    %v2664 = vpop.permute.xlu0 %2663
    %2666 = vrot.lane.b32.xlu0 %v2652, 96
    %v2667 = vpop.permute.xlu0 %2666
    %v2669 = vsel %vm334, %v2664, %v2667
    %2670 = vrot.lane.b32.xlu0 %v2651, 32
    %v2671 = vpop.permute.xlu0 %2670
    %2673 = vrot.lane.b32.xlu0 %v2652, 64
    %v2674 = vpop.permute.xlu0 %2673
    %v2676 = vsel %vm334, %v2671, %v2674
    %v2678 = vrot.slane %v2545, 6
    %v2680 = vmul.f32 %v2662, %v2678
    %v2681 = vmul.f32 %v2657, %v2669
    %v2682 = vadd.f32 %v2680, %v2681
    %v2683 = vtanh.pop %v2682
    %v2684 = vmul.f32 %v2676, %v2683
    %2685 = vst.msk [vmem:[#allocation3 + $0x20] sm:$0xc] %vm499, %v2684
    %2686 = vst.msk [vmem:[#allocation3 + $0x2] sm:$0xc] %vm501, %v2684
    %v2687 = vld [vmem:[#allocation2 + $0x40] sm:$0x30]
    %v2688 = vld [vmem:[#allocation2 + $0x8] sm:$0xc]
    %v2690 = vrot.slane %v2688, 6
    %v2693 = vrot.slane %v2684, 2
    %v2694 = vsel %vm63, %v2693, 0
    %2696 = vmatprep.subr.mxu0 %v218
    %2697 = vmatpush1.msra.mxu0 %v217
    %2698 = vmatprep.subr.mxu0 %v220
    %2699 = vmatpush1.msra.mxu0 %v219
    %2700 = vmatprep.subr.mxu0 %v222
    %2701 = vmatpush1.msra.mxu0 %v221
    %2702 = vmatprep.subr.mxu0 %v224
    %2703 = vmatpush1.msra.mxu0 %v223
    %2704 = vmatprep.subr.mxu0 %v226
    %2705 = vmatpush1.msra.mxu0 %v225
    %2706 = vmatprep.subr.mxu0 %v228
    %2707 = vmatpush1.msra.mxu0 %v227
    %2708 = vmatprep.subr.mxu0 %v230
    %2709 = vmatpush1.msra.mxu0 %v229
    %2710 = vmatprep.subr.mxu0 %v232
    %2711 = vmatpush1.msra.mxu0 %v231
    %2712 = vmatprep.subr.mxu0 0.0
    %2713 = vmatpush1.msra.mxu0 0.0
    %2714 = vmatprep.subr.mxu0 0.0
    %2715 = vmatpush1.msra.mxu0 0.0
    %2716 = vmatprep.subr.mxu0 0.0
    %2717 = vmatpush1.msra.mxu0 0.0
    %2718 = vmatprep.subr.mxu0 0.0
    %2719 = vmatpush1.msra.mxu0 0.0
    %2720 = vmatprep.subr.mxu0 0.0
    %2721 = vmatpush1.msra.mxu0 0.0
    %2722 = vmatprep.subr.mxu0 0.0
    %2723 = vmatpush1.msra.mxu0 0.0
    %2724 = vmatprep.subr.mxu0 0.0
    %2725 = vmatpush1.msra.mxu0 0.0
    %2726 = vmatprep.subr.mxu0 0.0
    %2727 = vmatpush1.msra.mxu0 0.0
    %2728 = vmatprep.subr.mxu0 0.0
    %2729 = vmatpush1.msra.mxu0 0.0
    %2730 = vmatprep.subr.mxu0 0.0
    %2731 = vmatpush1.msra.mxu0 0.0
    %2732 = vmatprep.subr.mxu0 0.0
    %2733 = vmatpush1.msra.mxu0 0.0
    %2734 = vmatprep.subr.mxu0 0.0
    %2735 = vmatpush1.msra.mxu0 0.0
    %2736 = vmatprep.subr.mxu0 0.0
    %2737 = vmatpush1.msra.mxu0 0.0
    %2738 = vmatprep.subr.mxu0 0.0
    %2739 = vmatpush1.msra.mxu0 0.0
    %2740 = vmatprep.subr.mxu0 0.0
    %2741 = vmatpush1.msra.mxu0 0.0
    %2742 = vmatprep.subr.mxu0 0.0
    %2743 = vmatpush1.msra.mxu0 0.0
    %2744 = vmatprep.subr.mxu0 0.0
    %2745 = vmatpush1.msra.mxu0 0.0
    %2746 = vmatprep.subr.mxu0 0.0
    %2747 = vmatpush1.msra.mxu0 0.0
    %2748 = vmatprep.subr.mxu0 0.0
    %2749 = vmatpush1.msra.mxu0 0.0
    %2750 = vmatprep.subr.mxu0 0.0
    %2751 = vmatpush1.msra.mxu0 0.0
    %2752 = vmatprep.subr.mxu0 0.0
    %2753 = vmatpush1.msra.mxu0 0.0
    %2754 = vmatprep.subr.mxu0 0.0
    %2755 = vmatpush1.msra.mxu0 0.0
    %2756 = vmatprep.subr.mxu0 0.0
    %2757 = vmatpush1.msra.mxu0 0.0
    %2758 = vmatprep.subr.mxu0 0.0
    %2759 = vmatpush1.msra.mxu0 0.0
    %2760 = vmatprep.mubr.f32.mxu0 0.0
    %2761 = vmatmul.mubr.f32.gmra.mrb[0].mxu0 %v2694
    %v2762 = vpop.f32.mrb[0].mxu0
    %v2763 = vadd.f32 0.0, %v2762
    %v2764 = vpop.f32.mrb[0].mxu0
    %v2765 = vadd.f32 0.0, %v2764
    %2766 = vdwg.mxu0
    %v2769 = vrot.slane %v2763, 4
    %v2770 = vrot.slane %v2765, 4
    %v2773 = vadd.f32 %v2687, %v2769
    %v2774 = vadd.f32 %v2690, %v2770
    %v2775 = vtanh.pop %v2773
    %v2776 = vtanh.pop %v2774
    %v2777 = vxor.u32 %v2773, 2147483648
    %v2778 = vxor.u32 %v2774, 2147483648
    %v2779 = vmul.f32 %v2777, 1.442695
    %v2780 = vpow.pop %v2779
    %v2781 = vmul.f32 %v2778, 1.442695
    %v2782 = vpow.pop %v2781
    %v2783 = vadd.f32 %v2780, 1.0
    %v2784 = vadd.f32 %v2782, 1.0
    %v2785 = vrcp.pop %v2783
    %v2786 = vmul.f32 1.0, %v2785
    %v2787 = vrcp.pop %v2784
    %v2788 = vmul.f32 1.0, %v2787
    %v2789 = vsel %vm215, %v2775, %v2786
    %v2790 = vsel %vm216, %v2776, %v2788
    %2792 = vrot.lane.b32.xlu0 %v2790, 32
    %v2793 = vpop.permute.xlu0 %2792
    %v2795 = vsel %vm334, %v2789, %v2793
    %2797 = vrot.lane.b32.xlu0 %v2789, 96
    %v2798 = vpop.permute.xlu0 %2797
    %v2800 = vsel %vm334, %v2798, %v2790
    %2801 = vrot.lane.b32.xlu0 %v2789, 64
    %v2802 = vpop.permute.xlu0 %2801
    %2804 = vrot.lane.b32.xlu0 %v2790, 96
    %v2805 = vpop.permute.xlu0 %2804
    %v2807 = vsel %vm334, %v2802, %v2805
    %2808 = vrot.lane.b32.xlu0 %v2789, 32
    %v2809 = vpop.permute.xlu0 %2808
    %2811 = vrot.lane.b32.xlu0 %v2790, 64
    %v2812 = vpop.permute.xlu0 %2811
    %v2814 = vsel %vm334, %v2809, %v2812
    %v2816 = vrot.slane %v2682, 6
    %v2818 = vmul.f32 %v2800, %v2816
    %v2819 = vmul.f32 %v2795, %v2807
    %v2820 = vadd.f32 %v2818, %v2819
    %v2821 = vtanh.pop %v2820
    %v2822 = vmul.f32 %v2814, %v2821
    %2823 = vst.msk [vmem:[#allocation3 + $0x20] sm:$0x30] %vm639, %v2822
    %2824 = vst.msk [vmem:[#allocation3 - $0x2] sm:$0x30] %vm641, %v2822
    %v2825 = vld [vmem:[#allocation2 + $0x40] sm:$0xc0]
    %v2826 = vld [vmem:[#allocation2 + $0x8] sm:$0x3]
    %v2828 = vrot.slane %v2826, 2
    %v2831 = vrot.slane %v2822, 4
    %v2832 = vsel %vm63, %v2831, 0
    %2834 = vmatprep.subr.mxu0 %v218
    %2835 = vmatpush1.msra.mxu0 %v217
    %2836 = vmatprep.subr.mxu0 %v220
    %2837 = vmatpush1.msra.mxu0 %v219
    %2838 = vmatprep.subr.mxu0 %v222
    %2839 = vmatpush1.msra.mxu0 %v221
    %2840 = vmatprep.subr.mxu0 %v224
    %2841 = vmatpush1.msra.mxu0 %v223
    %2842 = vmatprep.subr.mxu0 %v226
    %2843 = vmatpush1.msra.mxu0 %v225
    %2844 = vmatprep.subr.mxu0 %v228
    %2845 = vmatpush1.msra.mxu0 %v227
    %2846 = vmatprep.subr.mxu0 %v230
    %2847 = vmatpush1.msra.mxu0 %v229
    %2848 = vmatprep.subr.mxu0 %v232
    %2849 = vmatpush1.msra.mxu0 %v231
    %2850 = vmatprep.subr.mxu0 0.0
    %2851 = vmatpush1.msra.mxu0 0.0
    %2852 = vmatprep.subr.mxu0 0.0
    %2853 = vmatpush1.msra.mxu0 0.0
    %2854 = vmatprep.subr.mxu0 0.0
    %2855 = vmatpush1.msra.mxu0 0.0
    %2856 = vmatprep.subr.mxu0 0.0
    %2857 = vmatpush1.msra.mxu0 0.0
    %2858 = vmatprep.subr.mxu0 0.0
    %2859 = vmatpush1.msra.mxu0 0.0
    %2860 = vmatprep.subr.mxu0 0.0
    %2861 = vmatpush1.msra.mxu0 0.0
    %2862 = vmatprep.subr.mxu0 0.0
    %2863 = vmatpush1.msra.mxu0 0.0
    %2864 = vmatprep.subr.mxu0 0.0
    %2865 = vmatpush1.msra.mxu0 0.0
    %2866 = vmatprep.subr.mxu0 0.0
    %2867 = vmatpush1.msra.mxu0 0.0
    %2868 = vmatprep.subr.mxu0 0.0
    %2869 = vmatpush1.msra.mxu0 0.0
    %2870 = vmatprep.subr.mxu0 0.0
    %2871 = vmatpush1.msra.mxu0 0.0
    %2872 = vmatprep.subr.mxu0 0.0
    %2873 = vmatpush1.msra.mxu0 0.0
    %2874 = vmatprep.subr.mxu0 0.0
    %2875 = vmatpush1.msra.mxu0 0.0
    %2876 = vmatprep.subr.mxu0 0.0
    %2877 = vmatpush1.msra.mxu0 0.0
    %2878 = vmatprep.subr.mxu0 0.0
    %2879 = vmatpush1.msra.mxu0 0.0
    %2880 = vmatprep.subr.mxu0 0.0
    %2881 = vmatpush1.msra.mxu0 0.0
    %2882 = vmatprep.subr.mxu0 0.0
    %2883 = vmatpush1.msra.mxu0 0.0
    %2884 = vmatprep.subr.mxu0 0.0
    %2885 = vmatpush1.msra.mxu0 0.0
    %2886 = vmatprep.subr.mxu0 0.0
    %2887 = vmatpush1.msra.mxu0 0.0
    %2888 = vmatprep.subr.mxu0 0.0
    %2889 = vmatpush1.msra.mxu0 0.0
    %2890 = vmatprep.subr.mxu0 0.0
    %2891 = vmatpush1.msra.mxu0 0.0
    %2892 = vmatprep.subr.mxu0 0.0
    %2893 = vmatpush1.msra.mxu0 0.0
    %2894 = vmatprep.subr.mxu0 0.0
    %2895 = vmatpush1.msra.mxu0 0.0
    %2896 = vmatprep.subr.mxu0 0.0
    %2897 = vmatpush1.msra.mxu0 0.0
    %2898 = vmatprep.mubr.f32.mxu0 0.0
    %2899 = vmatmul.mubr.f32.gmra.mrb[0].mxu0 %v2832
    %v2900 = vpop.f32.mrb[0].mxu0
    %v2901 = vadd.f32 0.0, %v2900
    %v2902 = vpop.f32.mrb[0].mxu0
    %v2903 = vadd.f32 0.0, %v2902
    %2904 = vdwg.mxu0
    %v2907 = vrot.slane %v2901, 2
    %v2908 = vrot.slane %v2903, 2
    %v2911 = vadd.f32 %v2825, %v2907
    %v2912 = vadd.f32 %v2828, %v2908
    %v2913 = vtanh.pop %v2911
    %v2914 = vtanh.pop %v2912
    %v2915 = vxor.u32 %v2911, 2147483648
    %v2916 = vxor.u32 %v2912, 2147483648
    %v2917 = vmul.f32 %v2915, 1.442695
    %v2918 = vpow.pop %v2917
    %v2919 = vmul.f32 %v2916, 1.442695
    %v2920 = vpow.pop %v2919
    %v2921 = vadd.f32 %v2918, 1.0
    %v2922 = vadd.f32 %v2920, 1.0
    %v2923 = vrcp.pop %v2921
    %v2924 = vmul.f32 1.0, %v2923
    %v2925 = vrcp.pop %v2922
    %v2926 = vmul.f32 1.0, %v2925
    %v2927 = vsel %vm215, %v2913, %v2924
    %v2928 = vsel %vm216, %v2914, %v2926
    %2930 = vrot.lane.b32.xlu0 %v2928, 32
    %v2931 = vpop.permute.xlu0 %2930
    %v2933 = vsel %vm334, %v2927, %v2931
    %2935 = vrot.lane.b32.xlu0 %v2927, 96
    %v2936 = vpop.permute.xlu0 %2935
    %v2938 = vsel %vm334, %v2936, %v2928
    %2939 = vrot.lane.b32.xlu0 %v2927, 64
    %v2940 = vpop.permute.xlu0 %2939
    %2942 = vrot.lane.b32.xlu0 %v2928, 96
    %v2943 = vpop.permute.xlu0 %2942
    %v2945 = vsel %vm334, %v2940, %v2943
    %2946 = vrot.lane.b32.xlu0 %v2927, 32
    %v2947 = vpop.permute.xlu0 %2946
    %2949 = vrot.lane.b32.xlu0 %v2928, 64
    %v2950 = vpop.permute.xlu0 %2949
    %v2952 = vsel %vm334, %v2947, %v2950
    %v2954 = vrot.slane %v2820, 6
    %v2956 = vmul.f32 %v2938, %v2954
    %v2957 = vmul.f32 %v2933, %v2945
    %v2958 = vadd.f32 %v2956, %v2957
    %v2959 = vtanh.pop %v2958
    %v2960 = vmul.f32 %v2952, %v2959
    %2961 = vst.msk [vmem:[#allocation3 + $0x20] sm:$0xc0] %vm779, %v2960
    %2962 = vst.msk [vmem:[#allocation3 - $0x6] sm:$0xc0] %vm781, %v2960
    %v2963 = vld [vmem:[#allocation3] sm:$0xff]
    %v2964 = vld [vmem:[#allocation3 + $0x8] sm:$0xff]
    %v2965 = vld [vmem:[#allocation3 + $0x10] sm:$0xff]
    %v2966 = vld [vmem:[#allocation3 + $0x18] sm:$0xff]
    %v2967 = vld [vmem:[#allocation3 + $0x20] sm:$0xf]
    %v2968 = vld [vmem:[%s4] sm:$0xff]
    %v2969 = vld [vmem:[%s4 + $0x8] sm:$0xff]
    %v2970 = vld [vmem:[%s4 + $0x10] sm:$0xff]
    %v2971 = vld [vmem:[%s4 + $0x18] sm:$0xff]
    %v2972 = vld [vmem:[%s4 + $0x20] sm:$0xff]
    %v2973 = vld [vmem:[%s4 + $0x28] sm:$0xff]
    %v2974 = vld [vmem:[%s4 + $0x30] sm:$0xff]
    %v2975 = vld [vmem:[%s4 + $0x38] sm:$0xff]
    %v2976 = vld [vmem:[#allocation3 + $0x2] sm:$0xff]
    %v2977 = vld [vmem:[#allocation3 + $0xa] sm:$0xff]
    %v2978 = vld [vmem:[#allocation3 + $0x12] sm:$0xff]
    %v2979 = vld [vmem:[#allocation3 + $0x1a] sm:$0xff]
    %v2980 = vld [vmem:[#allocation3 + $0x22] sm:$0xf]
    %s2981 = scalar_lea.vmem %s4, 64
    %v2982 = vld [vmem:[%s2981] sm:$0xff]
    %v2983 = vld [vmem:[%s2981 + $0x8] sm:$0xff]
    %v2984 = vld [vmem:[%s2981 + $0x10] sm:$0xff]
    %v2985 = vld [vmem:[%s2981 + $0x18] sm:$0xff]
    %v2986 = vld [vmem:[%s2981 + $0x20] sm:$0xff]
    %v2987 = vld [vmem:[%s2981 + $0x28] sm:$0xff]
    %v2988 = vld [vmem:[%s2981 + $0x30] sm:$0xff]
    %v2989 = vld [vmem:[%s2981 + $0x38] sm:$0xff]
    %v2991 = vsel %vm63, %v2976, 0
    %v2994 = vsel %vm63, %v2977, 0
    %v2997 = vsel %vm63, %v2978, 0
    %v3000 = vsel %vm63, %v2979, 0
    %v3003 = vsel %vm63, %v2980, 0
    %3005 = vmatprep.subr.mxu0 0.0
    %3006 = vmatpush1.msra.mxu0 %v2982
    %3007 = vmatprep.subr.mxu0 0.0
    %3008 = vmatpush1.msra.mxu0 %v2983
    %3009 = vmatprep.subr.mxu0 0.0
    %3010 = vmatpush1.msra.mxu0 %v2984
    %3011 = vmatprep.subr.mxu0 0.0
    %3012 = vmatpush1.msra.mxu0 %v2985
    %3013 = vmatprep.subr.mxu0 0.0
    %3014 = vmatpush1.msra.mxu0 %v2986
    %3015 = vmatprep.subr.mxu0 0.0
    %3016 = vmatpush1.msra.mxu0 %v2987
    %3017 = vmatprep.subr.mxu0 0.0
    %3018 = vmatpush1.msra.mxu0 %v2988
    %3019 = vmatprep.subr.mxu0 0.0
    %3020 = vmatpush1.msra.mxu0 %v2989
    %3021 = vmatprep.subr.mxu0 0.0
    %3022 = vmatpush1.msra.mxu0 0.0
    %3023 = vmatprep.subr.mxu0 0.0
    %3024 = vmatpush1.msra.mxu0 0.0
    %3025 = vmatprep.subr.mxu0 0.0
    %3026 = vmatpush1.msra.mxu0 0.0
    %3027 = vmatprep.subr.mxu0 0.0
    %3028 = vmatpush1.msra.mxu0 0.0
    %3029 = vmatprep.subr.mxu0 0.0
    %3030 = vmatpush1.msra.mxu0 0.0
    %3031 = vmatprep.subr.mxu0 0.0
    %3032 = vmatpush1.msra.mxu0 0.0
    %3033 = vmatprep.subr.mxu0 0.0
    %3034 = vmatpush1.msra.mxu0 0.0
    %3035 = vmatprep.subr.mxu0 0.0
    %3036 = vmatpush1.msra.mxu0 0.0
    %3037 = vmatprep.subr.mxu0 0.0
    %3038 = vmatpush1.msra.mxu0 0.0
    %3039 = vmatprep.subr.mxu0 0.0
    %3040 = vmatpush1.msra.mxu0 0.0
    %3041 = vmatprep.subr.mxu0 0.0
    %3042 = vmatpush1.msra.mxu0 0.0
    %3043 = vmatprep.subr.mxu0 0.0
    %3044 = vmatpush1.msra.mxu0 0.0
    %3045 = vmatprep.subr.mxu0 0.0
    %3046 = vmatpush1.msra.mxu0 0.0
    %3047 = vmatprep.subr.mxu0 0.0
    %3048 = vmatpush1.msra.mxu0 0.0
    %3049 = vmatprep.subr.mxu0 0.0
    %3050 = vmatpush1.msra.mxu0 0.0
    %3051 = vmatprep.subr.mxu0 0.0
    %3052 = vmatpush1.msra.mxu0 0.0
    %3053 = vmatprep.subr.mxu0 0.0
    %3054 = vmatpush1.msra.mxu0 0.0
    %3055 = vmatprep.subr.mxu0 0.0
    %3056 = vmatpush1.msra.mxu0 0.0
    %3057 = vmatprep.subr.mxu0 0.0
    %3058 = vmatpush1.msra.mxu0 0.0
    %3059 = vmatprep.subr.mxu0 0.0
    %3060 = vmatpush1.msra.mxu0 0.0
    %3061 = vmatprep.subr.mxu0 0.0
    %3062 = vmatpush1.msra.mxu0 0.0
    %3063 = vmatprep.subr.mxu0 0.0
    %3064 = vmatpush1.msra.mxu0 0.0
    %3065 = vmatprep.subr.mxu0 0.0
    %3066 = vmatpush1.msra.mxu0 0.0
    %3067 = vmatprep.subr.mxu0 0.0
    %3068 = vmatpush1.msra.mxu0 0.0
    %3069 = vmatprep.mubr.f32.mxu0 0.0
    %3070 = vmatmul.mubr.f32.gmra.mrb[0].mxu0 %v2991
    %v3071 = vpop.f32.mrb[0].mxu0
    %v3072 = vadd.f32 0.0, %v3071
    %v3073 = vpop.f32.mrb[0].mxu0
    %3074 = vmatprep.mubr.f32.mxu0 0.0
    %3075 = vmatmul.mubr.f32.gmra.mrb[0].mxu0 %v2994
    %v3076 = vpop.f32.mrb[0].mxu0
    %v3077 = vadd.f32 0.0, %v3076
    %v3078 = vpop.f32.mrb[0].mxu0
    %3079 = vmatprep.mubr.f32.mxu0 0.0
    %3080 = vmatmul.mubr.f32.gmra.mrb[0].mxu0 %v2997
    %v3081 = vpop.f32.mrb[0].mxu0
    %v3082 = vadd.f32 0.0, %v3081
    %v3083 = vpop.f32.mrb[0].mxu0
    %3084 = vmatprep.mubr.f32.mxu0 0.0
    %3085 = vmatmul.mubr.f32.gmra.mrb[0].mxu0 %v3000
    %v3086 = vpop.f32.mrb[0].mxu0
    %v3087 = vadd.f32 0.0, %v3086
    %v3088 = vpop.f32.mrb[0].mxu0
    %3089 = vmatprep.mubr.f32.mxu0 0.0
    %3090 = vmatmul.mubr.f32.gmra.mrb[0].mxu0 %v3003
    %v3091 = vpop.f32.mrb[0].mxu0
    %v3092 = vadd.f32 0.0, %v3091
    %v3093 = vpop.f32.mrb[0].mxu0
    %3094 = vdwg.mxu0
    %v3096 = vsel %vm63, %v2963, 0
    %v3099 = vsel %vm63, %v2964, 0
    %v3102 = vsel %vm63, %v2965, 0
    %v3105 = vsel %vm63, %v2966, 0
    %v3108 = vsel %vm63, %v2967, 0
    %3110 = vmatprep.subr.mxu0 0.0
    %3111 = vmatpush1.msra.mxu0 %v2968
    %3112 = vmatprep.subr.mxu0 0.0
    %3113 = vmatpush1.msra.mxu0 %v2969
    %3114 = vmatprep.subr.mxu0 0.0
    %3115 = vmatpush1.msra.mxu0 %v2970
    %3116 = vmatprep.subr.mxu0 0.0
    %3117 = vmatpush1.msra.mxu0 %v2971
    %3118 = vmatprep.subr.mxu0 0.0
    %3119 = vmatpush1.msra.mxu0 %v2972
    %3120 = vmatprep.subr.mxu0 0.0
    %3121 = vmatpush1.msra.mxu0 %v2973
    %3122 = vmatprep.subr.mxu0 0.0
    %3123 = vmatpush1.msra.mxu0 %v2974
    %3124 = vmatprep.subr.mxu0 0.0
    %3125 = vmatpush1.msra.mxu0 %v2975
    %3126 = vmatprep.subr.mxu0 0.0
    %3127 = vmatpush1.msra.mxu0 0.0
    %3128 = vmatprep.subr.mxu0 0.0
    %3129 = vmatpush1.msra.mxu0 0.0
    %3130 = vmatprep.subr.mxu0 0.0
    %3131 = vmatpush1.msra.mxu0 0.0
    %3132 = vmatprep.subr.mxu0 0.0
    %3133 = vmatpush1.msra.mxu0 0.0
    %3134 = vmatprep.subr.mxu0 0.0
    %3135 = vmatpush1.msra.mxu0 0.0
    %3136 = vmatprep.subr.mxu0 0.0
    %3137 = vmatpush1.msra.mxu0 0.0
    %3138 = vmatprep.subr.mxu0 0.0
    %3139 = vmatpush1.msra.mxu0 0.0
    %3140 = vmatprep.subr.mxu0 0.0
    %3141 = vmatpush1.msra.mxu0 0.0
    %3142 = vmatprep.subr.mxu0 0.0
    %3143 = vmatpush1.msra.mxu0 0.0
    %3144 = vmatprep.subr.mxu0 0.0
    %3145 = vmatpush1.msra.mxu0 0.0
    %3146 = vmatprep.subr.mxu0 0.0
    %3147 = vmatpush1.msra.mxu0 0.0
    %3148 = vmatprep.subr.mxu0 0.0
    %3149 = vmatpush1.msra.mxu0 0.0
    %3150 = vmatprep.subr.mxu0 0.0
    %3151 = vmatpush1.msra.mxu0 0.0
    %3152 = vmatprep.subr.mxu0 0.0
    %3153 = vmatpush1.msra.mxu0 0.0
    %3154 = vmatprep.subr.mxu0 0.0
    %3155 = vmatpush1.msra.mxu0 0.0
    %3156 = vmatprep.subr.mxu0 0.0
    %3157 = vmatpush1.msra.mxu0 0.0
    %3158 = vmatprep.subr.mxu0 0.0
    %3159 = vmatpush1.msra.mxu0 0.0
    %3160 = vmatprep.subr.mxu0 0.0
    %3161 = vmatpush1.msra.mxu0 0.0
    %3162 = vmatprep.subr.mxu0 0.0
    %3163 = vmatpush1.msra.mxu0 0.0
    %3164 = vmatprep.subr.mxu0 0.0
    %3165 = vmatpush1.msra.mxu0 0.0
    %3166 = vmatprep.subr.mxu0 0.0
    %3167 = vmatpush1.msra.mxu0 0.0
    %3168 = vmatprep.subr.mxu0 0.0
    %3169 = vmatpush1.msra.mxu0 0.0
    %3170 = vmatprep.subr.mxu0 0.0
    %3171 = vmatpush1.msra.mxu0 0.0
    %3172 = vmatprep.subr.mxu0 0.0
    %3173 = vmatpush1.msra.mxu0 0.0
    %3174 = vmatprep.mubr.f32.mxu0 0.0
    %3175 = vmatmul.mubr.f32.gmra.mrb[0].mxu0 %v3096
    %v3176 = vpop.f32.mrb[0].mxu0
    %v3177 = vadd.f32 %v3072, %v3176
    %v3178 = vpop.f32.mrb[0].mxu0
    %3179 = vmatprep.mubr.f32.mxu0 0.0
    %3180 = vmatmul.mubr.f32.gmra.mrb[0].mxu0 %v3099
    %v3181 = vpop.f32.mrb[0].mxu0
    %v3182 = vadd.f32 %v3077, %v3181
    %v3183 = vpop.f32.mrb[0].mxu0
    %3184 = vmatprep.mubr.f32.mxu0 0.0
    %3185 = vmatmul.mubr.f32.gmra.mrb[0].mxu0 %v3102
    %v3186 = vpop.f32.mrb[0].mxu0
    %v3187 = vadd.f32 %v3082, %v3186
    %v3188 = vpop.f32.mrb[0].mxu0
    %3189 = vmatprep.mubr.f32.mxu0 0.0
    %3190 = vmatmul.mubr.f32.gmra.mrb[0].mxu0 %v3105
    %v3191 = vpop.f32.mrb[0].mxu0
    %v3192 = vadd.f32 %v3087, %v3191
    %v3193 = vpop.f32.mrb[0].mxu0
    %3194 = vmatprep.mubr.f32.mxu0 0.0
    %3195 = vmatmul.mubr.f32.gmra.mrb[0].mxu0 %v3108
    %v3196 = vpop.f32.mrb[0].mxu0
    %v3197 = vadd.f32 %v3092, %v3196
    %v3198 = vpop.f32.mrb[0].mxu0
    %3199 = vdwg.mxu0
    %v3200 = vld [vmem:[#allocation3 + $0x4] sm:$0xff]
    %v3201 = vld [vmem:[#allocation3 + $0xc] sm:$0xff]
    %v3202 = vld [vmem:[#allocation3 + $0x14] sm:$0xff]
    %v3203 = vld [vmem:[#allocation3 + $0x1c] sm:$0xff]
    %v3204 = vld [vmem:[#allocation3 + $0x24] sm:$0xf]
    %s3205 = scalar_lea.vmem %s4, 128
    %v3206 = vld [vmem:[%s3205] sm:$0xff]
    %v3207 = vld [vmem:[%s3205 + $0x8] sm:$0xff]
    %v3208 = vld [vmem:[%s3205 + $0x10] sm:$0xff]
    %v3209 = vld [vmem:[%s3205 + $0x18] sm:$0xff]
    %v3210 = vld [vmem:[%s3205 + $0x20] sm:$0xff]
    %v3211 = vld [vmem:[%s3205 + $0x28] sm:$0xff]
    %v3212 = vld [vmem:[%s3205 + $0x30] sm:$0xff]
    %v3213 = vld [vmem:[%s3205 + $0x38] sm:$0xff]
    %v3215 = vsel %vm63, %v3200, 0
    %v3218 = vsel %vm63, %v3201, 0
    %v3221 = vsel %vm63, %v3202, 0
    %v3224 = vsel %vm63, %v3203, 0
    %v3227 = vsel %vm63, %v3204, 0
    %3229 = vmatprep.subr.mxu0 0.0
    %3230 = vmatpush1.msra.mxu0 %v3206
    %3231 = vmatprep.subr.mxu0 0.0
    %3232 = vmatpush1.msra.mxu0 %v3207
    %3233 = vmatprep.subr.mxu0 0.0
    %3234 = vmatpush1.msra.mxu0 %v3208
    %3235 = vmatprep.subr.mxu0 0.0
    %3236 = vmatpush1.msra.mxu0 %v3209
    %3237 = vmatprep.subr.mxu0 0.0
    %3238 = vmatpush1.msra.mxu0 %v3210
    %3239 = vmatprep.subr.mxu0 0.0
    %3240 = vmatpush1.msra.mxu0 %v3211
    %3241 = vmatprep.subr.mxu0 0.0
    %3242 = vmatpush1.msra.mxu0 %v3212
    %3243 = vmatprep.subr.mxu0 0.0
    %3244 = vmatpush1.msra.mxu0 %v3213
    %3245 = vmatprep.subr.mxu0 0.0
    %3246 = vmatpush1.msra.mxu0 0.0
    %3247 = vmatprep.subr.mxu0 0.0
    %3248 = vmatpush1.msra.mxu0 0.0
    %3249 = vmatprep.subr.mxu0 0.0
    %3250 = vmatpush1.msra.mxu0 0.0
    %3251 = vmatprep.subr.mxu0 0.0
    %3252 = vmatpush1.msra.mxu0 0.0
    %3253 = vmatprep.subr.mxu0 0.0
    %3254 = vmatpush1.msra.mxu0 0.0
    %3255 = vmatprep.subr.mxu0 0.0
    %3256 = vmatpush1.msra.mxu0 0.0
    %3257 = vmatprep.subr.mxu0 0.0
    %3258 = vmatpush1.msra.mxu0 0.0
    %3259 = vmatprep.subr.mxu0 0.0
    %3260 = vmatpush1.msra.mxu0 0.0
    %3261 = vmatprep.subr.mxu0 0.0
    %3262 = vmatpush1.msra.mxu0 0.0
    %3263 = vmatprep.subr.mxu0 0.0
    %3264 = vmatpush1.msra.mxu0 0.0
    %3265 = vmatprep.subr.mxu0 0.0
    %3266 = vmatpush1.msra.mxu0 0.0
    %3267 = vmatprep.subr.mxu0 0.0
    %3268 = vmatpush1.msra.mxu0 0.0
    %3269 = vmatprep.subr.mxu0 0.0
    %3270 = vmatpush1.msra.mxu0 0.0
    %3271 = vmatprep.subr.mxu0 0.0
    %3272 = vmatpush1.msra.mxu0 0.0
    %3273 = vmatprep.subr.mxu0 0.0
    %3274 = vmatpush1.msra.mxu0 0.0
    %3275 = vmatprep.subr.mxu0 0.0
    %3276 = vmatpush1.msra.mxu0 0.0
    %3277 = vmatprep.subr.mxu0 0.0
    %3278 = vmatpush1.msra.mxu0 0.0
    %3279 = vmatprep.subr.mxu0 0.0
    %3280 = vmatpush1.msra.mxu0 0.0
    %3281 = vmatprep.subr.mxu0 0.0
    %3282 = vmatpush1.msra.mxu0 0.0
    %3283 = vmatprep.subr.mxu0 0.0
    %3284 = vmatpush1.msra.mxu0 0.0
    %3285 = vmatprep.subr.mxu0 0.0
    %3286 = vmatpush1.msra.mxu0 0.0
    %3287 = vmatprep.subr.mxu0 0.0
    %3288 = vmatpush1.msra.mxu0 0.0
    %3289 = vmatprep.subr.mxu0 0.0
    %3290 = vmatpush1.msra.mxu0 0.0
    %3291 = vmatprep.subr.mxu0 0.0
    %3292 = vmatpush1.msra.mxu0 0.0
    %3293 = vmatprep.mubr.f32.mxu0 0.0
    %3294 = vmatmul.mubr.f32.gmra.mrb[0].mxu0 %v3215
    %v3295 = vpop.f32.mrb[0].mxu0
    %v3296 = vadd.f32 0.0, %v3295
    %v3297 = vpop.f32.mrb[0].mxu0
    %3298 = vmatprep.mubr.f32.mxu0 0.0
    %3299 = vmatmul.mubr.f32.gmra.mrb[0].mxu0 %v3218
    %v3300 = vpop.f32.mrb[0].mxu0
    %v3301 = vadd.f32 0.0, %v3300
    %v3302 = vpop.f32.mrb[0].mxu0
    %3303 = vmatprep.mubr.f32.mxu0 0.0
    %3304 = vmatmul.mubr.f32.gmra.mrb[0].mxu0 %v3221
    %v3305 = vpop.f32.mrb[0].mxu0
    %v3306 = vadd.f32 0.0, %v3305
    %v3307 = vpop.f32.mrb[0].mxu0
    %3308 = vmatprep.mubr.f32.mxu0 0.0
    %3309 = vmatmul.mubr.f32.gmra.mrb[0].mxu0 %v3224
    %v3310 = vpop.f32.mrb[0].mxu0
    %v3311 = vadd.f32 0.0, %v3310
    %v3312 = vpop.f32.mrb[0].mxu0
    %3313 = vmatprep.mubr.f32.mxu0 0.0
    %3314 = vmatmul.mubr.f32.gmra.mrb[0].mxu0 %v3227
    %v3315 = vpop.f32.mrb[0].mxu0
    %v3316 = vadd.f32 0.0, %v3315
    %v3317 = vpop.f32.mrb[0].mxu0
    %3318 = vdwg.mxu0
    %v3319 = vadd.f32 %v3177, %v3296
    %v3320 = vadd.f32 %v3182, %v3301
    %v3321 = vadd.f32 %v3187, %v3306
    %v3322 = vadd.f32 %v3192, %v3311
    %v3323 = vadd.f32 %v3197, %v3316
    %v3324 = vld [vmem:[%s5] sm:$0x1]
    %v3326 = vlaneseq
    %v3327 = vshrl.u32 %v3326, 7
    %v3328 = vsub.s32 0, %v3327
    %v3329 = vrot.slane %v3324, %v3328
    %v3331 = vadd.f32 %v3319, %v3329
    %v3332 = vadd.f32 %v3320, %v3329
    %v3333 = vadd.f32 %v3321, %v3329
    %v3334 = vadd.f32 %v3322, %v3329
    %v3335 = vadd.f32 %v3323, %v3329
    %v3336 = vld [vmem:[%s7] sm:$0x1]
    %v3338 = vlaneseq
    %v3339 = vshrl.u32 %v3338, 7
    %v3340 = vsub.s32 0, %v3339
    %v3341 = vrot.slane %v3336, %v3340
    %v3343 = vadd.f32 %v3341, 0.0
    %v3345 = vrot.slane %v3331, 2
    %v3347 = vadd.f32 %v3331, %v3345
    %v3348 = vmax.f32 %v3331, %v3345
    %v3349 = vrot.slane %v3331, 4
    %v3351 = vadd.f32 %v3347, %v3349
    %v3352 = vmax.f32 %v3348, %v3349
    %v3353 = vmul.f32 %v3351, 0.33333334
    %3355 = vrot.lane.b32.xlu0 %v3352, 16
    %v3356 = vpop.permute.xlu0 %3355
    %vm3358 = vcmask 130048
    %v3359 = vsel %vm3358, %v3353, %v3356
    %v3360 = vld [vmem:[%s6] sm:$0xff]
    %v3361 = vld [vmem:[%s6 + $0x8] sm:$0xff]
    %v3362 = vld [vmem:[%s6 + $0x10] sm:$0xff]
    %v3363 = vld [vmem:[%s6 + $0x18] sm:$0xff]
    %v3365 = vsel %vm334, %v3359, 0
    %3367 = vmatprep.subr.mxu0 0.0
    %3368 = vmatpush1.msra.mxu0 %v3360
    %3369 = vmatprep.subr.mxu0 0.0
    %3370 = vmatpush1.msra.mxu0 %v3361
    %3371 = vmatprep.subr.mxu0 0.0
    %3372 = vmatpush1.msra.mxu0 %v3362
    %3373 = vmatprep.subr.mxu0 0.0
    %3374 = vmatpush1.msra.mxu0 %v3363
    %3375 = vmatprep.subr.mxu0 0.0
    %3376 = vmatpush1.msra.mxu0 0.0
    %3377 = vmatprep.subr.mxu0 0.0
    %3378 = vmatpush1.msra.mxu0 0.0
    %3379 = vmatprep.subr.mxu0 0.0
    %3380 = vmatpush1.msra.mxu0 0.0
    %3381 = vmatprep.subr.mxu0 0.0
    %3382 = vmatpush1.msra.mxu0 0.0
    %3383 = vmatprep.subr.mxu0 0.0
    %3384 = vmatpush1.msra.mxu0 0.0
    %3385 = vmatprep.subr.mxu0 0.0
    %3386 = vmatpush1.msra.mxu0 0.0
    %3387 = vmatprep.subr.mxu0 0.0
    %3388 = vmatpush1.msra.mxu0 0.0
    %3389 = vmatprep.subr.mxu0 0.0
    %3390 = vmatpush1.msra.mxu0 0.0
    %3391 = vmatprep.subr.mxu0 0.0
    %3392 = vmatpush1.msra.mxu0 0.0
    %3393 = vmatprep.subr.mxu0 0.0
    %3394 = vmatpush1.msra.mxu0 0.0
    %3395 = vmatprep.subr.mxu0 0.0
    %3396 = vmatpush1.msra.mxu0 0.0
    %3397 = vmatprep.subr.mxu0 0.0
    %3398 = vmatpush1.msra.mxu0 0.0
    %3399 = vmatprep.subr.mxu0 0.0
    %3400 = vmatpush1.msra.mxu0 0.0
    %3401 = vmatprep.subr.mxu0 0.0
    %3402 = vmatpush1.msra.mxu0 0.0
    %3403 = vmatprep.subr.mxu0 0.0
    %3404 = vmatpush1.msra.mxu0 0.0
    %3405 = vmatprep.subr.mxu0 0.0
    %3406 = vmatpush1.msra.mxu0 0.0
    %3407 = vmatprep.subr.mxu0 0.0
    %3408 = vmatpush1.msra.mxu0 0.0
    %3409 = vmatprep.subr.mxu0 0.0
    %3410 = vmatpush1.msra.mxu0 0.0
    %3411 = vmatprep.subr.mxu0 0.0
    %3412 = vmatpush1.msra.mxu0 0.0
    %3413 = vmatprep.subr.mxu0 0.0
    %3414 = vmatpush1.msra.mxu0 0.0
    %3415 = vmatprep.subr.mxu0 0.0
    %3416 = vmatpush1.msra.mxu0 0.0
    %3417 = vmatprep.subr.mxu0 0.0
    %3418 = vmatpush1.msra.mxu0 0.0
    %3419 = vmatprep.subr.mxu0 0.0
    %3420 = vmatpush1.msra.mxu0 0.0
    %3421 = vmatprep.subr.mxu0 0.0
    %3422 = vmatpush1.msra.mxu0 0.0
    %3423 = vmatprep.subr.mxu0 0.0
    %3424 = vmatpush1.msra.mxu0 0.0
    %3425 = vmatprep.subr.mxu0 0.0
    %3426 = vmatpush1.msra.mxu0 0.0
    %3427 = vmatprep.subr.mxu0 0.0
    %3428 = vmatpush1.msra.mxu0 0.0
    %3429 = vmatprep.subr.mxu0 0.0
    %3430 = vmatpush1.msra.mxu0 0.0
    %3431 = vmatprep.mubr.f32.mxu0 0.0
    %3432 = vmatmul.mubr.f32.gmra.mrb[0].mxu0 %v3365
    %v3433 = vpop.f32.mrb[0].mxu0
    %v3434 = vadd.f32 0.0, %v3433
    %v3435 = vpop.f32.mrb[0].mxu0
    %3436 = vdwg.mxu0
    %v3437 = vadd.f32 %v3343, %v3434
    %v3439 = vrot.slane %v3332, 2
    %v3441 = vadd.f32 %v3331, %v3439
    %v3442 = vmax.f32 %v3331, %v3439
    %v3443 = vrot.slane %v3332, 4
    %v3445 = vadd.f32 %v3441, %v3443
    %v3446 = vmax.f32 %v3442, %v3443
    %v3447 = vmul.f32 %v3445, 0.33333334
    %3449 = vrot.lane.b32.xlu0 %v3446, 16
    %v3450 = vpop.permute.xlu0 %3449
    %v3452 = vsel %vm3358, %v3447, %v3450
    %s3453 = scalar_lea.vmem %s6, 32
    %v3454 = vld [vmem:[%s3453] sm:$0xff]
    %v3455 = vld [vmem:[%s3453 + $0x8] sm:$0xff]
    %v3456 = vld [vmem:[%s3453 + $0x10] sm:$0xff]
    %v3457 = vld [vmem:[%s3453 + $0x18] sm:$0xff]
    %v3459 = vrot.slane %v3452, 6
    %v3460 = vsel %vm334, %v3459, 0
    %3462 = vmatprep.subr.mxu0 0.0
    %3463 = vmatpush1.msra.mxu0 %v3454
    %3464 = vmatprep.subr.mxu0 0.0
    %3465 = vmatpush1.msra.mxu0 %v3455
    %3466 = vmatprep.subr.mxu0 0.0
    %3467 = vmatpush1.msra.mxu0 %v3456
    %3468 = vmatprep.subr.mxu0 0.0
    %3469 = vmatpush1.msra.mxu0 %v3457
    %3470 = vmatprep.subr.mxu0 0.0
    %3471 = vmatpush1.msra.mxu0 0.0
    %3472 = vmatprep.subr.mxu0 0.0
    %3473 = vmatpush1.msra.mxu0 0.0
    %3474 = vmatprep.subr.mxu0 0.0
    %3475 = vmatpush1.msra.mxu0 0.0
    %3476 = vmatprep.subr.mxu0 0.0
    %3477 = vmatpush1.msra.mxu0 0.0
    %3478 = vmatprep.subr.mxu0 0.0
    %3479 = vmatpush1.msra.mxu0 0.0
    %3480 = vmatprep.subr.mxu0 0.0
    %3481 = vmatpush1.msra.mxu0 0.0
    %3482 = vmatprep.subr.mxu0 0.0
    %3483 = vmatpush1.msra.mxu0 0.0
    %3484 = vmatprep.subr.mxu0 0.0
    %3485 = vmatpush1.msra.mxu0 0.0
    %3486 = vmatprep.subr.mxu0 0.0
    %3487 = vmatpush1.msra.mxu0 0.0
    %3488 = vmatprep.subr.mxu0 0.0
    %3489 = vmatpush1.msra.mxu0 0.0
    %3490 = vmatprep.subr.mxu0 0.0
    %3491 = vmatpush1.msra.mxu0 0.0
    %3492 = vmatprep.subr.mxu0 0.0
    %3493 = vmatpush1.msra.mxu0 0.0
    %3494 = vmatprep.subr.mxu0 0.0
    %3495 = vmatpush1.msra.mxu0 0.0
    %3496 = vmatprep.subr.mxu0 0.0
    %3497 = vmatpush1.msra.mxu0 0.0
    %3498 = vmatprep.subr.mxu0 0.0
    %3499 = vmatpush1.msra.mxu0 0.0
    %3500 = vmatprep.subr.mxu0 0.0
    %3501 = vmatpush1.msra.mxu0 0.0
    %3502 = vmatprep.subr.mxu0 0.0
    %3503 = vmatpush1.msra.mxu0 0.0
    %3504 = vmatprep.subr.mxu0 0.0
    %3505 = vmatpush1.msra.mxu0 0.0
    %3506 = vmatprep.subr.mxu0 0.0
    %3507 = vmatpush1.msra.mxu0 0.0
    %3508 = vmatprep.subr.mxu0 0.0
    %3509 = vmatpush1.msra.mxu0 0.0
    %3510 = vmatprep.subr.mxu0 0.0
    %3511 = vmatpush1.msra.mxu0 0.0
    %3512 = vmatprep.subr.mxu0 0.0
    %3513 = vmatpush1.msra.mxu0 0.0
    %3514 = vmatprep.subr.mxu0 0.0
    %3515 = vmatpush1.msra.mxu0 0.0
    %3516 = vmatprep.subr.mxu0 0.0
    %3517 = vmatpush1.msra.mxu0 0.0
    %3518 = vmatprep.subr.mxu0 0.0
    %3519 = vmatpush1.msra.mxu0 0.0
    %3520 = vmatprep.subr.mxu0 0.0
    %3521 = vmatpush1.msra.mxu0 0.0
    %3522 = vmatprep.subr.mxu0 0.0
    %3523 = vmatpush1.msra.mxu0 0.0
    %3524 = vmatprep.subr.mxu0 0.0
    %3525 = vmatpush1.msra.mxu0 0.0
    %3526 = vmatprep.mubr.f32.mxu0 0.0
    %3527 = vmatmul.mubr.f32.gmra.mrb[0].mxu0 %v3460
    %v3528 = vpop.f32.mrb[0].mxu0
    %v3529 = vadd.f32 0.0, %v3528
    %v3530 = vpop.f32.mrb[0].mxu0
    %3531 = vdwg.mxu0
    %v3532 = vadd.f32 %v3437, %v3529
    %v3533 = vadd.f32 %v3332, %v3439
    %v3534 = vmax.f32 %v3332, %v3439
    %v3536 = vrot.slane %v3333, 4
    %v3538 = vadd.f32 %v3533, %v3536
    %v3539 = vmax.f32 %v3534, %v3536
    %v3540 = vmul.f32 %v3538, 0.33333334
    %3542 = vrot.lane.b32.xlu0 %v3539, 16
    %v3543 = vpop.permute.xlu0 %3542
    %v3545 = vsel %vm3358, %v3540, %v3543
    %s3546 = scalar_lea.vmem %s6, 64
    %v3547 = vld [vmem:[%s3546] sm:$0xff]
    %v3548 = vld [vmem:[%s3546 + $0x8] sm:$0xff]
    %v3549 = vld [vmem:[%s3546 + $0x10] sm:$0xff]
    %v3550 = vld [vmem:[%s3546 + $0x18] sm:$0xff]
    %v3552 = vrot.slane %v3545, 4
    %v3553 = vsel %vm334, %v3552, 0
    %3555 = vmatprep.subr.mxu0 0.0
    %3556 = vmatpush1.msra.mxu0 %v3547
    %3557 = vmatprep.subr.mxu0 0.0
    %3558 = vmatpush1.msra.mxu0 %v3548
    %3559 = vmatprep.subr.mxu0 0.0
    %3560 = vmatpush1.msra.mxu0 %v3549
    %3561 = vmatprep.subr.mxu0 0.0
    %3562 = vmatpush1.msra.mxu0 %v3550
    %3563 = vmatprep.subr.mxu0 0.0
    %3564 = vmatpush1.msra.mxu0 0.0
    %3565 = vmatprep.subr.mxu0 0.0
    %3566 = vmatpush1.msra.mxu0 0.0
    %3567 = vmatprep.subr.mxu0 0.0
    %3568 = vmatpush1.msra.mxu0 0.0
    %3569 = vmatprep.subr.mxu0 0.0
    %3570 = vmatpush1.msra.mxu0 0.0
    %3571 = vmatprep.subr.mxu0 0.0
    %3572 = vmatpush1.msra.mxu0 0.0
    %3573 = vmatprep.subr.mxu0 0.0
    %3574 = vmatpush1.msra.mxu0 0.0
    %3575 = vmatprep.subr.mxu0 0.0
    %3576 = vmatpush1.msra.mxu0 0.0
    %3577 = vmatprep.subr.mxu0 0.0
    %3578 = vmatpush1.msra.mxu0 0.0
    %3579 = vmatprep.subr.mxu0 0.0
    %3580 = vmatpush1.msra.mxu0 0.0
    %3581 = vmatprep.subr.mxu0 0.0
    %3582 = vmatpush1.msra.mxu0 0.0
    %3583 = vmatprep.subr.mxu0 0.0
    %3584 = vmatpush1.msra.mxu0 0.0
    %3585 = vmatprep.subr.mxu0 0.0
    %3586 = vmatpush1.msra.mxu0 0.0
    %3587 = vmatprep.subr.mxu0 0.0
    %3588 = vmatpush1.msra.mxu0 0.0
    %3589 = vmatprep.subr.mxu0 0.0
    %3590 = vmatpush1.msra.mxu0 0.0
    %3591 = vmatprep.subr.mxu0 0.0
    %3592 = vmatpush1.msra.mxu0 0.0
    %3593 = vmatprep.subr.mxu0 0.0
    %3594 = vmatpush1.msra.mxu0 0.0
    %3595 = vmatprep.subr.mxu0 0.0
    %3596 = vmatpush1.msra.mxu0 0.0
    %3597 = vmatprep.subr.mxu0 0.0
    %3598 = vmatpush1.msra.mxu0 0.0
    %3599 = vmatprep.subr.mxu0 0.0
    %3600 = vmatpush1.msra.mxu0 0.0
    %3601 = vmatprep.subr.mxu0 0.0
    %3602 = vmatpush1.msra.mxu0 0.0
    %3603 = vmatprep.subr.mxu0 0.0
    %3604 = vmatpush1.msra.mxu0 0.0
    %3605 = vmatprep.subr.mxu0 0.0
    %3606 = vmatpush1.msra.mxu0 0.0
    %3607 = vmatprep.subr.mxu0 0.0
    %3608 = vmatpush1.msra.mxu0 0.0
    %3609 = vmatprep.subr.mxu0 0.0
    %3610 = vmatpush1.msra.mxu0 0.0
    %3611 = vmatprep.subr.mxu0 0.0
    %3612 = vmatpush1.msra.mxu0 0.0
    %3613 = vmatprep.subr.mxu0 0.0
    %3614 = vmatpush1.msra.mxu0 0.0
    %3615 = vmatprep.subr.mxu0 0.0
    %3616 = vmatpush1.msra.mxu0 0.0
    %3617 = vmatprep.subr.mxu0 0.0
    %3618 = vmatpush1.msra.mxu0 0.0
    %3619 = vmatprep.mubr.f32.mxu0 0.0
    %3620 = vmatmul.mubr.f32.gmra.mrb[0].mxu0 %v3553
    %v3621 = vpop.f32.mrb[0].mxu0
    %v3622 = vadd.f32 0.0, %v3621
    %v3623 = vpop.f32.mrb[0].mxu0
    %3624 = vdwg.mxu0
    %v3625 = vadd.f32 %v3532, %v3622
    %v3626 = vrot.slane %v3333, 2
    %v3628 = vadd.f32 %v3333, %v3626
    %v3629 = vmax.f32 %v3333, %v3626
    %v3630 = vadd.f32 %v3628, %v3536
    %v3631 = vmax.f32 %v3629, %v3536
    %v3632 = vmul.f32 %v3630, 0.33333334
    %3634 = vrot.lane.b32.xlu0 %v3631, 16
    %v3635 = vpop.permute.xlu0 %3634
    %v3637 = vsel %vm3358, %v3632, %v3635
    %s3638 = scalar_lea.vmem %s6, 96
    %v3639 = vld [vmem:[%s3638] sm:$0xff]
    %v3640 = vld [vmem:[%s3638 + $0x8] sm:$0xff]
    %v3641 = vld [vmem:[%s3638 + $0x10] sm:$0xff]
    %v3642 = vld [vmem:[%s3638 + $0x18] sm:$0xff]
    %v3644 = vrot.slane %v3637, 2
    %v3645 = vsel %vm334, %v3644, 0
    %3647 = vmatprep.subr.mxu0 0.0
    %3648 = vmatpush1.msra.mxu0 %v3639
    %3649 = vmatprep.subr.mxu0 0.0
    %3650 = vmatpush1.msra.mxu0 %v3640
    %3651 = vmatprep.subr.mxu0 0.0
    %3652 = vmatpush1.msra.mxu0 %v3641
    %3653 = vmatprep.subr.mxu0 0.0
    %3654 = vmatpush1.msra.mxu0 %v3642
    %3655 = vmatprep.subr.mxu0 0.0
    %3656 = vmatpush1.msra.mxu0 0.0
    %3657 = vmatprep.subr.mxu0 0.0
    %3658 = vmatpush1.msra.mxu0 0.0
    %3659 = vmatprep.subr.mxu0 0.0
    %3660 = vmatpush1.msra.mxu0 0.0
    %3661 = vmatprep.subr.mxu0 0.0
    %3662 = vmatpush1.msra.mxu0 0.0
    %3663 = vmatprep.subr.mxu0 0.0
    %3664 = vmatpush1.msra.mxu0 0.0
    %3665 = vmatprep.subr.mxu0 0.0
    %3666 = vmatpush1.msra.mxu0 0.0
    %3667 = vmatprep.subr.mxu0 0.0
    %3668 = vmatpush1.msra.mxu0 0.0
    %3669 = vmatprep.subr.mxu0 0.0
    %3670 = vmatpush1.msra.mxu0 0.0
    %3671 = vmatprep.subr.mxu0 0.0
    %3672 = vmatpush1.msra.mxu0 0.0
    %3673 = vmatprep.subr.mxu0 0.0
    %3674 = vmatpush1.msra.mxu0 0.0
    %3675 = vmatprep.subr.mxu0 0.0
    %3676 = vmatpush1.msra.mxu0 0.0
    %3677 = vmatprep.subr.mxu0 0.0
    %3678 = vmatpush1.msra.mxu0 0.0
    %3679 = vmatprep.subr.mxu0 0.0
    %3680 = vmatpush1.msra.mxu0 0.0
    %3681 = vmatprep.subr.mxu0 0.0
    %3682 = vmatpush1.msra.mxu0 0.0
    %3683 = vmatprep.subr.mxu0 0.0
    %3684 = vmatpush1.msra.mxu0 0.0
    %3685 = vmatprep.subr.mxu0 0.0
    %3686 = vmatpush1.msra.mxu0 0.0
    %3687 = vmatprep.subr.mxu0 0.0
    %3688 = vmatpush1.msra.mxu0 0.0
    %3689 = vmatprep.subr.mxu0 0.0
    %3690 = vmatpush1.msra.mxu0 0.0
    %3691 = vmatprep.subr.mxu0 0.0
    %3692 = vmatpush1.msra.mxu0 0.0
    %3693 = vmatprep.subr.mxu0 0.0
    %3694 = vmatpush1.msra.mxu0 0.0
    %3695 = vmatprep.subr.mxu0 0.0
    %3696 = vmatpush1.msra.mxu0 0.0
    %3697 = vmatprep.subr.mxu0 0.0
    %3698 = vmatpush1.msra.mxu0 0.0
    %3699 = vmatprep.subr.mxu0 0.0
    %3700 = vmatpush1.msra.mxu0 0.0
    %3701 = vmatprep.subr.mxu0 0.0
    %3702 = vmatpush1.msra.mxu0 0.0
    %3703 = vmatprep.subr.mxu0 0.0
    %3704 = vmatpush1.msra.mxu0 0.0
    %3705 = vmatprep.subr.mxu0 0.0
    %3706 = vmatpush1.msra.mxu0 0.0
    %3707 = vmatprep.subr.mxu0 0.0
    %3708 = vmatpush1.msra.mxu0 0.0
    %3709 = vmatprep.subr.mxu0 0.0
    %3710 = vmatpush1.msra.mxu0 0.0
    %3711 = vmatprep.mubr.f32.mxu0 0.0
    %3712 = vmatmul.mubr.f32.gmra.mrb[0].mxu0 %v3645
    %v3713 = vpop.f32.mrb[0].mxu0
    %v3714 = vadd.f32 0.0, %v3713
    %v3715 = vpop.f32.mrb[0].mxu0
    %3716 = vdwg.mxu0
    %v3717 = vadd.f32 %v3625, %v3714
    %v3719 = vrot.slane %v3334, 2
    %v3721 = vadd.f32 %v3334, %v3719
    %v3722 = vmax.f32 %v3334, %v3719
    %v3723 = vrot.slane %v3334, 4
    %v3725 = vadd.f32 %v3721, %v3723
    %v3726 = vmax.f32 %v3722, %v3723
    %v3727 = vmul.f32 %v3725, 0.33333334
    %3729 = vrot.lane.b32.xlu0 %v3726, 16
    %v3730 = vpop.permute.xlu0 %3729
    %v3732 = vsel %vm3358, %v3727, %v3730
    %s3733 = scalar_lea.vmem %s6, 128
    %v3734 = vld [vmem:[%s3733] sm:$0xff]
    %v3735 = vld [vmem:[%s3733 + $0x8] sm:$0xff]
    %v3736 = vld [vmem:[%s3733 + $0x10] sm:$0xff]
    %v3737 = vld [vmem:[%s3733 + $0x18] sm:$0xff]
    %v3739 = vsel %vm334, %v3732, 0
    %3741 = vmatprep.subr.mxu0 0.0
    %3742 = vmatpush1.msra.mxu0 %v3734
    %3743 = vmatprep.subr.mxu0 0.0
    %3744 = vmatpush1.msra.mxu0 %v3735
    %3745 = vmatprep.subr.mxu0 0.0
    %3746 = vmatpush1.msra.mxu0 %v3736
    %3747 = vmatprep.subr.mxu0 0.0
    %3748 = vmatpush1.msra.mxu0 %v3737
    %3749 = vmatprep.subr.mxu0 0.0
    %3750 = vmatpush1.msra.mxu0 0.0
    %3751 = vmatprep.subr.mxu0 0.0
    %3752 = vmatpush1.msra.mxu0 0.0
    %3753 = vmatprep.subr.mxu0 0.0
    %3754 = vmatpush1.msra.mxu0 0.0
    %3755 = vmatprep.subr.mxu0 0.0
    %3756 = vmatpush1.msra.mxu0 0.0
    %3757 = vmatprep.subr.mxu0 0.0
    %3758 = vmatpush1.msra.mxu0 0.0
    %3759 = vmatprep.subr.mxu0 0.0
    %3760 = vmatpush1.msra.mxu0 0.0
    %3761 = vmatprep.subr.mxu0 0.0
    %3762 = vmatpush1.msra.mxu0 0.0
    %3763 = vmatprep.subr.mxu0 0.0
    %3764 = vmatpush1.msra.mxu0 0.0
    %3765 = vmatprep.subr.mxu0 0.0
    %3766 = vmatpush1.msra.mxu0 0.0
    %3767 = vmatprep.subr.mxu0 0.0
    %3768 = vmatpush1.msra.mxu0 0.0
    %3769 = vmatprep.subr.mxu0 0.0
    %3770 = vmatpush1.msra.mxu0 0.0
    %3771 = vmatprep.subr.mxu0 0.0
    %3772 = vmatpush1.msra.mxu0 0.0
    %3773 = vmatprep.subr.mxu0 0.0
    %3774 = vmatpush1.msra.mxu0 0.0
    %3775 = vmatprep.subr.mxu0 0.0
    %3776 = vmatpush1.msra.mxu0 0.0
    %3777 = vmatprep.subr.mxu0 0.0
    %3778 = vmatpush1.msra.mxu0 0.0
    %3779 = vmatprep.subr.mxu0 0.0
    %3780 = vmatpush1.msra.mxu0 0.0
    %3781 = vmatprep.subr.mxu0 0.0
    %3782 = vmatpush1.msra.mxu0 0.0
    %3783 = vmatprep.subr.mxu0 0.0
    %3784 = vmatpush1.msra.mxu0 0.0
    %3785 = vmatprep.subr.mxu0 0.0
    %3786 = vmatpush1.msra.mxu0 0.0
    %3787 = vmatprep.subr.mxu0 0.0
    %3788 = vmatpush1.msra.mxu0 0.0
    %3789 = vmatprep.subr.mxu0 0.0
    %3790 = vmatpush1.msra.mxu0 0.0
    %3791 = vmatprep.subr.mxu0 0.0
    %3792 = vmatpush1.msra.mxu0 0.0
    %3793 = vmatprep.subr.mxu0 0.0
    %3794 = vmatpush1.msra.mxu0 0.0
    %3795 = vmatprep.subr.mxu0 0.0
    %3796 = vmatpush1.msra.mxu0 0.0
    %3797 = vmatprep.subr.mxu0 0.0
    %3798 = vmatpush1.msra.mxu0 0.0
    %3799 = vmatprep.subr.mxu0 0.0
    %3800 = vmatpush1.msra.mxu0 0.0
    %3801 = vmatprep.subr.mxu0 0.0
    %3802 = vmatpush1.msra.mxu0 0.0
    %3803 = vmatprep.subr.mxu0 0.0
    %3804 = vmatpush1.msra.mxu0 0.0
    %3805 = vmatprep.mubr.f32.mxu0 0.0
    %3806 = vmatmul.mubr.f32.gmra.mrb[0].mxu0 %v3739
    %v3807 = vpop.f32.mrb[0].mxu0
    %v3808 = vadd.f32 0.0, %v3807
    %v3809 = vpop.f32.mrb[0].mxu0
    %3810 = vdwg.mxu0
    %v3811 = vadd.f32 %v3717, %v3808
    %v3813 = vrot.slane %v3335, 2
    %v3815 = vadd.f32 %v3334, %v3813
    %v3816 = vmax.f32 %v3334, %v3813
    %v3817 = vrot.slane %v3335, 4
    %v3819 = vadd.f32 %v3815, %v3817
    %v3820 = vmax.f32 %v3816, %v3817
    %v3821 = vmul.f32 %v3819, 0.33333334
    %3823 = vrot.lane.b32.xlu0 %v3820, 16
    %v3824 = vpop.permute.xlu0 %3823
    %v3826 = vsel %vm3358, %v3821, %v3824
    %s3827 = scalar_lea.vmem %s6, 160
    %v3828 = vld [vmem:[%s3827] sm:$0xff]
    %v3829 = vld [vmem:[%s3827 + $0x8] sm:$0xff]
    %v3830 = vld [vmem:[%s3827 + $0x10] sm:$0xff]
    %v3831 = vld [vmem:[%s3827 + $0x18] sm:$0xff]
    %v3833 = vrot.slane %v3826, 6
    %v3834 = vsel %vm334, %v3833, 0
    %3836 = vmatprep.subr.mxu0 0.0
    %3837 = vmatpush1.msra.mxu0 %v3828
    %3838 = vmatprep.subr.mxu0 0.0
    %3839 = vmatpush1.msra.mxu0 %v3829
    %3840 = vmatprep.subr.mxu0 0.0
    %3841 = vmatpush1.msra.mxu0 %v3830
    %3842 = vmatprep.subr.mxu0 0.0
    %3843 = vmatpush1.msra.mxu0 %v3831
    %3844 = vmatprep.subr.mxu0 0.0
    %3845 = vmatpush1.msra.mxu0 0.0
    %3846 = vmatprep.subr.mxu0 0.0
    %3847 = vmatpush1.msra.mxu0 0.0
    %3848 = vmatprep.subr.mxu0 0.0
    %3849 = vmatpush1.msra.mxu0 0.0
    %3850 = vmatprep.subr.mxu0 0.0
    %3851 = vmatpush1.msra.mxu0 0.0
    %3852 = vmatprep.subr.mxu0 0.0
    %3853 = vmatpush1.msra.mxu0 0.0
    %3854 = vmatprep.subr.mxu0 0.0
    %3855 = vmatpush1.msra.mxu0 0.0
    %3856 = vmatprep.subr.mxu0 0.0
    %3857 = vmatpush1.msra.mxu0 0.0
    %3858 = vmatprep.subr.mxu0 0.0
    %3859 = vmatpush1.msra.mxu0 0.0
    %3860 = vmatprep.subr.mxu0 0.0
    %3861 = vmatpush1.msra.mxu0 0.0
    %3862 = vmatprep.subr.mxu0 0.0
    %3863 = vmatpush1.msra.mxu0 0.0
    %3864 = vmatprep.subr.mxu0 0.0
    %3865 = vmatpush1.msra.mxu0 0.0
    %3866 = vmatprep.subr.mxu0 0.0
    %3867 = vmatpush1.msra.mxu0 0.0
    %3868 = vmatprep.subr.mxu0 0.0
    %3869 = vmatpush1.msra.mxu0 0.0
    %3870 = vmatprep.subr.mxu0 0.0
    %3871 = vmatpush1.msra.mxu0 0.0
    %3872 = vmatprep.subr.mxu0 0.0
    %3873 = vmatpush1.msra.mxu0 0.0
    %3874 = vmatprep.subr.mxu0 0.0
    %3875 = vmatpush1.msra.mxu0 0.0
    %3876 = vmatprep.subr.mxu0 0.0
    %3877 = vmatpush1.msra.mxu0 0.0
    %3878 = vmatprep.subr.mxu0 0.0
    %3879 = vmatpush1.msra.mxu0 0.0
    %3880 = vmatprep.subr.mxu0 0.0
    %3881 = vmatpush1.msra.mxu0 0.0
    %3882 = vmatprep.subr.mxu0 0.0
    %3883 = vmatpush1.msra.mxu0 0.0
    %3884 = vmatprep.subr.mxu0 0.0
    %3885 = vmatpush1.msra.mxu0 0.0
    %3886 = vmatprep.subr.mxu0 0.0
    %3887 = vmatpush1.msra.mxu0 0.0
    %3888 = vmatprep.subr.mxu0 0.0
    %3889 = vmatpush1.msra.mxu0 0.0
    %3890 = vmatprep.subr.mxu0 0.0
    %3891 = vmatpush1.msra.mxu0 0.0
    %3892 = vmatprep.subr.mxu0 0.0
    %3893 = vmatpush1.msra.mxu0 0.0
    %3894 = vmatprep.subr.mxu0 0.0
    %3895 = vmatpush1.msra.mxu0 0.0
    %3896 = vmatprep.subr.mxu0 0.0
    %3897 = vmatpush1.msra.mxu0 0.0
    %3898 = vmatprep.subr.mxu0 0.0
    %3899 = vmatpush1.msra.mxu0 0.0
    %3900 = vmatprep.mubr.f32.mxu0 0.0
    %3901 = vmatmul.mubr.f32.gmra.mrb[0].mxu0 %v3834
    %v3902 = vpop.f32.mrb[0].mxu0
    %v3903 = vadd.f32 0.0, %v3902
    %v3904 = vpop.f32.mrb[0].mxu0
    %3905 = vdwg.mxu0
    %v3906 = vadd.f32 %v3811, %v3903
    %vm3907 = vcmask 1041408
    %v3908 = vsel %vm3907, %v3906, -inf
    %3909 = vmax.xlane.f32.xlu0 %v3908
    %v3910 = vpop.xlane.xlu0 %3909
    %v3911 = vsub.f32 %v3906, %v3910
    %v3912 = vmul.f32 %v3911, 1.442695
    %v3913 = vpow.pop %v3912
    %v3914 = vsel %vm3907, %v3913, 0.0
    %3915 = vadd.xlane.f32.xlu0 %v3914
    %v3916 = vpop.xlane.xlu0 %3915
    %v3917 = vrcp.pop %v3916
    %v3918 = vmul.f32 %v3916, %v3917
    %v3919 = vsub.f32 2.0, %v3918
    %v3920 = vmul.f32 %v3917, %v3919
    %v3921 = vmul.f32 %v3916, %v3920
    %v3922 = vsub.f32 2.0, %v3921
    %v3923 = vmul.f32 %v3920, %v3922
    %v3924 = vmul.f32 %v3913, %v3923
    %vm3925 = vcmask 41984
    %3926 = vst.msk [vmem:[#allocation4] sm:$0x3] %vm3925, %v3924
    // Predicated region
    $region34: #{bilstm_cnn_forward.1} parent=1 // pred_check
      _
    $region35: #{bilstm_cnn_forward.1} parent=1 // pred_check_branch
      %3928 = sbr.rel (0) target = $region37
    $region36: #{bilstm_cnn_forward.1} parent=1 // pred_region
      %s3930 = ssub.s32 32, 32
      %3931 = vsyncadd [#allocation5], %s3930
      %s3933 = sshll.u32 [#allocation4], 4
      %s3934 = int_to_ptr.vmem [resolvable:$true] %s3933
      %3936 = dma.vmem_to_hbm [thread:$0]  %s3934, 32, %s8, [#allocation5]
    $region37: #{bilstm_cnn_forward.1} parent=1 // pred_fallthru
      _
    // Predicated region
    $region38: #{bilstm_cnn_forward.1} parent=1 // pred_check
      _
    $region39: #{bilstm_cnn_forward.1} parent=1 // pred_check_branch
      %3938 = sbr.rel (0) target = $region41
    $region40: #{bilstm_cnn_forward.1} parent=1 // pred_region
      %3939 = dma.done [#allocation5], 32
    $region41: #{bilstm_cnn_forward.1} parent=1 // pred_fallthru
      _
    %3940 = vsyncpa [#allocation5], 1

</llo_original>
